<compile_context>
chip_gen: v5e
topology: v5e:2x2
jax: 0.10.0
libtpu: 0.0.40
codegen_flags: <defaults>
</compile_context>

<pallas_src>
import jax
import jax.numpy as jnp
from jax.experimental import pallas as pl
from jax.experimental.pallas import tpu as pltpu

_MiB = 1024 * 1024


def _round_up(x, m):
    return ((x + m - 1) // m) * m


def _device_kind():
    try:
        return jax.devices()[0].device_kind.lower()
    except Exception:
        return ""


def _make_mlp_kernel(num_hidden_layers):
    def kernel(*refs):
        # refs = (x, W_in, b_in, [W_h_i, b_h_i]*L, W_out, b_out, out)
        x_ref = refs[0]
        w_in_ref, b_in_ref = refs[1], refs[2]
        hidden_refs = refs[3:3 + 2 * num_hidden_layers]
        w_out_ref = refs[3 + 2 * num_hidden_layers]
        b_out_ref = refs[4 + 2 * num_hidden_layers]
        o_ref = refs[5 + 2 * num_hidden_layers]

        # input_layer (+ eval-mode dropout == identity): bf16 MXU operands, f32 accumulate.
        h = jnp.dot(x_ref[...], w_in_ref[...],
                    preferred_element_type=jnp.float32) + b_in_ref[...]

        # hidden layers: ReLU(Linear(h)); cast back to bf16 only for the MXU operands.
        for i in range(num_hidden_layers):
            w_ref = hidden_refs[2 * i]
            b_ref = hidden_refs[2 * i + 1]
            h = jnp.dot(h.astype(w_ref.dtype), w_ref[...],
                        preferred_element_type=jnp.float32) + b_ref[...]
            h = jnp.maximum(h, 0.0)  # ReLU in f32 (v5e VPU has no bf16 path)

        # output_layer (+ eval-mode dropout == identity before it)
        o_ref[...] = (jnp.dot(h.astype(w_out_ref.dtype), w_out_ref[...],
                              preferred_element_type=jnp.float32)
                      + b_out_ref[...]).astype(o_ref.dtype)

    return kernel


def _feature_align(kind):
    # v6e/v7x MXU passes are 256 wide; v5e's MXU is 128x128.
    return 128 if "v5" in kind else 256


def _pick_tiles(batch, kind):
    """Return (batch_tile, padded_batch): 16-aligned (bf16 sublane packing),
    generation-aware, and on v7x forced to >= 2 grid steps so both TCs run."""
    if "v5" in kind:
        desired = 256 if batch >= 256 else 128   # same 128 MiB VMEM as v6e, smaller MXU
    elif "v6" in kind:
        desired = 512                            # big tiles reach the HBM roofline
    else:
        desired = 256                            # v7x (64 MiB/TC VMEM) / unknown
    tb = min(desired, _round_up(max(batch, 1), 16))
    if "v7" in kind:
        # Cap tile so the parallel batch axis has >= 2 steps (one per TensorCore).
        half = _round_up(max((batch + 1) // 2, 1), 16)
        tb = min(tb, half)
        b_pad = max(_round_up(batch, tb), 2 * tb)
    else:
        b_pad = _round_up(batch, tb)
    return tb, b_pad


def mlp_forward(x_nchw, params, num_hidden_layers, *,
                compute_dtype=jnp.bfloat16, out_dtype=jnp.bfloat16):
    """x_nchw: [B, C, H, W] float32.  params: dict of f32 weights (see init_params)."""
    B = x_nchw.shape[0]
    x_flat = x_nchw.reshape(B, -1)
    in_features = x_flat.shape[1]
    hidden = params["w_in"].shape[1]
    out_features = params["w_out"].shape[1]

    kind = _device_kind()
    lane = _feature_align(kind)
    in_pad = _round_up(in_features, lane)
    hid_pad = _round_up(hidden, lane)
    out_pad = _round_up(out_features, lane)
    tb, b_pad = _pick_tiles(B, kind)
    num_tiles = b_pad // tb

    # ---- pad & cast (zero padding is exact: zero rows/cols and zero bias padding) ----
    def pad2(a, rows, cols, dtype):
        a = jnp.asarray(a, jnp.float32)
        pr, pc = rows - a.shape[0], cols - a.shape[1]
        if pr or pc:
            a = jnp.pad(a, ((0, pr), (0, pc)))
        return a.astype(dtype)

    # Cast once, then pad only if actually needed -> no extra HBM round-trip of the
    # activation tensor when in_features is already lane-aligned and B % tb == 0.
    x_p = x_flat.astype(compute_dtype)
    if (b_pad - B) or (in_pad - in_features):
        x_p = jnp.pad(x_p, ((0, b_pad - B), (0, in_pad - in_features)))

    w_in = pad2(params["w_in"], in_pad, hid_pad, compute_dtype)
    b_in = pad2(params["b_in"], 1, hid_pad, jnp.float32)
    hidden_inputs = []
    for i in range(num_hidden_layers):
        hidden_inputs.append(pad2(params[f"w_h{i}"], hid_pad, hid_pad, compute_dtype))
        hidden_inputs.append(pad2(params[f"b_h{i}"], 1, hid_pad, jnp.float32))
    w_out = pad2(params["w_out"], hid_pad, out_pad, compute_dtype)
    b_out = pad2(params["b_out"], 1, out_pad, jnp.float32)

    inputs = [x_p, w_in, b_in] + hidden_inputs + [w_out, b_out]
    weight_bytes = sum(int(a.size) * a.dtype.itemsize for a in inputs[1:])
    cd_size = jnp.dtype(compute_dtype).itemsize
    od_size = jnp.dtype(out_dtype).itemsize

    # Cost hint for the XLA scheduler.
    flops = 2 * b_pad * (in_pad * hid_pad
                         + num_hidden_layers * hid_pad * hid_pad
                         + hid_pad * out_pad)
    bytes_accessed = (int(x_p.size) * x_p.dtype.itemsize + weight_bytes
                      + b_pad * out_pad * od_size)

    def build(single_buffer):
        # Resident weights/biases: constant index_map -> no re-DMA across batch tiles;
        # Buffered(1) drops the default 2x buffer allocation.
        def resident(shape):
            if single_buffer:
                return pl.BlockSpec(shape, lambda i: (0, 0),
                                    pipeline_mode=pl.Buffered(1))
            return pl.BlockSpec(shape, lambda i: (0, 0))

        in_specs = [pl.BlockSpec((tb, in_pad), lambda i: (i, 0)),
                    resident((in_pad, hid_pad)), resident((1, hid_pad))]
        for _ in range(num_hidden_layers):
            in_specs += [resident((hid_pad, hid_pad)), resident((1, hid_pad))]
        in_specs += [resident((hid_pad, out_pad)), resident((1, out_pad))]
        out_spec = pl.BlockSpec((tb, out_pad), lambda i: (i, 0))

        # VMEM budget with real buffer multiplicities.
        wb_mult = 1 if single_buffer else 2
        vmem_need = (wb_mult * weight_bytes
                     + 2 * tb * in_pad * cd_size      # double-buffered x tiles
                     + 2 * tb * out_pad * od_size     # double-buffered out tiles
                     + 2 * tb * hid_pad * 4           # live f32 h + matmul result
                     + tb * hid_pad * cd_size         # bf16 cast copy of h for the MXU
                     + tb * out_pad * 4)              # f32 result before the output cast
        if "v6" in kind:
            cap = 110 * _MiB                          # 128 MiB physical VMEM
        elif "v5" in kind:
            cap = 96 * _MiB                           # 128 MiB physical VMEM
        else:
            cap = 48 * _MiB                           # v7x: 64 MiB per TC, leave headroom
        vmem_limit = int(min(max(int(vmem_need * 1.25) + 4 * _MiB, 32 * _MiB), cap))

        return pl.pallas_call(
            _make_mlp_kernel(num_hidden_layers),
            out_shape=jax.ShapeDtypeStruct((b_pad, out_pad), out_dtype),
            grid=(num_tiles,),
            in_specs=in_specs,
            out_specs=out_spec,
            compiler_params=pltpu.CompilerParams(
                dimension_semantics=("parallel",),    # shard batch tiles over v7x's 2 TCs
                vmem_limit_bytes=vmem_limit),
            cost_estimate=pl.CostEstimate(
                flops=int(flops), transcendentals=0,
                bytes_accessed=int(bytes_accessed)),
        )

    try:
        out_padded = build(single_buffer=hasattr(pl, "Buffered"))(*inputs)
    except Exception:
        # Fallback if pipeline_mode=pl.Buffered(1) is rejected by this jax/Mosaic build.
        out_padded = build(single_buffer=False)(*inputs)

    return out_padded[:B, :out_features]


def init_params(key, input_size, hidden_size, output_size, num_hidden_layers):
    """Deterministic PyTorch-Linear-style init: U(-1/sqrt(fan_in), 1/sqrt(fan_in))."""
    params = {}

    def linear(key, fan_in, fan_out):
        k_w, k_b = jax.random.split(key)
        bound = 1.0 / jnp.sqrt(fan_in)
        w = jax.random.uniform(k_w, (fan_in, fan_out), jnp.float32, -bound, bound)
        b = jax.random.uniform(k_b, (1, fan_out), jnp.float32, -bound, bound)
        return w, b

    keys = jax.random.split(key, num_hidden_layers + 2)
    params["w_in"], params["b_in"] = linear(keys[0], input_size, hidden_size)
    for i in range(num_hidden_layers):
        params[f"w_h{i}"], params[f"b_h{i}"] = linear(keys[1 + i], hidden_size, hidden_size)
    params["w_out"], params["b_out"] = linear(keys[-1], hidden_size, output_size)
    return params


def mlp_reference(x_nchw, params, num_hidden_layers, compute_dtype=jnp.bfloat16):
    """Pure-JAX reference with the same bf16-operand / f32-accumulate arithmetic."""
    x = x_nchw.reshape(x_nchw.shape[0], -1).astype(compute_dtype)
    h = jnp.dot(x, params["w_in"].astype(compute_dtype),
                preferred_element_type=jnp.float32) + params["b_in"]
    for i in range(num_hidden_layers):
        h = jnp.dot(h.astype(compute_dtype), params[f"w_h{i}"].astype(compute_dtype),
                    preferred_element_type=jnp.float32) + params[f"b_h{i}"]
        h = jnp.maximum(h, 0.0)
    return (jnp.dot(h.astype(compute_dtype), params["w_out"].astype(compute_dtype),
                    preferred_element_type=jnp.float32) + params["b_out"])


if __name__ == "__main__":
    # Small shapes consistent with the module's forward:
    B, C, H, W = 2, 4, 16, 16
    input_size = C * H * W        # 1024
    hidden_size = 32
    output_size = 8
    num_hidden_layers = 2
    # dropout rate irrelevant in eval mode

    key = jax.random.PRNGKey(0)
    k_x, k_p = jax.random.split(key)
    x = jax.random.normal(k_x, (B, C, H, W), jnp.float32)
    params = init_params(k_p, input_size, hidden_size, output_size, num_hidden_layers)

    out = mlp_forward(x, params, num_hidden_layers)
    out = jax.block_until_ready(out)

    ref = mlp_reference(x, params, num_hidden_layers)
    assert out.shape == (B, output_size), out.shape
    # out is bf16 (lower writeback traffic); compare in f32 with bf16-appropriate tolerance.
    assert jnp.allclose(out.astype(jnp.float32), ref, atol=2e-2, rtol=2e-2), \
        "mismatch vs reference"

    print("KERNEL_OK")
</pallas_src>

<mosaic_0001>
module attributes {stable_mosaic.version = 11 : i64} {
  func.func @kernel(%arg0: i32, %arg1: memref<16x1024xbf16, #tpu.memory_space<vmem>>, %arg2: memref<1024x256xbf16, #tpu.memory_space<vmem>>, %arg3: memref<1x256xf32, #tpu.memory_space<vmem>>, %arg4: memref<256x256xbf16, #tpu.memory_space<vmem>>, %arg5: memref<1x256xf32, #tpu.memory_space<vmem>>, %arg6: memref<256x256xbf16, #tpu.memory_space<vmem>>, %arg7: memref<1x256xf32, #tpu.memory_space<vmem>>, %arg8: memref<256x256xbf16, #tpu.memory_space<vmem>>, %arg9: memref<1x256xf32, #tpu.memory_space<vmem>>, %arg10: memref<16x256xbf16, #tpu.memory_space<vmem>>) attributes {dimension_semantics = [#tpu.dimension_semantics<parallel>], iteration_bounds = array<i64: 1>, scalar_prefetch = 0 : i64, scratch_operands = 0 : i64, tpu.core_type = #tpu.core_type<tc>, window_params = [{transform_indices = @transform_0, window_bounds = array<i64: 16, 1024>}, {pipeline_mode = #tpu.pipeline_mode<synchronous>, transform_indices = @transform_1, window_bounds = array<i64: 1024, 256>}, {pipeline_mode = #tpu.pipeline_mode<synchronous>, transform_indices = @transform_2, window_bounds = array<i64: 1, 256>}, {pipeline_mode = #tpu.pipeline_mode<synchronous>, transform_indices = @transform_3, window_bounds = array<i64: 256, 256>}, {pipeline_mode = #tpu.pipeline_mode<synchronous>, transform_indices = @transform_4, window_bounds = array<i64: 1, 256>}, {pipeline_mode = #tpu.pipeline_mode<synchronous>, transform_indices = @transform_5, window_bounds = array<i64: 256, 256>}, {pipeline_mode = #tpu.pipeline_mode<synchronous>, transform_indices = @transform_6, window_bounds = array<i64: 1, 256>}, {pipeline_mode = #tpu.pipeline_mode<synchronous>, transform_indices = @transform_7, window_bounds = array<i64: 256, 256>}, {pipeline_mode = #tpu.pipeline_mode<synchronous>, transform_indices = @transform_8, window_bounds = array<i64: 1, 256>}, {transform_indices = @transform_9, window_bounds = array<i64: 16, 256>}]} {
    %c0 = arith.constant 0 : index
    %c0_0 = arith.constant 0 : index
    %0 = vector.load %arg1[%c0, %c0_0] : memref<16x1024xbf16, #tpu.memory_space<vmem>>, vector<16x1024xbf16>
    %c0_1 = arith.constant 0 : index
    %c0_2 = arith.constant 0 : index
    %1 = vector.load %arg2[%c0_1, %c0_2] : memref<1024x256xbf16, #tpu.memory_space<vmem>>, vector<1024x256xbf16>
    %cst = arith.constant dense<0.000000e+00> : vector<16x256xf32>
    %2 = tpu.matmul %0, %1, %cst {dimension_numbers = #tpu.dot_dimension_numbers<[1], [0], [0], [1], [0, 0, 1, 1], [], []>} : vector<16x1024xbf16>, vector<1024x256xbf16>, vector<16x256xf32> -> vector<16x256xf32>
    %c0_3 = arith.constant 0 : index
    %c0_4 = arith.constant 0 : index
    %3 = vector.load %arg3[%c0_3, %c0_4] : memref<1x256xf32, #tpu.memory_space<vmem>>, vector<1x256xf32>
    %4 = vector.broadcast %3 : vector<1x256xf32> to vector<16x256xf32>
    %5 = arith.addf %2, %4 : vector<16x256xf32>
    %6 = arith.truncf %5 : vector<16x256xf32> to vector<16x256xbf16>
    %c0_5 = arith.constant 0 : index
    %c0_6 = arith.constant 0 : index
    %7 = vector.load %arg4[%c0_5, %c0_6] : memref<256x256xbf16, #tpu.memory_space<vmem>>, vector<256x256xbf16>
    %cst_7 = arith.constant dense<0.000000e+00> : vector<16x256xf32>
    %8 = tpu.matmul %6, %7, %cst_7 {dimension_numbers = #tpu.dot_dimension_numbers<[1], [0], [0], [1], [0, 0, 1, 1], [], []>} : vector<16x256xbf16>, vector<256x256xbf16>, vector<16x256xf32> -> vector<16x256xf32>
    %c0_8 = arith.constant 0 : index
    %c0_9 = arith.constant 0 : index
    %9 = vector.load %arg5[%c0_8, %c0_9] : memref<1x256xf32, #tpu.memory_space<vmem>>, vector<1x256xf32>
    %10 = vector.broadcast %9 : vector<1x256xf32> to vector<16x256xf32>
    %11 = arith.addf %8, %10 : vector<16x256xf32>
    %cst_10 = arith.constant 0.000000e+00 : f32
    %12 = vector.broadcast %cst_10 : f32 to vector<16x256xf32>
    %13 = arith.maximumf %11, %12 : vector<16x256xf32>
    %14 = arith.truncf %13 : vector<16x256xf32> to vector<16x256xbf16>
    %c0_11 = arith.constant 0 : index
    %c0_12 = arith.constant 0 : index
    %15 = vector.load %arg6[%c0_11, %c0_12] : memref<256x256xbf16, #tpu.memory_space<vmem>>, vector<256x256xbf16>
    %cst_13 = arith.constant dense<0.000000e+00> : vector<16x256xf32>
    %16 = tpu.matmul %14, %15, %cst_13 {dimension_numbers = #tpu.dot_dimension_numbers<[1], [0], [0], [1], [0, 0, 1, 1], [], []>} : vector<16x256xbf16>, vector<256x256xbf16>, vector<16x256xf32> -> vector<16x256xf32>
    %c0_14 = arith.constant 0 : index
    %c0_15 = arith.constant 0 : index
    %17 = vector.load %arg7[%c0_14, %c0_15] : memref<1x256xf32, #tpu.memory_space<vmem>>, vector<1x256xf32>
    %18 = vector.broadcast %17 : vector<1x256xf32> to vector<16x256xf32>
    %19 = arith.addf %16, %18 : vector<16x256xf32>
    %cst_16 = arith.constant 0.000000e+00 : f32
    %20 = vector.broadcast %cst_16 : f32 to vector<16x256xf32>
    %21 = arith.maximumf %19, %20 : vector<16x256xf32>
    %22 = arith.truncf %21 : vector<16x256xf32> to vector<16x256xbf16>
    %c0_17 = arith.constant 0 : index
    %c0_18 = arith.constant 0 : index
    %23 = vector.load %arg8[%c0_17, %c0_18] : memref<256x256xbf16, #tpu.memory_space<vmem>>, vector<256x256xbf16>
    %cst_19 = arith.constant dense<0.000000e+00> : vector<16x256xf32>
    %24 = tpu.matmul %22, %23, %cst_19 {dimension_numbers = #tpu.dot_dimension_numbers<[1], [0], [0], [1], [0, 0, 1, 1], [], []>} : vector<16x256xbf16>, vector<256x256xbf16>, vector<16x256xf32> -> vector<16x256xf32>
    %c0_20 = arith.constant 0 : index
    %c0_21 = arith.constant 0 : index
    %25 = vector.load %arg9[%c0_20, %c0_21] : memref<1x256xf32, #tpu.memory_space<vmem>>, vector<1x256xf32>
    %26 = vector.broadcast %25 : vector<1x256xf32> to vector<16x256xf32>
    %27 = arith.addf %24, %26 : vector<16x256xf32>
    %28 = arith.truncf %27 : vector<16x256xf32> to vector<16x256xbf16>
    %c0_22 = arith.constant 0 : index
    %c0_23 = arith.constant 0 : index
    %29 = vector.load %arg10[%c0_22, %c0_23] : memref<16x256xbf16, #tpu.memory_space<vmem>>, vector<16x256xbf16>
    tpu.vector_store %arg10[%c0_22, %c0_23], %28 {strides = array<i32>} : memref<16x256xbf16, #tpu.memory_space<vmem>>, vector<16x256xbf16>,
    return
  }
  func.func @transform_0(%arg0: i32) -> (i32, i32) {
    %c0_i32 = arith.constant 0 : i32
    %c0_i32_0 = arith.constant 0 : i32
    return %arg0, %c0_i32 : i32, i32
  }
  func.func @transform_1(%arg0: i32) -> (i32, i32) {
    %c0_i32 = arith.constant 0 : i32
    %c0_i32_0 = arith.constant 0 : i32
    %c0_i32_1 = arith.constant 0 : i32
    return %c0_i32, %c0_i32_0 : i32, i32
  }
  func.func @transform_2(%arg0: i32) -> (i32, i32) {
    %c0_i32 = arith.constant 0 : i32
    %c0_i32_0 = arith.constant 0 : i32
    %c0_i32_1 = arith.constant 0 : i32
    return %c0_i32, %c0_i32_0 : i32, i32
  }
  func.func @transform_3(%arg0: i32) -> (i32, i32) {
    %c0_i32 = arith.constant 0 : i32
    %c0_i32_0 = arith.constant 0 : i32
    %c0_i32_1 = arith.constant 0 : i32
    return %c0_i32, %c0_i32_0 : i32, i32
  }
  func.func @transform_4(%arg0: i32) -> (i32, i32) {
    %c0_i32 = arith.constant 0 : i32
    %c0_i32_0 = arith.constant 0 : i32
    %c0_i32_1 = arith.constant 0 : i32
    return %c0_i32, %c0_i32_0 : i32, i32
  }
  func.func @transform_5(%arg0: i32) -> (i32, i32) {
    %c0_i32 = arith.constant 0 : i32
    %c0_i32_0 = arith.constant 0 : i32
    %c0_i32_1 = arith.constant 0 : i32
    return %c0_i32, %c0_i32_0 : i32, i32
  }
  func.func @transform_6(%arg0: i32) -> (i32, i32) {
    %c0_i32 = arith.constant 0 : i32
    %c0_i32_0 = arith.constant 0 : i32
    %c0_i32_1 = arith.constant 0 : i32
    return %c0_i32, %c0_i32_0 : i32, i32
  }
  func.func @transform_7(%arg0: i32) -> (i32, i32) {
    %c0_i32 = arith.constant 0 : i32
    %c0_i32_0 = arith.constant 0 : i32
    %c0_i32_1 = arith.constant 0 : i32
    return %c0_i32, %c0_i32_0 : i32, i32
  }
  func.func @transform_8(%arg0: i32) -> (i32, i32) {
    %c0_i32 = arith.constant 0 : i32
    %c0_i32_0 = arith.constant 0 : i32
    %c0_i32_1 = arith.constant 0 : i32
    return %c0_i32, %c0_i32_0 : i32, i32
  }
  func.func @transform_9(%arg0: i32) -> (i32, i32) {
    %c0_i32 = arith.constant 0 : i32
    %c0_i32_0 = arith.constant 0 : i32
    return %arg0, %c0_i32 : i32, i32
  }
}

module attributes {stable_mosaic.version = 11 : i64} {
  func.func @kernel(%arg0: i32, %arg1: memref<16x1024xbf16, #tpu.memory_space<vmem>>, %arg2: memref<1024x256xbf16, #tpu.memory_space<vmem>>, %arg3: memref<1x256xf32, #tpu.memory_space<vmem>>, %arg4: memref<256x256xbf16, #tpu.memory_space<vmem>>, %arg5: memref<1x256xf32, #tpu.memory_space<vmem>>, %arg6: memref<256x256xbf16, #tpu.memory_space<vmem>>, %arg7: memref<1x256xf32, #tpu.memory_space<vmem>>, %arg8: memref<256x256xbf16, #tpu.memory_space<vmem>>, %arg9: memref<1x256xf32, #tpu.memory_space<vmem>>, %arg10: memref<16x256xbf16, #tpu.memory_space<vmem>>) attributes {dimension_semantics = [#tpu.dimension_semantics<parallel>], iteration_bounds = array<i64: 1>, scalar_prefetch = 0 : i64, scratch_operands = 0 : i64, tpu.core_type = #tpu.core_type<tc>, window_params = [{transform_indices = @transform_0, window_bounds = array<i64: 16, 1024>}, {pipeline_mode = #tpu.pipeline_mode<synchronous>, transform_indices = @transform_1, window_bounds = array<i64: 1024, 256>}, {pipeline_mode = #tpu.pipeline_mode<synchronous>, transform_indices = @transform_2, window_bounds = array<i64: 1, 256>}, {pipeline_mode = #tpu.pipeline_mode<synchronous>, transform_indices = @transform_3, window_bounds = array<i64: 256, 256>}, {pipeline_mode = #tpu.pipeline_mode<synchronous>, transform_indices = @transform_4, window_bounds = array<i64: 1, 256>}, {pipeline_mode = #tpu.pipeline_mode<synchronous>, transform_indices = @transform_5, window_bounds = array<i64: 256, 256>}, {pipeline_mode = #tpu.pipeline_mode<synchronous>, transform_indices = @transform_6, window_bounds = array<i64: 1, 256>}, {pipeline_mode = #tpu.pipeline_mode<synchronous>, transform_indices = @transform_7, window_bounds = array<i64: 256, 256>}, {pipeline_mode = #tpu.pipeline_mode<synchronous>, transform_indices = @transform_8, window_bounds = array<i64: 1, 256>}, {transform_indices = @transform_9, window_bounds = array<i64: 16, 256>}]} {
    %c0 = arith.constant 0 : index
    %c0_0 = arith.constant 0 : index
    %0 = vector.load %arg1[%c0, %c0_0] : memref<16x1024xbf16, #tpu.memory_space<vmem>>, vector<16x1024xbf16>
    %c0_1 = arith.constant 0 : index
    %c0_2 = arith.constant 0 : index
    %1 = vector.load %arg2[%c0_1, %c0_2] : memref<1024x256xbf16, #tpu.memory_space<vmem>>, vector<1024x256xbf16>
    %cst = arith.constant dense<0.000000e+00> : vector<16x256xf32>
    %2 = tpu.matmul %0, %1, %cst {dimension_numbers = #tpu.dot_dimension_numbers<[1], [0], [0], [1], [0, 0, 1, 1], [], []>} : vector<16x1024xbf16>, vector<1024x256xbf16>, vector<16x256xf32> -> vector<16x256xf32>
    %c0_3 = arith.constant 0 : index
    %c0_4 = arith.constant 0 : index
    %3 = vector.load %arg3[%c0_3, %c0_4] : memref<1x256xf32, #tpu.memory_space<vmem>>, vector<1x256xf32>
    %4 = vector.broadcast %3 : vector<1x256xf32> to vector<16x256xf32>
    %5 = arith.addf %2, %4 : vector<16x256xf32>
    %6 = arith.truncf %5 : vector<16x256xf32> to vector<16x256xbf16>
    %c0_5 = arith.constant 0 : index
    %c0_6 = arith.constant 0 : index
    %7 = vector.load %arg4[%c0_5, %c0_6] : memref<256x256xbf16, #tpu.memory_space<vmem>>, vector<256x256xbf16>
    %cst_7 = arith.constant dense<0.000000e+00> : vector<16x256xf32>
    %8 = tpu.matmul %6, %7, %cst_7 {dimension_numbers = #tpu.dot_dimension_numbers<[1], [0], [0], [1], [0, 0, 1, 1], [], []>} : vector<16x256xbf16>, vector<256x256xbf16>, vector<16x256xf32> -> vector<16x256xf32>
    %c0_8 = arith.constant 0 : index
    %c0_9 = arith.constant 0 : index
    %9 = vector.load %arg5[%c0_8, %c0_9] : memref<1x256xf32, #tpu.memory_space<vmem>>, vector<1x256xf32>
    %10 = vector.broadcast %9 : vector<1x256xf32> to vector<16x256xf32>
    %11 = arith.addf %8, %10 : vector<16x256xf32>
    %cst_10 = arith.constant 0.000000e+00 : f32
    %12 = vector.broadcast %cst_10 : f32 to vector<16x256xf32>
    %13 = arith.maximumf %11, %12 : vector<16x256xf32>
    %14 = arith.truncf %13 : vector<16x256xf32> to vector<16x256xbf16>
    %c0_11 = arith.constant 0 : index
    %c0_12 = arith.constant 0 : index
    %15 = vector.load %arg6[%c0_11, %c0_12] : memref<256x256xbf16, #tpu.memory_space<vmem>>, vector<256x256xbf16>
    %cst_13 = arith.constant dense<0.000000e+00> : vector<16x256xf32>
    %16 = tpu.matmul %14, %15, %cst_13 {dimension_numbers = #tpu.dot_dimension_numbers<[1], [0], [0], [1], [0, 0, 1, 1], [], []>} : vector<16x256xbf16>, vector<256x256xbf16>, vector<16x256xf32> -> vector<16x256xf32>
    %c0_14 = arith.constant 0 : index
    %c0_15 = arith.constant 0 : index
    %17 = vector.load %arg7[%c0_14, %c0_15] : memref<1x256xf32, #tpu.memory_space<vmem>>, vector<1x256xf32>
    %18 = vector.broadcast %17 : vector<1x256xf32> to vector<16x256xf32>
    %19 = arith.addf %16, %18 : vector<16x256xf32>
    %cst_16 = arith.constant 0.000000e+00 : f32
    %20 = vector.broadcast %cst_16 : f32 to vector<16x256xf32>
    %21 = arith.maximumf %19, %20 : vector<16x256xf32>
    %22 = arith.truncf %21 : vector<16x256xf32> to vector<16x256xbf16>
    %c0_17 = arith.constant 0 : index
    %c0_18 = arith.constant 0 : index
    %23 = vector.load %arg8[%c0_17, %c0_18] : memref<256x256xbf16, #tpu.memory_space<vmem>>, vector<256x256xbf16>
    %cst_19 = arith.constant dense<0.000000e+00> : vector<16x256xf32>
    %24 = tpu.matmul %22, %23, %cst_19 {dimension_numbers = #tpu.dot_dimension_numbers<[1], [0], [0], [1], [0, 0, 1, 1], [], []>} : vector<16x256xbf16>, vector<256x256xbf16>, vector<16x256xf32> -> vector<16x256xf32>
    %c0_20 = arith.constant 0 : index
    %c0_21 = arith.constant 0 : index
    %25 = vector.load %arg9[%c0_20, %c0_21] : memref<1x256xf32, #tpu.memory_space<vmem>>, vector<1x256xf32>
    %26 = vector.broadcast %25 : vector<1x256xf32> to vector<16x256xf32>
    %27 = arith.addf %24, %26 : vector<16x256xf32>
    %28 = arith.truncf %27 : vector<16x256xf32> to vector<16x256xbf16>
    %c0_22 = arith.constant 0 : index
    %c0_23 = arith.constant 0 : index
    %29 = vector.load %arg10[%c0_22, %c0_23] : memref<16x256xbf16, #tpu.memory_space<vmem>>, vector<16x256xbf16>
    tpu.vector_store %arg10[%c0_22, %c0_23], %28 {strides = array<i32>} : memref<16x256xbf16, #tpu.memory_space<vmem>>, vector<16x256xbf16>,
    return
  }
  func.func @transform_0(%arg0: i32) -> (i32, i32) {
    %c0_i32 = arith.constant 0 : i32
    %c0_i32_0 = arith.constant 0 : i32
    return %arg0, %c0_i32 : i32, i32
  }
  func.func @transform_1(%arg0: i32) -> (i32, i32) {
    %c0_i32 = arith.constant 0 : i32
    %c0_i32_0 = arith.constant 0 : i32
    %c0_i32_1 = arith.constant 0 : i32
    return %c0_i32, %c0_i32_0 : i32, i32
  }
  func.func @transform_2(%arg0: i32) -> (i32, i32) {
    %c0_i32 = arith.constant 0 : i32
    %c0_i32_0 = arith.constant 0 : i32
    %c0_i32_1 = arith.constant 0 : i32
    return %c0_i32, %c0_i32_0 : i32, i32
  }
  func.func @transform_3(%arg0: i32) -> (i32, i32) {
    %c0_i32 = arith.constant 0 : i32
    %c0_i32_0 = arith.constant 0 : i32
    %c0_i32_1 = arith.constant 0 : i32
    return %c0_i32, %c0_i32_0 : i32, i32
  }
  func.func @transform_4(%arg0: i32) -> (i32, i32) {
    %c0_i32 = arith.constant 0 : i32
    %c0_i32_0 = arith.constant 0 : i32
    %c0_i32_1 = arith.constant 0 : i32
    return %c0_i32, %c0_i32_0 : i32, i32
  }
  func.func @transform_5(%arg0: i32) -> (i32, i32) {
    %c0_i32 = arith.constant 0 : i32
    %c0_i32_0 = arith.constant 0 : i32
    %c0_i32_1 = arith.constant 0 : i32
    return %c0_i32, %c0_i32_0 : i32, i32
  }
  func.func @transform_6(%arg0: i32) -> (i32, i32) {
    %c0_i32 = arith.constant 0 : i32
    %c0_i32_0 = arith.constant 0 : i32
    %c0_i32_1 = arith.constant 0 : i32
    return %c0_i32, %c0_i32_0 : i32, i32
  }
  func.func @transform_7(%arg0: i32) -> (i32, i32) {
    %c0_i32 = arith.constant 0 : i32
    %c0_i32_0 = arith.constant 0 : i32
    %c0_i32_1 = arith.constant 0 : i32
    return %c0_i32, %c0_i32_0 : i32, i32
  }
  func.func @transform_8(%arg0: i32) -> (i32, i32) {
    %c0_i32 = arith.constant 0 : i32
    %c0_i32_0 = arith.constant 0 : i32
    %c0_i32_1 = arith.constant 0 : i32
    return %c0_i32, %c0_i32_0 : i32, i32
  }
  func.func @transform_9(%arg0: i32) -> (i32, i32) {
    %c0_i32 = arith.constant 0 : i32
    %c0_i32_0 = arith.constant 0 : i32
    return %arg0, %c0_i32 : i32, i32
  }
}

</mosaic_0001>

<llo_original>
// kernel: tpu_custom_call.1
$region0: #{tpu_custom_call.1}
  #allocation0 [shape = 'u32[]', space=smem, size = 0x4, offset = 0x4, fixed_abs, tag = 'smem constant byte address 0x4 - core index']
  #allocation1 [shape = 'u32[72,128]{1,0:T(1,128)}', space=vmem, size = 0x9000, scoped, tag = 'internal scratch']
  %s0 = inlined_call_operand.hbm [shape: bf16[16,1024], index: 0, kind: input, shape index: {}]
  %s1 = inlined_call_operand.hbm [shape: bf16[1024,256], index: 1, kind: input, shape index: {}]
  %s2 = inlined_call_operand.hbm [shape: f32[1,256], index: 2, kind: input, shape index: {}]
  %s3 = inlined_call_operand.hbm [shape: bf16[256,256], index: 3, kind: input, shape index: {}]
  %s4 = inlined_call_operand.vmem [shape: f32[1,256], index: 4, kind: input, shape index: {}]
  %s5 = inlined_call_operand.hbm [shape: bf16[256,256], index: 5, kind: input, shape index: {}]
  %s6 = inlined_call_operand.vmem [shape: f32[1,256], index: 6, kind: input, shape index: {}]
  %s7 = inlined_call_operand.hbm [shape: bf16[256,256], index: 7, kind: input, shape index: {}]
  %s8 = inlined_call_operand.vmem [shape: f32[1,256], index: 8, kind: input, shape index: {}]
  %s9 = inlined_call_operand.hbm [shape: bf16[16,256], index: 9, kind: output, shape index: {}]
  %s10 = sld [smem:[#allocation0]]
  $region70: #{tpu_custom_call.1} parent=0
    _
  %s12 = ssub.s32 1, %s10
  %s13 = scalar_select 0, %s12, %s10
  $region1: #{tpu_custom_call.1} parent=0
    #allocation2 [shape = 'u8[32768]{0}', space=vmem, size = 0x8000, scoped, tag = 'input window, operand 0, single buffered']
    #allocation3 [shape = 's32[1]{0}', space=sflag, size = 0x4, scoped, tag = 'scoped memory for tpu_custom_call.1']
    #allocation4 [shape = 's32[1]{0}', space=sflag, size = 0x4, scoped, tag = 'scoped memory for tpu_custom_call.1']
    #allocation5 [shape = 'u8[524288]{0}', space=vmem, size = 0x80000, scoped, tag = 'input window, operand 1, single buffered']
    #allocation6 [shape = 's32[1]{0}', space=sflag, size = 0x4, scoped, tag = 'scoped memory for tpu_custom_call.1']
    #allocation7 [shape = 'u8[1024]{0}', space=vmem, size = 0x400, scoped, tag = 'input window, operand 2, single buffered']
    #allocation8 [shape = 'u8[131072]{0}', space=vmem, size = 0x20000, scoped, tag = 'input window, operand 3, single buffered']
    #allocation9 [shape = 's32[1]{0}', space=sflag, size = 0x4, scoped, tag = 'scoped memory for tpu_custom_call.1']
    #allocation10 [shape = 'u8[131072]{0}', space=vmem, size = 0x20000, scoped, tag = 'input window, operand 5, single buffered']
    #allocation11 [shape = 'u8[131072]{0}', space=vmem, size = 0x20000, scoped, tag = 'input window, operand 7, single buffered']
    #allocation12 [shape = 's32[1]{0}', space=sflag, size = 0x4, scoped, tag = 'scoped memory for tpu_custom_call.1']
    #allocation13 [shape = 'u8[8192]{0}', space=vmem, size = 0x2000, scoped, tag = 'output window, operand 0, single buffered']
    %14 = vsyncpa [#allocation3], 0
    %15 = vsyncpa [#allocation6], 0
    %16 = vsyncpa [#allocation9], 0
    %17 = vsyncpa [#allocation12], 0
    %18 = vsyncpa [#allocation4], 0
    // Predicated region
    $region2: #{tpu_custom_call.1} parent=1 // pred_check
      _
    $region3: #{tpu_custom_call.1} parent=1 // pred_check_branch
      %20 = sbr.rel (0) target = $region5
    $region4: #{tpu_custom_call.1} parent=1 // pred_region
      %22 = vsyncadd [#allocation3], 0
      %s23 = sshll.u32 %s0, 4
      %s24 = int_to_ptr.hbm [resolvable:$true] %s23
      %s25 = sshll.u32 [#allocation2], 4
      %s26 = int_to_ptr.vmem [resolvable:$true] %s25
      %31 = dma.hbm_to_vmem [thread:$0]  %s24, 1024, %s26, [#allocation3], 512, 512, 32
    $region5: #{tpu_custom_call.1} parent=1 // pred_fallthru
      _
    // Predicated region
    $region6: #{tpu_custom_call.1} parent=1 // pred_check
      _
    $region7: #{tpu_custom_call.1} parent=1 // pred_check_branch
      %33 = sbr.rel (0) target = $region9
    $region8: #{tpu_custom_call.1} parent=1 // pred_region
      %35 = vsyncadd [#allocation6], 0
      %s36 = sshll.u32 %s1, 4
      %s37 = int_to_ptr.hbm [resolvable:$true] %s36
      %s38 = sshll.u32 [#allocation5], 4
      %s39 = int_to_ptr.vmem [resolvable:$true] %s38
      %44 = dma.hbm_to_vmem [thread:$0]  %s37, 16384, %s39, [#allocation6], 128, 128, 8
    $region9: #{tpu_custom_call.1} parent=1 // pred_fallthru
      _
    // Predicated region
    $region10: #{tpu_custom_call.1} parent=1 // pred_check
      _
    $region11: #{tpu_custom_call.1} parent=1 // pred_check_branch
      %46 = sbr.rel (0) target = $region13
    $region12: #{tpu_custom_call.1} parent=1 // pred_region
      %48 = vsyncadd [#allocation6], 0
      %s50 = sshll.u32 %s2, 4
      %s51 = int_to_ptr.hbm [resolvable:$true] %s50
      %s52 = sshll.u32 [#allocation7], 4
      %s53 = int_to_ptr.vmem [resolvable:$true] %s52
      %55 = dma.hbm_to_vmem [thread:$0]  %s51, 32, %s53, [#allocation6]
    $region13: #{tpu_custom_call.1} parent=1 // pred_fallthru
      _
    // Predicated region
    $region14: #{tpu_custom_call.1} parent=1 // pred_check
      _
    $region15: #{tpu_custom_call.1} parent=1 // pred_check_branch
      %57 = sbr.rel (0) target = $region17
    $region16: #{tpu_custom_call.1} parent=1 // pred_region
      %59 = vsyncadd [#allocation9], 0
      %s60 = sshll.u32 %s3, 4
      %s61 = int_to_ptr.hbm [resolvable:$true] %s60
      %s62 = sshll.u32 [#allocation8], 4
      %s63 = int_to_ptr.vmem [resolvable:$true] %s62
      %68 = dma.hbm_to_vmem [thread:$0]  %s61, 4096, %s63, [#allocation9], 128, 128, 8
    $region17: #{tpu_custom_call.1} parent=1 // pred_fallthru
      _
    // Predicated region
    $region18: #{tpu_custom_call.1} parent=1 // pred_check
      _
    $region19: #{tpu_custom_call.1} parent=1 // pred_check_branch
      %70 = sbr.rel (0) target = $region21
    $region20: #{tpu_custom_call.1} parent=1 // pred_region
      _
    $region21: #{tpu_custom_call.1} parent=1 // pred_fallthru
      _
    // Predicated region
    $region22: #{tpu_custom_call.1} parent=1 // pred_check
      _
    $region23: #{tpu_custom_call.1} parent=1 // pred_check_branch
      %72 = sbr.rel (0) target = $region25
    $region24: #{tpu_custom_call.1} parent=1 // pred_region
      %74 = vsyncadd [#allocation9], 0
      %s75 = sshll.u32 %s5, 4
      %s76 = int_to_ptr.hbm [resolvable:$true] %s75
      %s77 = sshll.u32 [#allocation10], 4
      %s78 = int_to_ptr.vmem [resolvable:$true] %s77
      %83 = dma.hbm_to_vmem [thread:$0]  %s76, 4096, %s78, [#allocation9], 128, 128, 8
    $region25: #{tpu_custom_call.1} parent=1 // pred_fallthru
      _
    // Predicated region
    $region26: #{tpu_custom_call.1} parent=1 // pred_check
      _
    $region27: #{tpu_custom_call.1} parent=1 // pred_check_branch
      %85 = sbr.rel (0) target = $region29
    $region28: #{tpu_custom_call.1} parent=1 // pred_region
      _
    $region29: #{tpu_custom_call.1} parent=1 // pred_fallthru
      _
    // Predicated region
    $region30: #{tpu_custom_call.1} parent=1 // pred_check
      _
    $region31: #{tpu_custom_call.1} parent=1 // pred_check_branch
      %87 = sbr.rel (0) target = $region33
    $region32: #{tpu_custom_call.1} parent=1 // pred_region
      %89 = vsyncadd [#allocation12], 0
      %s90 = sshll.u32 %s7, 4
      %s91 = int_to_ptr.hbm [resolvable:$true] %s90
      %s92 = sshll.u32 [#allocation11], 4
      %s93 = int_to_ptr.vmem [resolvable:$true] %s92
      %98 = dma.hbm_to_vmem [thread:$0]  %s91, 4096, %s93, [#allocation12], 128, 128, 8
    $region33: #{tpu_custom_call.1} parent=1 // pred_fallthru
      _
    // Predicated region
    $region34: #{tpu_custom_call.1} parent=1 // pred_check
      _
    $region35: #{tpu_custom_call.1} parent=1 // pred_check_branch
      %100 = sbr.rel (0) target = $region37
    $region36: #{tpu_custom_call.1} parent=1 // pred_region
      _
    $region37: #{tpu_custom_call.1} parent=1 // pred_fallthru
      _
    // Predicated region
    $region38: #{tpu_custom_call.1} parent=1 // pred_check
      _
    $region39: #{tpu_custom_call.1} parent=1 // pred_check_branch
      %102 = sbr.rel (0) target = $region41
    $region40: #{tpu_custom_call.1} parent=1 // pred_region
      %104 = dma.done [#allocation3], 1024
    $region41: #{tpu_custom_call.1} parent=1 // pred_fallthru
      _
    // Predicated region
    $region42: #{tpu_custom_call.1} parent=1 // pred_check
      _
    $region43: #{tpu_custom_call.1} parent=1 // pred_check_branch
      %106 = sbr.rel (0) target = $region45
    $region44: #{tpu_custom_call.1} parent=1 // pred_region
      %108 = dma.done [#allocation6], 16384
    $region45: #{tpu_custom_call.1} parent=1 // pred_fallthru
      _
    // Predicated region
    $region46: #{tpu_custom_call.1} parent=1 // pred_check
      _
    $region47: #{tpu_custom_call.1} parent=1 // pred_check_branch
      %110 = sbr.rel (0) target = $region49
    $region48: #{tpu_custom_call.1} parent=1 // pred_region
      %112 = dma.done [#allocation6], 32
    $region49: #{tpu_custom_call.1} parent=1 // pred_fallthru
      _
    // Predicated region
    $region50: #{tpu_custom_call.1} parent=1 // pred_check
      _
    $region51: #{tpu_custom_call.1} parent=1 // pred_check_branch
      %114 = sbr.rel (0) target = $region53
    $region52: #{tpu_custom_call.1} parent=1 // pred_region
      %116 = dma.done [#allocation9], 4096
    $region53: #{tpu_custom_call.1} parent=1 // pred_fallthru
      _
    // Predicated region
    $region54: #{tpu_custom_call.1} parent=1 // pred_check
      _
    $region55: #{tpu_custom_call.1} parent=1 // pred_check_branch
      %118 = sbr.rel (0) target = $region57
    $region56: #{tpu_custom_call.1} parent=1 // pred_region
      %120 = dma.done [#allocation9], 4096
    $region57: #{tpu_custom_call.1} parent=1 // pred_fallthru
      _
    // Predicated region
    $region58: #{tpu_custom_call.1} parent=1 // pred_check
      _
    $region59: #{tpu_custom_call.1} parent=1 // pred_check_branch
      %122 = sbr.rel (0) target = $region61
    $region60: #{tpu_custom_call.1} parent=1 // pred_region
      %124 = dma.done [#allocation12], 4096
    $region61: #{tpu_custom_call.1} parent=1 // pred_fallthru
      _
    %v125 = vld [vmem:[#allocation2] sm:$0xff]
    %v126 = vld [vmem:[#allocation2 + $0x8] sm:$0xff]
    %v127 = vld [vmem:[#allocation2 + $0x10] sm:$0xff]
    %v128 = vld [vmem:[#allocation2 + $0x18] sm:$0xff]
    %v129 = vld [vmem:[#allocation2 + $0x20] sm:$0xff]
    %v130 = vld [vmem:[#allocation2 + $0x28] sm:$0xff]
    %v131 = vld [vmem:[#allocation2 + $0x30] sm:$0xff]
    %v132 = vld [vmem:[#allocation2 + $0x38] sm:$0xff]
    %v133 = vld [vmem:[#allocation5] sm:$0xff]
    %v134 = vld [vmem:[#allocation5 + $0x8] sm:$0xff]
    %v135 = vld [vmem:[#allocation5 + $0x10] sm:$0xff]
    %v136 = vld [vmem:[#allocation5 + $0x18] sm:$0xff]
    %v137 = vld [vmem:[#allocation5 + $0x20] sm:$0xff]
    %v138 = vld [vmem:[#allocation5 + $0x28] sm:$0xff]
    %v139 = vld [vmem:[#allocation5 + $0x30] sm:$0xff]
    %v140 = vld [vmem:[#allocation5 + $0x38] sm:$0xff]
    %v141 = vld [vmem:[#allocation5 + $0x40] sm:$0xff]
    %v142 = vld [vmem:[#allocation5 + $0x48] sm:$0xff]
    %v143 = vld [vmem:[#allocation5 + $0x50] sm:$0xff]
    %v144 = vld [vmem:[#allocation5 + $0x58] sm:$0xff]
    %v145 = vld [vmem:[#allocation5 + $0x60] sm:$0xff]
    %v146 = vld [vmem:[#allocation5 + $0x68] sm:$0xff]
    %v147 = vld [vmem:[#allocation5 + $0x70] sm:$0xff]
    %v148 = vld [vmem:[#allocation5 + $0x78] sm:$0xff]
    %v149 = vld [vmem:[#allocation5 + $0x80] sm:$0xff]
    %v150 = vld [vmem:[#allocation5 + $0x88] sm:$0xff]
    %v151 = vld [vmem:[#allocation5 + $0x90] sm:$0xff]
    %v152 = vld [vmem:[#allocation5 + $0x98] sm:$0xff]
    %v153 = vld [vmem:[#allocation5 + $0xa0] sm:$0xff]
    %v154 = vld [vmem:[#allocation5 + $0xa8] sm:$0xff]
    %v155 = vld [vmem:[#allocation5 + $0xb0] sm:$0xff]
    %v156 = vld [vmem:[#allocation5 + $0xb8] sm:$0xff]
    %v157 = vld [vmem:[#allocation5 + $0xc0] sm:$0xff]
    %v158 = vld [vmem:[#allocation5 + $0xc8] sm:$0xff]
    %v159 = vld [vmem:[#allocation5 + $0xd0] sm:$0xff]
    %v160 = vld [vmem:[#allocation5 + $0xd8] sm:$0xff]
    %v161 = vld [vmem:[#allocation5 + $0xe0] sm:$0xff]
    %v162 = vld [vmem:[#allocation5 + $0xe8] sm:$0xff]
    %v163 = vld [vmem:[#allocation5 + $0xf0] sm:$0xff]
    %v164 = vld [vmem:[#allocation5 + $0xf8] sm:$0xff]
    %v165 = vld [vmem:[#allocation5 + $0x100] sm:$0xff]
    %v166 = vld [vmem:[#allocation5 + $0x108] sm:$0xff]
    %v167 = vld [vmem:[#allocation5 + $0x110] sm:$0xff]
    %v168 = vld [vmem:[#allocation5 + $0x118] sm:$0xff]
    %v169 = vld [vmem:[#allocation5 + $0x120] sm:$0xff]
    %v170 = vld [vmem:[#allocation5 + $0x128] sm:$0xff]
    %v171 = vld [vmem:[#allocation5 + $0x130] sm:$0xff]
    %v172 = vld [vmem:[#allocation5 + $0x138] sm:$0xff]
    %v173 = vld [vmem:[#allocation5 + $0x140] sm:$0xff]
    %v174 = vld [vmem:[#allocation5 + $0x148] sm:$0xff]
    %v175 = vld [vmem:[#allocation5 + $0x150] sm:$0xff]
    %v176 = vld [vmem:[#allocation5 + $0x158] sm:$0xff]
    %v177 = vld [vmem:[#allocation5 + $0x160] sm:$0xff]
    %v178 = vld [vmem:[#allocation5 + $0x168] sm:$0xff]
    %v179 = vld [vmem:[#allocation5 + $0x170] sm:$0xff]
    %v180 = vld [vmem:[#allocation5 + $0x178] sm:$0xff]
    %v181 = vld [vmem:[#allocation5 + $0x180] sm:$0xff]
    %v182 = vld [vmem:[#allocation5 + $0x188] sm:$0xff]
    %v183 = vld [vmem:[#allocation5 + $0x190] sm:$0xff]
    %v184 = vld [vmem:[#allocation5 + $0x198] sm:$0xff]
    %v185 = vld [vmem:[#allocation5 + $0x1a0] sm:$0xff]
    %v186 = vld [vmem:[#allocation5 + $0x1a8] sm:$0xff]
    %v187 = vld [vmem:[#allocation5 + $0x1b0] sm:$0xff]
    %v188 = vld [vmem:[#allocation5 + $0x1b8] sm:$0xff]
    %v189 = vld [vmem:[#allocation5 + $0x1c0] sm:$0xff]
    %v190 = vld [vmem:[#allocation5 + $0x1c8] sm:$0xff]
    %v191 = vld [vmem:[#allocation5 + $0x1d0] sm:$0xff]
    %v192 = vld [vmem:[#allocation5 + $0x1d8] sm:$0xff]
    %v193 = vld [vmem:[#allocation5 + $0x1e0] sm:$0xff]
    %v194 = vld [vmem:[#allocation5 + $0x1e8] sm:$0xff]
    %v195 = vld [vmem:[#allocation5 + $0x1f0] sm:$0xff]
    %v196 = vld [vmem:[#allocation5 + $0x1f8] sm:$0xff]
    %v197 = vld [vmem:[#allocation5 + $0x200] sm:$0xff]
    %v198 = vld [vmem:[#allocation5 + $0x208] sm:$0xff]
    %v199 = vld [vmem:[#allocation5 + $0x210] sm:$0xff]
    %v200 = vld [vmem:[#allocation5 + $0x218] sm:$0xff]
    %v201 = vld [vmem:[#allocation5 + $0x220] sm:$0xff]
    %v202 = vld [vmem:[#allocation5 + $0x228] sm:$0xff]
    %v203 = vld [vmem:[#allocation5 + $0x230] sm:$0xff]
    %v204 = vld [vmem:[#allocation5 + $0x238] sm:$0xff]
    %v205 = vld [vmem:[#allocation5 + $0x240] sm:$0xff]
    %v206 = vld [vmem:[#allocation5 + $0x248] sm:$0xff]
    %v207 = vld [vmem:[#allocation5 + $0x250] sm:$0xff]
    %v208 = vld [vmem:[#allocation5 + $0x258] sm:$0xff]
    %v209 = vld [vmem:[#allocation5 + $0x260] sm:$0xff]
    %v210 = vld [vmem:[#allocation5 + $0x268] sm:$0xff]
    %v211 = vld [vmem:[#allocation5 + $0x270] sm:$0xff]
    %v212 = vld [vmem:[#allocation5 + $0x278] sm:$0xff]
    %v213 = vld [vmem:[#allocation5 + $0x280] sm:$0xff]
    %v214 = vld [vmem:[#allocation5 + $0x288] sm:$0xff]
    %v215 = vld [vmem:[#allocation5 + $0x290] sm:$0xff]
    %v216 = vld [vmem:[#allocation5 + $0x298] sm:$0xff]
    %v217 = vld [vmem:[#allocation5 + $0x2a0] sm:$0xff]
    %v218 = vld [vmem:[#allocation5 + $0x2a8] sm:$0xff]
    %v219 = vld [vmem:[#allocation5 + $0x2b0] sm:$0xff]
    %v220 = vld [vmem:[#allocation5 + $0x2b8] sm:$0xff]
    %v221 = vld [vmem:[#allocation5 + $0x2c0] sm:$0xff]
    %v222 = vld [vmem:[#allocation5 + $0x2c8] sm:$0xff]
    %v223 = vld [vmem:[#allocation5 + $0x2d0] sm:$0xff]
    %v224 = vld [vmem:[#allocation5 + $0x2d8] sm:$0xff]
    %v225 = vld [vmem:[#allocation5 + $0x2e0] sm:$0xff]
    %v226 = vld [vmem:[#allocation5 + $0x2e8] sm:$0xff]
    %v227 = vld [vmem:[#allocation5 + $0x2f0] sm:$0xff]
    %v228 = vld [vmem:[#allocation5 + $0x2f8] sm:$0xff]
    %v229 = vld [vmem:[#allocation5 + $0x300] sm:$0xff]
    %v230 = vld [vmem:[#allocation5 + $0x308] sm:$0xff]
    %v231 = vld [vmem:[#allocation5 + $0x310] sm:$0xff]
    %v232 = vld [vmem:[#allocation5 + $0x318] sm:$0xff]
    %v233 = vld [vmem:[#allocation5 + $0x320] sm:$0xff]
    %v234 = vld [vmem:[#allocation5 + $0x328] sm:$0xff]
    %v235 = vld [vmem:[#allocation5 + $0x330] sm:$0xff]
    %v236 = vld [vmem:[#allocation5 + $0x338] sm:$0xff]
    %v237 = vld [vmem:[#allocation5 + $0x340] sm:$0xff]
    %v238 = vld [vmem:[#allocation5 + $0x348] sm:$0xff]
    %v239 = vld [vmem:[#allocation5 + $0x350] sm:$0xff]
    %v240 = vld [vmem:[#allocation5 + $0x358] sm:$0xff]
    %v241 = vld [vmem:[#allocation5 + $0x360] sm:$0xff]
    %v242 = vld [vmem:[#allocation5 + $0x368] sm:$0xff]
    %v243 = vld [vmem:[#allocation5 + $0x370] sm:$0xff]
    %v244 = vld [vmem:[#allocation5 + $0x378] sm:$0xff]
    %v245 = vld [vmem:[#allocation5 + $0x380] sm:$0xff]
    %v246 = vld [vmem:[#allocation5 + $0x388] sm:$0xff]
    %v247 = vld [vmem:[#allocation5 + $0x390] sm:$0xff]
    %v248 = vld [vmem:[#allocation5 + $0x398] sm:$0xff]
    %v249 = vld [vmem:[#allocation5 + $0x3a0] sm:$0xff]
    %v250 = vld [vmem:[#allocation5 + $0x3a8] sm:$0xff]
    %v251 = vld [vmem:[#allocation5 + $0x3b0] sm:$0xff]
    %v252 = vld [vmem:[#allocation5 + $0x3b8] sm:$0xff]
    %v253 = vld [vmem:[#allocation5 + $0x3c0] sm:$0xff]
    %v254 = vld [vmem:[#allocation5 + $0x3c8] sm:$0xff]
    %v255 = vld [vmem:[#allocation5 + $0x3d0] sm:$0xff]
    %v256 = vld [vmem:[#allocation5 + $0x3d8] sm:$0xff]
    %v257 = vld [vmem:[#allocation5 + $0x3e0] sm:$0xff]
    %v258 = vld [vmem:[#allocation5 + $0x3e8] sm:$0xff]
    %v259 = vld [vmem:[#allocation5 + $0x3f0] sm:$0xff]
    %v260 = vld [vmem:[#allocation5 + $0x3f8] sm:$0xff]
    %v261 = vld [vmem:[#allocation7] sm:$0x3]
    %v263 = vperm.slane %v261, 0
    %v264 = vperm.slane %v261, 1
    %v275 = vunpack.c.l.b16 %v125
    %v276 = vunpack.c.h.b16 %v125
    %v277 = vunpack.c.l.b16 %v126
    %v278 = vunpack.c.h.b16 %v126
    %v279 = vunpack.c.l.b16 %v127
    %v280 = vunpack.c.h.b16 %v127
    %v281 = vunpack.c.l.b16 %v128
    %v282 = vunpack.c.h.b16 %v128
    %v283 = vunpack.c.l.b16 %v129
    %v284 = vunpack.c.h.b16 %v129
    %v285 = vunpack.c.l.b16 %v130
    %v286 = vunpack.c.h.b16 %v130
    %v287 = vunpack.c.l.b16 %v131
    %v288 = vunpack.c.h.b16 %v131
    %v289 = vunpack.c.l.b16 %v132
    %v290 = vunpack.c.h.b16 %v132
    %v291 = vpack.c.b16 %v283, %v275
    %v292 = vpack.c.b16 %v284, %v276
    %v293 = vpack.c.b16 %v285, %v277
    %v294 = vpack.c.b16 %v286, %v278
    %v295 = vpack.c.b16 %v287, %v279
    %v296 = vpack.c.b16 %v288, %v280
    %v297 = vpack.c.b16 %v289, %v281
    %v298 = vpack.c.b16 %v290, %v282
    %v435 = vunpack.c.l.b16 %v133
    %v436 = vunpack.c.h.b16 %v133
    %v437 = vunpack.c.l.b16 %v134
    %v438 = vunpack.c.h.b16 %v134
    %v439 = vunpack.c.l.b16 %v135
    %v440 = vunpack.c.h.b16 %v135
    %v441 = vunpack.c.l.b16 %v136
    %v442 = vunpack.c.h.b16 %v136
    %v443 = vunpack.c.l.b16 %v137
    %v444 = vunpack.c.h.b16 %v137
    %v445 = vunpack.c.l.b16 %v138
    %v446 = vunpack.c.h.b16 %v138
    %v447 = vunpack.c.l.b16 %v139
    %v448 = vunpack.c.h.b16 %v139
    %v449 = vunpack.c.l.b16 %v140
    %v450 = vunpack.c.h.b16 %v140
    %v451 = vunpack.c.l.b16 %v141
    %v452 = vunpack.c.h.b16 %v141
    %v453 = vunpack.c.l.b16 %v142
    %v454 = vunpack.c.h.b16 %v142
    %v455 = vunpack.c.l.b16 %v143
    %v456 = vunpack.c.h.b16 %v143
    %v457 = vunpack.c.l.b16 %v144
    %v458 = vunpack.c.h.b16 %v144
    %v459 = vunpack.c.l.b16 %v145
    %v460 = vunpack.c.h.b16 %v145
    %v461 = vunpack.c.l.b16 %v146
    %v462 = vunpack.c.h.b16 %v146
    %v463 = vunpack.c.l.b16 %v147
    %v464 = vunpack.c.h.b16 %v147
    %v465 = vunpack.c.l.b16 %v148
    %v466 = vunpack.c.h.b16 %v148
    %v467 = vunpack.c.l.b16 %v149
    %v468 = vunpack.c.h.b16 %v149
    %v469 = vunpack.c.l.b16 %v150
    %v470 = vunpack.c.h.b16 %v150
    %v471 = vunpack.c.l.b16 %v151
    %v472 = vunpack.c.h.b16 %v151
    %v473 = vunpack.c.l.b16 %v152
    %v474 = vunpack.c.h.b16 %v152
    %v475 = vunpack.c.l.b16 %v153
    %v476 = vunpack.c.h.b16 %v153
    %v477 = vunpack.c.l.b16 %v154
    %v478 = vunpack.c.h.b16 %v154
    %v479 = vunpack.c.l.b16 %v155
    %v480 = vunpack.c.h.b16 %v155
    %v481 = vunpack.c.l.b16 %v156
    %v482 = vunpack.c.h.b16 %v156
    %v483 = vunpack.c.l.b16 %v157
    %v484 = vunpack.c.h.b16 %v157
    %v485 = vunpack.c.l.b16 %v158
    %v486 = vunpack.c.h.b16 %v158
    %v487 = vunpack.c.l.b16 %v159
    %v488 = vunpack.c.h.b16 %v159
    %v489 = vunpack.c.l.b16 %v160
    %v490 = vunpack.c.h.b16 %v160
    %v491 = vunpack.c.l.b16 %v161
    %v492 = vunpack.c.h.b16 %v161
    %v493 = vunpack.c.l.b16 %v162
    %v494 = vunpack.c.h.b16 %v162
    %v495 = vunpack.c.l.b16 %v163
    %v496 = vunpack.c.h.b16 %v163
    %v497 = vunpack.c.l.b16 %v164
    %v498 = vunpack.c.h.b16 %v164
    %v499 = vunpack.c.l.b16 %v165
    %v500 = vunpack.c.h.b16 %v165
    %v501 = vunpack.c.l.b16 %v166
    %v502 = vunpack.c.h.b16 %v166
    %v503 = vunpack.c.l.b16 %v167
    %v504 = vunpack.c.h.b16 %v167
    %v505 = vunpack.c.l.b16 %v168
    %v506 = vunpack.c.h.b16 %v168
    %v507 = vunpack.c.l.b16 %v169
    %v508 = vunpack.c.h.b16 %v169
    %v509 = vunpack.c.l.b16 %v170
    %v510 = vunpack.c.h.b16 %v170
    %v511 = vunpack.c.l.b16 %v171
    %v512 = vunpack.c.h.b16 %v171
    %v513 = vunpack.c.l.b16 %v172
    %v514 = vunpack.c.h.b16 %v172
    %v515 = vunpack.c.l.b16 %v173
    %v516 = vunpack.c.h.b16 %v173
    %v517 = vunpack.c.l.b16 %v174
    %v518 = vunpack.c.h.b16 %v174
    %v519 = vunpack.c.l.b16 %v175
    %v520 = vunpack.c.h.b16 %v175
    %v521 = vunpack.c.l.b16 %v176
    %v522 = vunpack.c.h.b16 %v176
    %v523 = vunpack.c.l.b16 %v177
    %v524 = vunpack.c.h.b16 %v177
    %v525 = vunpack.c.l.b16 %v178
    %v526 = vunpack.c.h.b16 %v178
    %v527 = vunpack.c.l.b16 %v179
    %v528 = vunpack.c.h.b16 %v179
    %v529 = vunpack.c.l.b16 %v180
    %v530 = vunpack.c.h.b16 %v180
    %v531 = vunpack.c.l.b16 %v181
    %v532 = vunpack.c.h.b16 %v181
    %v533 = vunpack.c.l.b16 %v182
    %v534 = vunpack.c.h.b16 %v182
    %v535 = vunpack.c.l.b16 %v183
    %v536 = vunpack.c.h.b16 %v183
    %v537 = vunpack.c.l.b16 %v184
    %v538 = vunpack.c.h.b16 %v184
    %v539 = vunpack.c.l.b16 %v185
    %v540 = vunpack.c.h.b16 %v185
    %v541 = vunpack.c.l.b16 %v186
    %v542 = vunpack.c.h.b16 %v186
    %v543 = vunpack.c.l.b16 %v187
    %v544 = vunpack.c.h.b16 %v187
    %v545 = vunpack.c.l.b16 %v188
    %v546 = vunpack.c.h.b16 %v188
    %v547 = vunpack.c.l.b16 %v189
    %v548 = vunpack.c.h.b16 %v189
    %v549 = vunpack.c.l.b16 %v190
    %v550 = vunpack.c.h.b16 %v190
    %v551 = vunpack.c.l.b16 %v191
    %v552 = vunpack.c.h.b16 %v191
    %v553 = vunpack.c.l.b16 %v192
    %v554 = vunpack.c.h.b16 %v192
    %v555 = vunpack.c.l.b16 %v193
    %v556 = vunpack.c.h.b16 %v193
    %v557 = vunpack.c.l.b16 %v194
    %v558 = vunpack.c.h.b16 %v194
    %v559 = vunpack.c.l.b16 %v195
    %v560 = vunpack.c.h.b16 %v195
    %v561 = vunpack.c.l.b16 %v196
    %v562 = vunpack.c.h.b16 %v196
    %v563 = vunpack.c.l.b16 %v197
    %v564 = vunpack.c.h.b16 %v197
    %v565 = vunpack.c.l.b16 %v198
    %v566 = vunpack.c.h.b16 %v198
    %v567 = vunpack.c.l.b16 %v199
    %v568 = vunpack.c.h.b16 %v199
    %v569 = vunpack.c.l.b16 %v200
    %v570 = vunpack.c.h.b16 %v200
    %v571 = vunpack.c.l.b16 %v201
    %v572 = vunpack.c.h.b16 %v201
    %v573 = vunpack.c.l.b16 %v202
    %v574 = vunpack.c.h.b16 %v202
    %v575 = vunpack.c.l.b16 %v203
    %v576 = vunpack.c.h.b16 %v203
    %v577 = vunpack.c.l.b16 %v204
    %v578 = vunpack.c.h.b16 %v204
    %v579 = vunpack.c.l.b16 %v205
    %v580 = vunpack.c.h.b16 %v205
    %v581 = vunpack.c.l.b16 %v206
    %v582 = vunpack.c.h.b16 %v206
    %v583 = vunpack.c.l.b16 %v207
    %v584 = vunpack.c.h.b16 %v207
    %v585 = vunpack.c.l.b16 %v208
    %v586 = vunpack.c.h.b16 %v208
    %v587 = vunpack.c.l.b16 %v209
    %v588 = vunpack.c.h.b16 %v209
    %v589 = vunpack.c.l.b16 %v210
    %v590 = vunpack.c.h.b16 %v210
    %v591 = vunpack.c.l.b16 %v211
    %v592 = vunpack.c.h.b16 %v211
    %v593 = vunpack.c.l.b16 %v212
    %v594 = vunpack.c.h.b16 %v212
    %v595 = vunpack.c.l.b16 %v213
    %v596 = vunpack.c.h.b16 %v213
    %v597 = vunpack.c.l.b16 %v214
    %v598 = vunpack.c.h.b16 %v214
    %v599 = vunpack.c.l.b16 %v215
    %v600 = vunpack.c.h.b16 %v215
    %v601 = vunpack.c.l.b16 %v216
    %v602 = vunpack.c.h.b16 %v216
    %v603 = vunpack.c.l.b16 %v217
    %v604 = vunpack.c.h.b16 %v217
    %v605 = vunpack.c.l.b16 %v218
    %v606 = vunpack.c.h.b16 %v218
    %v607 = vunpack.c.l.b16 %v219
    %v608 = vunpack.c.h.b16 %v219
    %v609 = vunpack.c.l.b16 %v220
    %v610 = vunpack.c.h.b16 %v220
    %v611 = vunpack.c.l.b16 %v221
    %v612 = vunpack.c.h.b16 %v221
    %v613 = vunpack.c.l.b16 %v222
    %v614 = vunpack.c.h.b16 %v222
    %v615 = vunpack.c.l.b16 %v223
    %v616 = vunpack.c.h.b16 %v223
    %v617 = vunpack.c.l.b16 %v224
    %v618 = vunpack.c.h.b16 %v224
    %v619 = vunpack.c.l.b16 %v225
    %v620 = vunpack.c.h.b16 %v225
    %v621 = vunpack.c.l.b16 %v226
    %v622 = vunpack.c.h.b16 %v226
    %v623 = vunpack.c.l.b16 %v227
    %v624 = vunpack.c.h.b16 %v227
    %v625 = vunpack.c.l.b16 %v228
    %v626 = vunpack.c.h.b16 %v228
    %v627 = vunpack.c.l.b16 %v229
    %v628 = vunpack.c.h.b16 %v229
    %v629 = vunpack.c.l.b16 %v230
    %v630 = vunpack.c.h.b16 %v230
    %v631 = vunpack.c.l.b16 %v231
    %v632 = vunpack.c.h.b16 %v231
    %v633 = vunpack.c.l.b16 %v232
    %v634 = vunpack.c.h.b16 %v232
    %v635 = vunpack.c.l.b16 %v233
    %v636 = vunpack.c.h.b16 %v233
    %v637 = vunpack.c.l.b16 %v234
    %v638 = vunpack.c.h.b16 %v234
    %v639 = vunpack.c.l.b16 %v235
    %v640 = vunpack.c.h.b16 %v235
    %v641 = vunpack.c.l.b16 %v236
    %v642 = vunpack.c.h.b16 %v236
    %v643 = vunpack.c.l.b16 %v237
    %v644 = vunpack.c.h.b16 %v237
    %v645 = vunpack.c.l.b16 %v238
    %v646 = vunpack.c.h.b16 %v238
    %v647 = vunpack.c.l.b16 %v239
    %v648 = vunpack.c.h.b16 %v239
    %v649 = vunpack.c.l.b16 %v240
    %v650 = vunpack.c.h.b16 %v240
    %v651 = vunpack.c.l.b16 %v241
    %v652 = vunpack.c.h.b16 %v241
    %v653 = vunpack.c.l.b16 %v242
    %v654 = vunpack.c.h.b16 %v242
    %v655 = vunpack.c.l.b16 %v243
    %v656 = vunpack.c.h.b16 %v243
    %v657 = vunpack.c.l.b16 %v244
    %v658 = vunpack.c.h.b16 %v244
    %v659 = vunpack.c.l.b16 %v245
    %v660 = vunpack.c.h.b16 %v245
    %v661 = vunpack.c.l.b16 %v246
    %v662 = vunpack.c.h.b16 %v246
    %v663 = vunpack.c.l.b16 %v247
    %v664 = vunpack.c.h.b16 %v247
    %v665 = vunpack.c.l.b16 %v248
    %v666 = vunpack.c.h.b16 %v248
    %v667 = vunpack.c.l.b16 %v249
    %v668 = vunpack.c.h.b16 %v249
    %v669 = vunpack.c.l.b16 %v250
    %v670 = vunpack.c.h.b16 %v250
    %v671 = vunpack.c.l.b16 %v251
    %v672 = vunpack.c.h.b16 %v251
    %v673 = vunpack.c.l.b16 %v252
    %v674 = vunpack.c.h.b16 %v252
    %v675 = vunpack.c.l.b16 %v253
    %v676 = vunpack.c.h.b16 %v253
    %v677 = vunpack.c.l.b16 %v254
    %v678 = vunpack.c.h.b16 %v254
    %v679 = vunpack.c.l.b16 %v255
    %v680 = vunpack.c.h.b16 %v255
    %v681 = vunpack.c.l.b16 %v256
    %v682 = vunpack.c.h.b16 %v256
    %v683 = vunpack.c.l.b16 %v257
    %v684 = vunpack.c.h.b16 %v257
    %v685 = vunpack.c.l.b16 %v258
    %v686 = vunpack.c.h.b16 %v258
    %v687 = vunpack.c.l.b16 %v259
    %v688 = vunpack.c.h.b16 %v259
    %v689 = vunpack.c.l.b16 %v260
    %v690 = vunpack.c.h.b16 %v260
    %v691 = vpack.c.b16 %v437, %v435
    %v692 = vpack.c.b16 %v438, %v436
    %v693 = vpack.c.b16 %v441, %v439
    %v694 = vpack.c.b16 %v442, %v440
    %v695 = vpack.c.b16 %v445, %v443
    %v696 = vpack.c.b16 %v446, %v444
    %v697 = vpack.c.b16 %v449, %v447
    %v698 = vpack.c.b16 %v450, %v448
    %v699 = vpack.c.b16 %v453, %v451
    %v700 = vpack.c.b16 %v454, %v452
    %v701 = vpack.c.b16 %v457, %v455
    %v702 = vpack.c.b16 %v458, %v456
    %v703 = vpack.c.b16 %v461, %v459
    %v704 = vpack.c.b16 %v462, %v460
    %v705 = vpack.c.b16 %v465, %v463
    %v706 = vpack.c.b16 %v466, %v464
    %v707 = vpack.c.b16 %v469, %v467
    %v708 = vpack.c.b16 %v470, %v468
    %v709 = vpack.c.b16 %v473, %v471
    %v710 = vpack.c.b16 %v474, %v472
    %v711 = vpack.c.b16 %v477, %v475
    %v712 = vpack.c.b16 %v478, %v476
    %v713 = vpack.c.b16 %v481, %v479
    %v714 = vpack.c.b16 %v482, %v480
    %v715 = vpack.c.b16 %v485, %v483
    %v716 = vpack.c.b16 %v486, %v484
    %v717 = vpack.c.b16 %v489, %v487
    %v718 = vpack.c.b16 %v490, %v488
    %v719 = vpack.c.b16 %v493, %v491
    %v720 = vpack.c.b16 %v494, %v492
    %v721 = vpack.c.b16 %v497, %v495
    %v722 = vpack.c.b16 %v498, %v496
    %v723 = vpack.c.b16 %v501, %v499
    %v724 = vpack.c.b16 %v502, %v500
    %v725 = vpack.c.b16 %v505, %v503
    %v726 = vpack.c.b16 %v506, %v504
    %v727 = vpack.c.b16 %v509, %v507
    %v728 = vpack.c.b16 %v510, %v508
    %v729 = vpack.c.b16 %v513, %v511
    %v730 = vpack.c.b16 %v514, %v512
    %v731 = vpack.c.b16 %v517, %v515
    %v732 = vpack.c.b16 %v518, %v516
    %v733 = vpack.c.b16 %v521, %v519
    %v734 = vpack.c.b16 %v522, %v520
    %v735 = vpack.c.b16 %v525, %v523
    %v736 = vpack.c.b16 %v526, %v524
    %v737 = vpack.c.b16 %v529, %v527
    %v738 = vpack.c.b16 %v530, %v528
    %v739 = vpack.c.b16 %v533, %v531
    %v740 = vpack.c.b16 %v534, %v532
    %v741 = vpack.c.b16 %v537, %v535
    %v742 = vpack.c.b16 %v538, %v536
    %v743 = vpack.c.b16 %v541, %v539
    %v744 = vpack.c.b16 %v542, %v540
    %v745 = vpack.c.b16 %v545, %v543
    %v746 = vpack.c.b16 %v546, %v544
    %v747 = vpack.c.b16 %v549, %v547
    %v748 = vpack.c.b16 %v550, %v548
    %v749 = vpack.c.b16 %v553, %v551
    %v750 = vpack.c.b16 %v554, %v552
    %v751 = vpack.c.b16 %v557, %v555
    %v752 = vpack.c.b16 %v558, %v556
    %v753 = vpack.c.b16 %v561, %v559
    %v754 = vpack.c.b16 %v562, %v560
    %v755 = vpack.c.b16 %v565, %v563
    %v756 = vpack.c.b16 %v566, %v564
    %v757 = vpack.c.b16 %v569, %v567
    %v758 = vpack.c.b16 %v570, %v568
    %v759 = vpack.c.b16 %v573, %v571
    %v760 = vpack.c.b16 %v574, %v572
    %v761 = vpack.c.b16 %v577, %v575
    %v762 = vpack.c.b16 %v578, %v576
    %v763 = vpack.c.b16 %v581, %v579
    %v764 = vpack.c.b16 %v582, %v580
    %v765 = vpack.c.b16 %v585, %v583
    %v766 = vpack.c.b16 %v586, %v584
    %v767 = vpack.c.b16 %v589, %v587
    %v768 = vpack.c.b16 %v590, %v588
    %v769 = vpack.c.b16 %v593, %v591
    %v770 = vpack.c.b16 %v594, %v592
    %v771 = vpack.c.b16 %v597, %v595
    %v772 = vpack.c.b16 %v598, %v596
    %v773 = vpack.c.b16 %v601, %v599
    %v774 = vpack.c.b16 %v602, %v600
    %v775 = vpack.c.b16 %v605, %v603
    %v776 = vpack.c.b16 %v606, %v604
    %v777 = vpack.c.b16 %v609, %v607
    %v778 = vpack.c.b16 %v610, %v608
    %v779 = vpack.c.b16 %v613, %v611
    %v780 = vpack.c.b16 %v614, %v612
    %v781 = vpack.c.b16 %v617, %v615
    %v782 = vpack.c.b16 %v618, %v616
    %v783 = vpack.c.b16 %v621, %v619
    %v784 = vpack.c.b16 %v622, %v620
    %v785 = vpack.c.b16 %v625, %v623
    %v786 = vpack.c.b16 %v626, %v624
    %v787 = vpack.c.b16 %v629, %v627
    %v788 = vpack.c.b16 %v630, %v628
    %v789 = vpack.c.b16 %v633, %v631
    %v790 = vpack.c.b16 %v634, %v632
    %v791 = vpack.c.b16 %v637, %v635
    %v792 = vpack.c.b16 %v638, %v636
    %v793 = vpack.c.b16 %v641, %v639
    %v794 = vpack.c.b16 %v642, %v640
    %v795 = vpack.c.b16 %v645, %v643
    %v796 = vpack.c.b16 %v646, %v644
    %v797 = vpack.c.b16 %v649, %v647
    %v798 = vpack.c.b16 %v650, %v648
    %v799 = vpack.c.b16 %v653, %v651
    %v800 = vpack.c.b16 %v654, %v652
    %v801 = vpack.c.b16 %v657, %v655
    %v802 = vpack.c.b16 %v658, %v656
    %v803 = vpack.c.b16 %v661, %v659
    %v804 = vpack.c.b16 %v662, %v660
    %v805 = vpack.c.b16 %v665, %v663
    %v806 = vpack.c.b16 %v666, %v664
    %v807 = vpack.c.b16 %v669, %v667
    %v808 = vpack.c.b16 %v670, %v668
    %v809 = vpack.c.b16 %v673, %v671
    %v810 = vpack.c.b16 %v674, %v672
    %v811 = vpack.c.b16 %v677, %v675
    %v812 = vpack.c.b16 %v678, %v676
    %v813 = vpack.c.b16 %v681, %v679
    %v814 = vpack.c.b16 %v682, %v680
    %v815 = vpack.c.b16 %v685, %v683
    %v816 = vpack.c.b16 %v686, %v684
    %v817 = vpack.c.b16 %v689, %v687
    %v818 = vpack.c.b16 %v690, %v688
    %947 = vmatpush.bf16.msra.mxu0 %v705
    %948 = vmatpush.bf16.msra.mxu0 %v703
    %949 = vmatpush.bf16.msra.mxu0 %v701
    %950 = vmatpush.bf16.msra.mxu0 %v699
    %951 = vmatpush.bf16.msra.mxu0 %v697
    %952 = vmatpush.bf16.msra.mxu0 %v695
    %953 = vmatpush.bf16.msra.mxu0 %v693
    %954 = vmatpush.bf16.msra.mxu0 %v691
    %955 = vmatmul.bf16.gmra.mxu0 %v291
    %v956 = vpop.f32.mrf.mxu0
    %v957 = vadd.f32 %v263, %v956
    %v958 = vpop.f32.mrf.mxu0
    %v959 = vadd.f32 %v263, %v958
    %960 = vdwg.mxu0
    %961 = vmatpush.bf16.msra.mxu0 %v721
    %962 = vmatpush.bf16.msra.mxu0 %v719
    %963 = vmatpush.bf16.msra.mxu0 %v717
    %964 = vmatpush.bf16.msra.mxu0 %v715
    %965 = vmatpush.bf16.msra.mxu0 %v713
    %966 = vmatpush.bf16.msra.mxu0 %v711
    %967 = vmatpush.bf16.msra.mxu0 %v709
    %968 = vmatpush.bf16.msra.mxu0 %v707
    %969 = vmatmul.bf16.gmra.mxu0 %v292
    %v970 = vpop.f32.mrf.mxu0
    %v971 = vadd.f32 %v957, %v970
    %v972 = vpop.f32.mrf.mxu0
    %v973 = vadd.f32 %v959, %v972
    %974 = vdwg.mxu0
    %975 = vmatpush.bf16.msra.mxu0 %v737
    %976 = vmatpush.bf16.msra.mxu0 %v735
    %977 = vmatpush.bf16.msra.mxu0 %v733
    %978 = vmatpush.bf16.msra.mxu0 %v731
    %979 = vmatpush.bf16.msra.mxu0 %v729
    %980 = vmatpush.bf16.msra.mxu0 %v727
    %981 = vmatpush.bf16.msra.mxu0 %v725
    %982 = vmatpush.bf16.msra.mxu0 %v723
    %983 = vmatmul.bf16.gmra.mxu0 %v293
    %v984 = vpop.f32.mrf.mxu0
    %v985 = vadd.f32 %v971, %v984
    %v986 = vpop.f32.mrf.mxu0
    %v987 = vadd.f32 %v973, %v986
    %988 = vdwg.mxu0
    %989 = vmatpush.bf16.msra.mxu0 %v753
    %990 = vmatpush.bf16.msra.mxu0 %v751
    %991 = vmatpush.bf16.msra.mxu0 %v749
    %992 = vmatpush.bf16.msra.mxu0 %v747
    %993 = vmatpush.bf16.msra.mxu0 %v745
    %994 = vmatpush.bf16.msra.mxu0 %v743
    %995 = vmatpush.bf16.msra.mxu0 %v741
    %996 = vmatpush.bf16.msra.mxu0 %v739
    %997 = vmatmul.bf16.gmra.mxu0 %v294
    %v998 = vpop.f32.mrf.mxu0
    %v999 = vadd.f32 %v985, %v998
    %v1000 = vpop.f32.mrf.mxu0
    %v1001 = vadd.f32 %v987, %v1000
    %1002 = vdwg.mxu0
    %1003 = vmatpush.bf16.msra.mxu0 %v769
    %1004 = vmatpush.bf16.msra.mxu0 %v767
    %1005 = vmatpush.bf16.msra.mxu0 %v765
    %1006 = vmatpush.bf16.msra.mxu0 %v763
    %1007 = vmatpush.bf16.msra.mxu0 %v761
    %1008 = vmatpush.bf16.msra.mxu0 %v759
    %1009 = vmatpush.bf16.msra.mxu0 %v757
    %1010 = vmatpush.bf16.msra.mxu0 %v755
    %1011 = vmatmul.bf16.gmra.mxu0 %v295
    %v1012 = vpop.f32.mrf.mxu0
    %v1013 = vadd.f32 %v999, %v1012
    %v1014 = vpop.f32.mrf.mxu0
    %v1015 = vadd.f32 %v1001, %v1014
    %1016 = vdwg.mxu0
    %1017 = vmatpush.bf16.msra.mxu0 %v785
    %1018 = vmatpush.bf16.msra.mxu0 %v783
    %1019 = vmatpush.bf16.msra.mxu0 %v781
    %1020 = vmatpush.bf16.msra.mxu0 %v779
    %1021 = vmatpush.bf16.msra.mxu0 %v777
    %1022 = vmatpush.bf16.msra.mxu0 %v775
    %1023 = vmatpush.bf16.msra.mxu0 %v773
    %1024 = vmatpush.bf16.msra.mxu0 %v771
    %1025 = vmatmul.bf16.gmra.mxu0 %v296
    %v1026 = vpop.f32.mrf.mxu0
    %v1027 = vadd.f32 %v1013, %v1026
    %v1028 = vpop.f32.mrf.mxu0
    %v1029 = vadd.f32 %v1015, %v1028
    %1030 = vdwg.mxu0
    %1031 = vmatpush.bf16.msra.mxu0 %v801
    %1032 = vmatpush.bf16.msra.mxu0 %v799
    %1033 = vmatpush.bf16.msra.mxu0 %v797
    %1034 = vmatpush.bf16.msra.mxu0 %v795
    %1035 = vmatpush.bf16.msra.mxu0 %v793
    %1036 = vmatpush.bf16.msra.mxu0 %v791
    %1037 = vmatpush.bf16.msra.mxu0 %v789
    %1038 = vmatpush.bf16.msra.mxu0 %v787
    %1039 = vmatmul.bf16.gmra.mxu0 %v297
    %v1040 = vpop.f32.mrf.mxu0
    %v1041 = vadd.f32 %v1027, %v1040
    %v1042 = vpop.f32.mrf.mxu0
    %v1043 = vadd.f32 %v1029, %v1042
    %1044 = vdwg.mxu0
    %1045 = vmatpush.bf16.msra.mxu0 %v817
    %1046 = vmatpush.bf16.msra.mxu0 %v815
    %1047 = vmatpush.bf16.msra.mxu0 %v813
    %1048 = vmatpush.bf16.msra.mxu0 %v811
    %1049 = vmatpush.bf16.msra.mxu0 %v809
    %1050 = vmatpush.bf16.msra.mxu0 %v807
    %1051 = vmatpush.bf16.msra.mxu0 %v805
    %1052 = vmatpush.bf16.msra.mxu0 %v803
    %1053 = vmatmul.bf16.gmra.mxu0 %v298
    %v1054 = vpop.f32.mrf.mxu0
    %v1055 = vadd.f32 %v1041, %v1054
    %v1056 = vpop.f32.mrf.mxu0
    %v1057 = vadd.f32 %v1043, %v1056
    %1058 = vdwg.mxu0
    %1059 = vmatpush.bf16.msra.mxu0 %v706
    %1060 = vmatpush.bf16.msra.mxu0 %v704
    %1061 = vmatpush.bf16.msra.mxu0 %v702
    %1062 = vmatpush.bf16.msra.mxu0 %v700
    %1063 = vmatpush.bf16.msra.mxu0 %v698
    %1064 = vmatpush.bf16.msra.mxu0 %v696
    %1065 = vmatpush.bf16.msra.mxu0 %v694
    %1066 = vmatpush.bf16.msra.mxu0 %v692
    %1067 = vmatmul.bf16.gmra.mxu0 %v291
    %v1068 = vpop.f32.mrf.mxu0
    %v1069 = vadd.f32 %v264, %v1068
    %v1070 = vpop.f32.mrf.mxu0
    %v1071 = vadd.f32 %v264, %v1070
    %1072 = vdwg.mxu0
    %1073 = vmatpush.bf16.msra.mxu0 %v722
    %1074 = vmatpush.bf16.msra.mxu0 %v720
    %1075 = vmatpush.bf16.msra.mxu0 %v718
    %1076 = vmatpush.bf16.msra.mxu0 %v716
    %1077 = vmatpush.bf16.msra.mxu0 %v714
    %1078 = vmatpush.bf16.msra.mxu0 %v712
    %1079 = vmatpush.bf16.msra.mxu0 %v710
    %1080 = vmatpush.bf16.msra.mxu0 %v708
    %1081 = vmatmul.bf16.gmra.mxu0 %v292
    %v1082 = vpop.f32.mrf.mxu0
    %v1083 = vadd.f32 %v1069, %v1082
    %v1084 = vpop.f32.mrf.mxu0
    %v1085 = vadd.f32 %v1071, %v1084
    %1086 = vdwg.mxu0
    %1087 = vmatpush.bf16.msra.mxu0 %v738
    %1088 = vmatpush.bf16.msra.mxu0 %v736
    %1089 = vmatpush.bf16.msra.mxu0 %v734
    %1090 = vmatpush.bf16.msra.mxu0 %v732
    %1091 = vmatpush.bf16.msra.mxu0 %v730
    %1092 = vmatpush.bf16.msra.mxu0 %v728
    %1093 = vmatpush.bf16.msra.mxu0 %v726
    %1094 = vmatpush.bf16.msra.mxu0 %v724
    %1095 = vmatmul.bf16.gmra.mxu0 %v293
    %v1096 = vpop.f32.mrf.mxu0
    %v1097 = vadd.f32 %v1083, %v1096
    %v1098 = vpop.f32.mrf.mxu0
    %v1099 = vadd.f32 %v1085, %v1098
    %1100 = vdwg.mxu0
    %1101 = vmatpush.bf16.msra.mxu0 %v754
    %1102 = vmatpush.bf16.msra.mxu0 %v752
    %1103 = vmatpush.bf16.msra.mxu0 %v750
    %1104 = vmatpush.bf16.msra.mxu0 %v748
    %1105 = vmatpush.bf16.msra.mxu0 %v746
    %1106 = vmatpush.bf16.msra.mxu0 %v744
    %1107 = vmatpush.bf16.msra.mxu0 %v742
    %1108 = vmatpush.bf16.msra.mxu0 %v740
    %1109 = vmatmul.bf16.gmra.mxu0 %v294
    %v1110 = vpop.f32.mrf.mxu0
    %v1111 = vadd.f32 %v1097, %v1110
    %v1112 = vpop.f32.mrf.mxu0
    %v1113 = vadd.f32 %v1099, %v1112
    %1114 = vdwg.mxu0
    %1115 = vmatpush.bf16.msra.mxu0 %v770
    %1116 = vmatpush.bf16.msra.mxu0 %v768
    %1117 = vmatpush.bf16.msra.mxu0 %v766
    %1118 = vmatpush.bf16.msra.mxu0 %v764
    %1119 = vmatpush.bf16.msra.mxu0 %v762
    %1120 = vmatpush.bf16.msra.mxu0 %v760
    %1121 = vmatpush.bf16.msra.mxu0 %v758
    %1122 = vmatpush.bf16.msra.mxu0 %v756
    %1123 = vmatmul.bf16.gmra.mxu0 %v295
    %v1124 = vpop.f32.mrf.mxu0
    %v1125 = vadd.f32 %v1111, %v1124
    %v1126 = vpop.f32.mrf.mxu0
    %v1127 = vadd.f32 %v1113, %v1126
    %1128 = vdwg.mxu0
    %1129 = vmatpush.bf16.msra.mxu0 %v786
    %1130 = vmatpush.bf16.msra.mxu0 %v784
    %1131 = vmatpush.bf16.msra.mxu0 %v782
    %1132 = vmatpush.bf16.msra.mxu0 %v780
    %1133 = vmatpush.bf16.msra.mxu0 %v778
    %1134 = vmatpush.bf16.msra.mxu0 %v776
    %1135 = vmatpush.bf16.msra.mxu0 %v774
    %1136 = vmatpush.bf16.msra.mxu0 %v772
    %1137 = vmatmul.bf16.gmra.mxu0 %v296
    %v1138 = vpop.f32.mrf.mxu0
    %v1139 = vadd.f32 %v1125, %v1138
    %v1140 = vpop.f32.mrf.mxu0
    %v1141 = vadd.f32 %v1127, %v1140
    %1142 = vdwg.mxu0
    %1143 = vmatpush.bf16.msra.mxu0 %v802
    %1144 = vmatpush.bf16.msra.mxu0 %v800
    %1145 = vmatpush.bf16.msra.mxu0 %v798
    %1146 = vmatpush.bf16.msra.mxu0 %v796
    %1147 = vmatpush.bf16.msra.mxu0 %v794
    %1148 = vmatpush.bf16.msra.mxu0 %v792
    %1149 = vmatpush.bf16.msra.mxu0 %v790
    %1150 = vmatpush.bf16.msra.mxu0 %v788
    %1151 = vmatmul.bf16.gmra.mxu0 %v297
    %v1152 = vpop.f32.mrf.mxu0
    %v1153 = vadd.f32 %v1139, %v1152
    %v1154 = vpop.f32.mrf.mxu0
    %v1155 = vadd.f32 %v1141, %v1154
    %1156 = vdwg.mxu0
    %1157 = vmatpush.bf16.msra.mxu0 %v818
    %1158 = vmatpush.bf16.msra.mxu0 %v816
    %1159 = vmatpush.bf16.msra.mxu0 %v814
    %1160 = vmatpush.bf16.msra.mxu0 %v812
    %1161 = vmatpush.bf16.msra.mxu0 %v810
    %1162 = vmatpush.bf16.msra.mxu0 %v808
    %1163 = vmatpush.bf16.msra.mxu0 %v806
    %1164 = vmatpush.bf16.msra.mxu0 %v804
    %1165 = vmatmul.bf16.gmra.mxu0 %v298
    %v1166 = vpop.f32.mrf.mxu0
    %v1167 = vadd.f32 %v1153, %v1166
    %v1168 = vpop.f32.mrf.mxu0
    %v1169 = vadd.f32 %v1155, %v1168
    %1170 = vdwg.mxu0
    %v1171 = vpack.c.bf16 %v1057, %v1055
    %v1172 = vpack.c.bf16 %v1169, %v1167
    %v1173 = vld [vmem:[#allocation8] sm:$0xff]
    %v1174 = vld [vmem:[#allocation8 + $0x8] sm:$0xff]
    %v1175 = vld [vmem:[#allocation8 + $0x10] sm:$0xff]
    %v1176 = vld [vmem:[#allocation8 + $0x18] sm:$0xff]
    %v1177 = vld [vmem:[#allocation8 + $0x20] sm:$0xff]
    %v1178 = vld [vmem:[#allocation8 + $0x28] sm:$0xff]
    %v1179 = vld [vmem:[#allocation8 + $0x30] sm:$0xff]
    %v1180 = vld [vmem:[#allocation8 + $0x38] sm:$0xff]
    %v1181 = vld [vmem:[#allocation8 + $0x40] sm:$0xff]
    %v1182 = vld [vmem:[#allocation8 + $0x48] sm:$0xff]
    %v1183 = vld [vmem:[#allocation8 + $0x50] sm:$0xff]
    %v1184 = vld [vmem:[#allocation8 + $0x58] sm:$0xff]
    %v1185 = vld [vmem:[#allocation8 + $0x60] sm:$0xff]
    %v1186 = vld [vmem:[#allocation8 + $0x68] sm:$0xff]
    %v1187 = vld [vmem:[#allocation8 + $0x70] sm:$0xff]
    %v1188 = vld [vmem:[#allocation8 + $0x78] sm:$0xff]
    %v1189 = vld [vmem:[#allocation8 + $0x80] sm:$0xff]
    %v1190 = vld [vmem:[#allocation8 + $0x88] sm:$0xff]
    %v1191 = vld [vmem:[#allocation8 + $0x90] sm:$0xff]
    %v1192 = vld [vmem:[#allocation8 + $0x98] sm:$0xff]
    %v1193 = vld [vmem:[#allocation8 + $0xa0] sm:$0xff]
    %v1194 = vld [vmem:[#allocation8 + $0xa8] sm:$0xff]
    %v1195 = vld [vmem:[#allocation8 + $0xb0] sm:$0xff]
    %v1196 = vld [vmem:[#allocation8 + $0xb8] sm:$0xff]
    %v1197 = vld [vmem:[#allocation8 + $0xc0] sm:$0xff]
    %v1198 = vld [vmem:[#allocation8 + $0xc8] sm:$0xff]
    %v1199 = vld [vmem:[#allocation8 + $0xd0] sm:$0xff]
    %v1200 = vld [vmem:[#allocation8 + $0xd8] sm:$0xff]
    %v1201 = vld [vmem:[#allocation8 + $0xe0] sm:$0xff]
    %v1202 = vld [vmem:[#allocation8 + $0xe8] sm:$0xff]
    %v1203 = vld [vmem:[#allocation8 + $0xf0] sm:$0xff]
    %v1204 = vld [vmem:[#allocation8 + $0xf8] sm:$0xff]
    %v1205 = vld [vmem:[%s4] sm:$0x3]
    %v1207 = vperm.slane %v1205, 0
    %v1208 = vperm.slane %v1205, 1
    %v1243 = vunpack.c.l.b16 %v1173
    %v1244 = vunpack.c.h.b16 %v1173
    %v1245 = vunpack.c.l.b16 %v1174
    %v1246 = vunpack.c.h.b16 %v1174
    %v1247 = vunpack.c.l.b16 %v1175
    %v1248 = vunpack.c.h.b16 %v1175
    %v1249 = vunpack.c.l.b16 %v1176
    %v1250 = vunpack.c.h.b16 %v1176
    %v1251 = vunpack.c.l.b16 %v1177
    %v1252 = vunpack.c.h.b16 %v1177
    %v1253 = vunpack.c.l.b16 %v1178
    %v1254 = vunpack.c.h.b16 %v1178
    %v1255 = vunpack.c.l.b16 %v1179
    %v1256 = vunpack.c.h.b16 %v1179
    %v1257 = vunpack.c.l.b16 %v1180
    %v1258 = vunpack.c.h.b16 %v1180
    %v1259 = vunpack.c.l.b16 %v1181
    %v1260 = vunpack.c.h.b16 %v1181
    %v1261 = vunpack.c.l.b16 %v1182
    %v1262 = vunpack.c.h.b16 %v1182
    %v1263 = vunpack.c.l.b16 %v1183
    %v1264 = vunpack.c.h.b16 %v1183
    %v1265 = vunpack.c.l.b16 %v1184
    %v1266 = vunpack.c.h.b16 %v1184
    %v1267 = vunpack.c.l.b16 %v1185
    %v1268 = vunpack.c.h.b16 %v1185
    %v1269 = vunpack.c.l.b16 %v1186
    %v1270 = vunpack.c.h.b16 %v1186
    %v1271 = vunpack.c.l.b16 %v1187
    %v1272 = vunpack.c.h.b16 %v1187
    %v1273 = vunpack.c.l.b16 %v1188
    %v1274 = vunpack.c.h.b16 %v1188
    %v1275 = vunpack.c.l.b16 %v1189
    %v1276 = vunpack.c.h.b16 %v1189
    %v1277 = vunpack.c.l.b16 %v1190
    %v1278 = vunpack.c.h.b16 %v1190
    %v1279 = vunpack.c.l.b16 %v1191
    %v1280 = vunpack.c.h.b16 %v1191
    %v1281 = vunpack.c.l.b16 %v1192
    %v1282 = vunpack.c.h.b16 %v1192
    %v1283 = vunpack.c.l.b16 %v1193
    %v1284 = vunpack.c.h.b16 %v1193
    %v1285 = vunpack.c.l.b16 %v1194
    %v1286 = vunpack.c.h.b16 %v1194
    %v1287 = vunpack.c.l.b16 %v1195
    %v1288 = vunpack.c.h.b16 %v1195
    %v1289 = vunpack.c.l.b16 %v1196
    %v1290 = vunpack.c.h.b16 %v1196
    %v1291 = vunpack.c.l.b16 %v1197
    %v1292 = vunpack.c.h.b16 %v1197
    %v1293 = vunpack.c.l.b16 %v1198
    %v1294 = vunpack.c.h.b16 %v1198
    %v1295 = vunpack.c.l.b16 %v1199
    %v1296 = vunpack.c.h.b16 %v1199
    %v1297 = vunpack.c.l.b16 %v1200
    %v1298 = vunpack.c.h.b16 %v1200
    %v1299 = vunpack.c.l.b16 %v1201
    %v1300 = vunpack.c.h.b16 %v1201
    %v1301 = vunpack.c.l.b16 %v1202
    %v1302 = vunpack.c.h.b16 %v1202
    %v1303 = vunpack.c.l.b16 %v1203
    %v1304 = vunpack.c.h.b16 %v1203
    %v1305 = vunpack.c.l.b16 %v1204
    %v1306 = vunpack.c.h.b16 %v1204
    %v1307 = vpack.c.b16 %v1245, %v1243
    %v1308 = vpack.c.b16 %v1246, %v1244
    %v1309 = vpack.c.b16 %v1249, %v1247
    %v1310 = vpack.c.b16 %v1250, %v1248
    %v1311 = vpack.c.b16 %v1253, %v1251
    %v1312 = vpack.c.b16 %v1254, %v1252
    %v1313 = vpack.c.b16 %v1257, %v1255
    %v1314 = vpack.c.b16 %v1258, %v1256
    %v1315 = vpack.c.b16 %v1261, %v1259
    %v1316 = vpack.c.b16 %v1262, %v1260
    %v1317 = vpack.c.b16 %v1265, %v1263
    %v1318 = vpack.c.b16 %v1266, %v1264
    %v1319 = vpack.c.b16 %v1269, %v1267
    %v1320 = vpack.c.b16 %v1270, %v1268
    %v1321 = vpack.c.b16 %v1273, %v1271
    %v1322 = vpack.c.b16 %v1274, %v1272
    %v1323 = vpack.c.b16 %v1277, %v1275
    %v1324 = vpack.c.b16 %v1278, %v1276
    %v1325 = vpack.c.b16 %v1281, %v1279
    %v1326 = vpack.c.b16 %v1282, %v1280
    %v1327 = vpack.c.b16 %v1285, %v1283
    %v1328 = vpack.c.b16 %v1286, %v1284
    %v1329 = vpack.c.b16 %v1289, %v1287
    %v1330 = vpack.c.b16 %v1290, %v1288
    %v1331 = vpack.c.b16 %v1293, %v1291
    %v1332 = vpack.c.b16 %v1294, %v1292
    %v1333 = vpack.c.b16 %v1297, %v1295
    %v1334 = vpack.c.b16 %v1298, %v1296
    %v1335 = vpack.c.b16 %v1301, %v1299
    %v1336 = vpack.c.b16 %v1302, %v1300
    %v1337 = vpack.c.b16 %v1305, %v1303
    %v1338 = vpack.c.b16 %v1306, %v1304
    %1371 = vmatpush.bf16.msra.mxu0 %v1321
    %1372 = vmatpush.bf16.msra.mxu0 %v1319
    %1373 = vmatpush.bf16.msra.mxu0 %v1317
    %1374 = vmatpush.bf16.msra.mxu0 %v1315
    %1375 = vmatpush.bf16.msra.mxu0 %v1313
    %1376 = vmatpush.bf16.msra.mxu0 %v1311
    %1377 = vmatpush.bf16.msra.mxu0 %v1309
    %1378 = vmatpush.bf16.msra.mxu0 %v1307
    %1379 = vmatmul.bf16.gmra.mxu0 %v1171
    %v1380 = vpop.f32.mrf.mxu0
    %v1381 = vadd.f32 %v1207, %v1380
    %v1382 = vpop.f32.mrf.mxu0
    %v1383 = vadd.f32 %v1207, %v1382
    %1384 = vdwg.mxu0
    %1385 = vmatpush.bf16.msra.mxu0 %v1337
    %1386 = vmatpush.bf16.msra.mxu0 %v1335
    %1387 = vmatpush.bf16.msra.mxu0 %v1333
    %1388 = vmatpush.bf16.msra.mxu0 %v1331
    %1389 = vmatpush.bf16.msra.mxu0 %v1329
    %1390 = vmatpush.bf16.msra.mxu0 %v1327
    %1391 = vmatpush.bf16.msra.mxu0 %v1325
    %1392 = vmatpush.bf16.msra.mxu0 %v1323
    %1393 = vmatmul.bf16.gmra.mxu0 %v1172
    %v1394 = vpop.f32.mrf.mxu0
    %v1395 = vadd.f32 %v1381, %v1394
    %v1396 = vpop.f32.mrf.mxu0
    %v1397 = vadd.f32 %v1383, %v1396
    %1398 = vdwg.mxu0
    %1399 = vmatpush.bf16.msra.mxu0 %v1322
    %1400 = vmatpush.bf16.msra.mxu0 %v1320
    %1401 = vmatpush.bf16.msra.mxu0 %v1318
    %1402 = vmatpush.bf16.msra.mxu0 %v1316
    %1403 = vmatpush.bf16.msra.mxu0 %v1314
    %1404 = vmatpush.bf16.msra.mxu0 %v1312
    %1405 = vmatpush.bf16.msra.mxu0 %v1310
    %1406 = vmatpush.bf16.msra.mxu0 %v1308
    %1407 = vmatmul.bf16.gmra.mxu0 %v1171
    %v1408 = vpop.f32.mrf.mxu0
    %v1409 = vadd.f32 %v1208, %v1408
    %v1410 = vpop.f32.mrf.mxu0
    %v1411 = vadd.f32 %v1208, %v1410
    %1412 = vdwg.mxu0
    %1413 = vmatpush.bf16.msra.mxu0 %v1338
    %1414 = vmatpush.bf16.msra.mxu0 %v1336
    %1415 = vmatpush.bf16.msra.mxu0 %v1334
    %1416 = vmatpush.bf16.msra.mxu0 %v1332
    %1417 = vmatpush.bf16.msra.mxu0 %v1330
    %1418 = vmatpush.bf16.msra.mxu0 %v1328
    %1419 = vmatpush.bf16.msra.mxu0 %v1326
    %1420 = vmatpush.bf16.msra.mxu0 %v1324
    %1421 = vmatmul.bf16.gmra.mxu0 %v1172
    %v1422 = vpop.f32.mrf.mxu0
    %v1423 = vadd.f32 %v1409, %v1422
    %v1424 = vpop.f32.mrf.mxu0
    %v1425 = vadd.f32 %v1411, %v1424
    %1426 = vdwg.mxu0
    %v1427 = vmax.f32 %v1395, 0.0
    %v1428 = vmax.f32 %v1423, 0.0
    %v1429 = vmax.f32 %v1397, 0.0
    %v1430 = vmax.f32 %v1425, 0.0
    %v1431 = vpack.c.bf16 %v1429, %v1427
    %v1432 = vpack.c.bf16 %v1430, %v1428
    %v1433 = vld [vmem:[#allocation10] sm:$0xff]
    %v1434 = vld [vmem:[#allocation10 + $0x8] sm:$0xff]
    %v1435 = vld [vmem:[#allocation10 + $0x10] sm:$0xff]
    %v1436 = vld [vmem:[#allocation10 + $0x18] sm:$0xff]
    %v1437 = vld [vmem:[#allocation10 + $0x20] sm:$0xff]
    %v1438 = vld [vmem:[#allocation10 + $0x28] sm:$0xff]
    %v1439 = vld [vmem:[#allocation10 + $0x30] sm:$0xff]
    %v1440 = vld [vmem:[#allocation10 + $0x38] sm:$0xff]
    %v1441 = vld [vmem:[#allocation10 + $0x40] sm:$0xff]
    %v1442 = vld [vmem:[#allocation10 + $0x48] sm:$0xff]
    %v1443 = vld [vmem:[#allocation10 + $0x50] sm:$0xff]
    %v1444 = vld [vmem:[#allocation10 + $0x58] sm:$0xff]
    %v1445 = vld [vmem:[#allocation10 + $0x60] sm:$0xff]
    %v1446 = vld [vmem:[#allocation10 + $0x68] sm:$0xff]
    %v1447 = vld [vmem:[#allocation10 + $0x70] sm:$0xff]
    %v1448 = vld [vmem:[#allocation10 + $0x78] sm:$0xff]
    %v1449 = vld [vmem:[#allocation10 + $0x80] sm:$0xff]
    %v1450 = vld [vmem:[#allocation10 + $0x88] sm:$0xff]
    %v1451 = vld [vmem:[#allocation10 + $0x90] sm:$0xff]
    %v1452 = vld [vmem:[#allocation10 + $0x98] sm:$0xff]
    %v1453 = vld [vmem:[#allocation10 + $0xa0] sm:$0xff]
    %v1454 = vld [vmem:[#allocation10 + $0xa8] sm:$0xff]
    %v1455 = vld [vmem:[#allocation10 + $0xb0] sm:$0xff]
    %v1456 = vld [vmem:[#allocation10 + $0xb8] sm:$0xff]
    %v1457 = vld [vmem:[#allocation10 + $0xc0] sm:$0xff]
    %v1458 = vld [vmem:[#allocation10 + $0xc8] sm:$0xff]
    %v1459 = vld [vmem:[#allocation10 + $0xd0] sm:$0xff]
    %v1460 = vld [vmem:[#allocation10 + $0xd8] sm:$0xff]
    %v1461 = vld [vmem:[#allocation10 + $0xe0] sm:$0xff]
    %v1462 = vld [vmem:[#allocation10 + $0xe8] sm:$0xff]
    %v1463 = vld [vmem:[#allocation10 + $0xf0] sm:$0xff]
    %v1464 = vld [vmem:[#allocation10 + $0xf8] sm:$0xff]
    %v1465 = vld [vmem:[%s6] sm:$0x3]
    %v1467 = vperm.slane %v1465, 0
    %v1468 = vperm.slane %v1465, 1
    %v1503 = vunpack.c.l.b16 %v1433
    %v1504 = vunpack.c.h.b16 %v1433
    %v1505 = vunpack.c.l.b16 %v1434
    %v1506 = vunpack.c.h.b16 %v1434
    %v1507 = vunpack.c.l.b16 %v1435
    %v1508 = vunpack.c.h.b16 %v1435
    %v1509 = vunpack.c.l.b16 %v1436
    %v1510 = vunpack.c.h.b16 %v1436
    %v1511 = vunpack.c.l.b16 %v1437
    %v1512 = vunpack.c.h.b16 %v1437
    %v1513 = vunpack.c.l.b16 %v1438
    %v1514 = vunpack.c.h.b16 %v1438
    %v1515 = vunpack.c.l.b16 %v1439
    %v1516 = vunpack.c.h.b16 %v1439
    %v1517 = vunpack.c.l.b16 %v1440
    %v1518 = vunpack.c.h.b16 %v1440
    %v1519 = vunpack.c.l.b16 %v1441
    %v1520 = vunpack.c.h.b16 %v1441
    %v1521 = vunpack.c.l.b16 %v1442
    %v1522 = vunpack.c.h.b16 %v1442
    %v1523 = vunpack.c.l.b16 %v1443
    %v1524 = vunpack.c.h.b16 %v1443
    %v1525 = vunpack.c.l.b16 %v1444
    %v1526 = vunpack.c.h.b16 %v1444
    %v1527 = vunpack.c.l.b16 %v1445
    %v1528 = vunpack.c.h.b16 %v1445
    %v1529 = vunpack.c.l.b16 %v1446
    %v1530 = vunpack.c.h.b16 %v1446
    %v1531 = vunpack.c.l.b16 %v1447
    %v1532 = vunpack.c.h.b16 %v1447
    %v1533 = vunpack.c.l.b16 %v1448
    %v1534 = vunpack.c.h.b16 %v1448
    %v1535 = vunpack.c.l.b16 %v1449
    %v1536 = vunpack.c.h.b16 %v1449
    %v1537 = vunpack.c.l.b16 %v1450
    %v1538 = vunpack.c.h.b16 %v1450
    %v1539 = vunpack.c.l.b16 %v1451
    %v1540 = vunpack.c.h.b16 %v1451
    %v1541 = vunpack.c.l.b16 %v1452
    %v1542 = vunpack.c.h.b16 %v1452
    %v1543 = vunpack.c.l.b16 %v1453
    %v1544 = vunpack.c.h.b16 %v1453
    %v1545 = vunpack.c.l.b16 %v1454
    %v1546 = vunpack.c.h.b16 %v1454
    %v1547 = vunpack.c.l.b16 %v1455
    %v1548 = vunpack.c.h.b16 %v1455
    %v1549 = vunpack.c.l.b16 %v1456
    %v1550 = vunpack.c.h.b16 %v1456
    %v1551 = vunpack.c.l.b16 %v1457
    %v1552 = vunpack.c.h.b16 %v1457
    %v1553 = vunpack.c.l.b16 %v1458
    %v1554 = vunpack.c.h.b16 %v1458
    %v1555 = vunpack.c.l.b16 %v1459
    %v1556 = vunpack.c.h.b16 %v1459
    %v1557 = vunpack.c.l.b16 %v1460
    %v1558 = vunpack.c.h.b16 %v1460
    %v1559 = vunpack.c.l.b16 %v1461
    %v1560 = vunpack.c.h.b16 %v1461
    %v1561 = vunpack.c.l.b16 %v1462
    %v1562 = vunpack.c.h.b16 %v1462
    %v1563 = vunpack.c.l.b16 %v1463
    %v1564 = vunpack.c.h.b16 %v1463
    %v1565 = vunpack.c.l.b16 %v1464
    %v1566 = vunpack.c.h.b16 %v1464
    %v1567 = vpack.c.b16 %v1505, %v1503
    %v1568 = vpack.c.b16 %v1506, %v1504
    %v1569 = vpack.c.b16 %v1509, %v1507
    %v1570 = vpack.c.b16 %v1510, %v1508
    %v1571 = vpack.c.b16 %v1513, %v1511
    %v1572 = vpack.c.b16 %v1514, %v1512
    %v1573 = vpack.c.b16 %v1517, %v1515
    %v1574 = vpack.c.b16 %v1518, %v1516
    %v1575 = vpack.c.b16 %v1521, %v1519
    %v1576 = vpack.c.b16 %v1522, %v1520
    %v1577 = vpack.c.b16 %v1525, %v1523
    %v1578 = vpack.c.b16 %v1526, %v1524
    %v1579 = vpack.c.b16 %v1529, %v1527
    %v1580 = vpack.c.b16 %v1530, %v1528
    %v1581 = vpack.c.b16 %v1533, %v1531
    %v1582 = vpack.c.b16 %v1534, %v1532
    %v1583 = vpack.c.b16 %v1537, %v1535
    %v1584 = vpack.c.b16 %v1538, %v1536
    %v1585 = vpack.c.b16 %v1541, %v1539
    %v1586 = vpack.c.b16 %v1542, %v1540
    %v1587 = vpack.c.b16 %v1545, %v1543
    %v1588 = vpack.c.b16 %v1546, %v1544
    %v1589 = vpack.c.b16 %v1549, %v1547
    %v1590 = vpack.c.b16 %v1550, %v1548
    %v1591 = vpack.c.b16 %v1553, %v1551
    %v1592 = vpack.c.b16 %v1554, %v1552
    %v1593 = vpack.c.b16 %v1557, %v1555
    %v1594 = vpack.c.b16 %v1558, %v1556
    %v1595 = vpack.c.b16 %v1561, %v1559
    %v1596 = vpack.c.b16 %v1562, %v1560
    %v1597 = vpack.c.b16 %v1565, %v1563
    %v1598 = vpack.c.b16 %v1566, %v1564
    %1631 = vmatpush.bf16.msra.mxu0 %v1581
    %1632 = vmatpush.bf16.msra.mxu0 %v1579
    %1633 = vmatpush.bf16.msra.mxu0 %v1577
    %1634 = vmatpush.bf16.msra.mxu0 %v1575
    %1635 = vmatpush.bf16.msra.mxu0 %v1573
    %1636 = vmatpush.bf16.msra.mxu0 %v1571
    %1637 = vmatpush.bf16.msra.mxu0 %v1569
    %1638 = vmatpush.bf16.msra.mxu0 %v1567
    %1639 = vmatmul.bf16.gmra.mxu0 %v1431
    %v1640 = vpop.f32.mrf.mxu0
    %v1641 = vadd.f32 %v1467, %v1640
    %v1642 = vpop.f32.mrf.mxu0
    %v1643 = vadd.f32 %v1467, %v1642
    %1644 = vdwg.mxu0
    %1645 = vmatpush.bf16.msra.mxu0 %v1597
    %1646 = vmatpush.bf16.msra.mxu0 %v1595
    %1647 = vmatpush.bf16.msra.mxu0 %v1593
    %1648 = vmatpush.bf16.msra.mxu0 %v1591
    %1649 = vmatpush.bf16.msra.mxu0 %v1589
    %1650 = vmatpush.bf16.msra.mxu0 %v1587
    %1651 = vmatpush.bf16.msra.mxu0 %v1585
    %1652 = vmatpush.bf16.msra.mxu0 %v1583
    %1653 = vmatmul.bf16.gmra.mxu0 %v1432
    %v1654 = vpop.f32.mrf.mxu0
    %v1655 = vadd.f32 %v1641, %v1654
    %v1656 = vpop.f32.mrf.mxu0
    %v1657 = vadd.f32 %v1643, %v1656
    %1658 = vdwg.mxu0
    %1659 = vmatpush.bf16.msra.mxu0 %v1582
    %1660 = vmatpush.bf16.msra.mxu0 %v1580
    %1661 = vmatpush.bf16.msra.mxu0 %v1578
    %1662 = vmatpush.bf16.msra.mxu0 %v1576
    %1663 = vmatpush.bf16.msra.mxu0 %v1574
    %1664 = vmatpush.bf16.msra.mxu0 %v1572
    %1665 = vmatpush.bf16.msra.mxu0 %v1570
    %1666 = vmatpush.bf16.msra.mxu0 %v1568
    %1667 = vmatmul.bf16.gmra.mxu0 %v1431
    %v1668 = vpop.f32.mrf.mxu0
    %v1669 = vadd.f32 %v1468, %v1668
    %v1670 = vpop.f32.mrf.mxu0
    %v1671 = vadd.f32 %v1468, %v1670
    %1672 = vdwg.mxu0
    %1673 = vmatpush.bf16.msra.mxu0 %v1598
    %1674 = vmatpush.bf16.msra.mxu0 %v1596
    %1675 = vmatpush.bf16.msra.mxu0 %v1594
    %1676 = vmatpush.bf16.msra.mxu0 %v1592
    %1677 = vmatpush.bf16.msra.mxu0 %v1590
    %1678 = vmatpush.bf16.msra.mxu0 %v1588
    %1679 = vmatpush.bf16.msra.mxu0 %v1586
    %1680 = vmatpush.bf16.msra.mxu0 %v1584
    %1681 = vmatmul.bf16.gmra.mxu0 %v1432
    %v1682 = vpop.f32.mrf.mxu0
    %v1683 = vadd.f32 %v1669, %v1682
    %v1684 = vpop.f32.mrf.mxu0
    %v1685 = vadd.f32 %v1671, %v1684
    %1686 = vdwg.mxu0
    %v1687 = vmax.f32 %v1655, 0.0
    %v1688 = vmax.f32 %v1683, 0.0
    %v1689 = vmax.f32 %v1657, 0.0
    %v1690 = vmax.f32 %v1685, 0.0
    %v1691 = vpack.c.bf16 %v1689, %v1687
    %v1692 = vpack.c.bf16 %v1690, %v1688
    %v1693 = vld [vmem:[#allocation11] sm:$0xff]
    %v1694 = vld [vmem:[#allocation11 + $0x8] sm:$0xff]
    %v1695 = vld [vmem:[#allocation11 + $0x10] sm:$0xff]
    %v1696 = vld [vmem:[#allocation11 + $0x18] sm:$0xff]
    %v1697 = vld [vmem:[#allocation11 + $0x20] sm:$0xff]
    %v1698 = vld [vmem:[#allocation11 + $0x28] sm:$0xff]
    %v1699 = vld [vmem:[#allocation11 + $0x30] sm:$0xff]
    %v1700 = vld [vmem:[#allocation11 + $0x38] sm:$0xff]
    %v1701 = vld [vmem:[#allocation11 + $0x40] sm:$0xff]
    %v1702 = vld [vmem:[#allocation11 + $0x48] sm:$0xff]
    %v1703 = vld [vmem:[#allocation11 + $0x50] sm:$0xff]
    %v1704 = vld [vmem:[#allocation11 + $0x58] sm:$0xff]
    %v1705 = vld [vmem:[#allocation11 + $0x60] sm:$0xff]
    %v1706 = vld [vmem:[#allocation11 + $0x68] sm:$0xff]
    %v1707 = vld [vmem:[#allocation11 + $0x70] sm:$0xff]
    %v1708 = vld [vmem:[#allocation11 + $0x78] sm:$0xff]
    %v1709 = vld [vmem:[#allocation11 + $0x80] sm:$0xff]
    %v1710 = vld [vmem:[#allocation11 + $0x88] sm:$0xff]
    %v1711 = vld [vmem:[#allocation11 + $0x90] sm:$0xff]
    %v1712 = vld [vmem:[#allocation11 + $0x98] sm:$0xff]
    %v1713 = vld [vmem:[#allocation11 + $0xa0] sm:$0xff]
    %v1714 = vld [vmem:[#allocation11 + $0xa8] sm:$0xff]
    %v1715 = vld [vmem:[#allocation11 + $0xb0] sm:$0xff]
    %v1716 = vld [vmem:[#allocation11 + $0xb8] sm:$0xff]
    %v1717 = vld [vmem:[#allocation11 + $0xc0] sm:$0xff]
    %v1718 = vld [vmem:[#allocation11 + $0xc8] sm:$0xff]
    %v1719 = vld [vmem:[#allocation11 + $0xd0] sm:$0xff]
    %v1720 = vld [vmem:[#allocation11 + $0xd8] sm:$0xff]
    %v1721 = vld [vmem:[#allocation11 + $0xe0] sm:$0xff]
    %v1722 = vld [vmem:[#allocation11 + $0xe8] sm:$0xff]
    %v1723 = vld [vmem:[#allocation11 + $0xf0] sm:$0xff]
    %v1724 = vld [vmem:[#allocation11 + $0xf8] sm:$0xff]
    %v1725 = vld [vmem:[%s8] sm:$0x3]
    %v1727 = vperm.slane %v1725, 0
    %v1728 = vperm.slane %v1725, 1
    %v1763 = vunpack.c.l.b16 %v1693
    %v1764 = vunpack.c.h.b16 %v1693
    %v1765 = vunpack.c.l.b16 %v1694
    %v1766 = vunpack.c.h.b16 %v1694
    %v1767 = vunpack.c.l.b16 %v1695
    %v1768 = vunpack.c.h.b16 %v1695
    %v1769 = vunpack.c.l.b16 %v1696
    %v1770 = vunpack.c.h.b16 %v1696
    %v1771 = vunpack.c.l.b16 %v1697
    %v1772 = vunpack.c.h.b16 %v1697
    %v1773 = vunpack.c.l.b16 %v1698
    %v1774 = vunpack.c.h.b16 %v1698
    %v1775 = vunpack.c.l.b16 %v1699
    %v1776 = vunpack.c.h.b16 %v1699
    %v1777 = vunpack.c.l.b16 %v1700
    %v1778 = vunpack.c.h.b16 %v1700
    %v1779 = vunpack.c.l.b16 %v1701
    %v1780 = vunpack.c.h.b16 %v1701
    %v1781 = vunpack.c.l.b16 %v1702
    %v1782 = vunpack.c.h.b16 %v1702
    %v1783 = vunpack.c.l.b16 %v1703
    %v1784 = vunpack.c.h.b16 %v1703
    %v1785 = vunpack.c.l.b16 %v1704
    %v1786 = vunpack.c.h.b16 %v1704
    %v1787 = vunpack.c.l.b16 %v1705
    %v1788 = vunpack.c.h.b16 %v1705
    %v1789 = vunpack.c.l.b16 %v1706
    %v1790 = vunpack.c.h.b16 %v1706
    %v1791 = vunpack.c.l.b16 %v1707
    %v1792 = vunpack.c.h.b16 %v1707
    %v1793 = vunpack.c.l.b16 %v1708
    %v1794 = vunpack.c.h.b16 %v1708
    %v1795 = vunpack.c.l.b16 %v1709
    %v1796 = vunpack.c.h.b16 %v1709
    %v1797 = vunpack.c.l.b16 %v1710
    %v1798 = vunpack.c.h.b16 %v1710
    %v1799 = vunpack.c.l.b16 %v1711
    %v1800 = vunpack.c.h.b16 %v1711
    %v1801 = vunpack.c.l.b16 %v1712
    %v1802 = vunpack.c.h.b16 %v1712
    %v1803 = vunpack.c.l.b16 %v1713
    %v1804 = vunpack.c.h.b16 %v1713
    %v1805 = vunpack.c.l.b16 %v1714
    %v1806 = vunpack.c.h.b16 %v1714
    %v1807 = vunpack.c.l.b16 %v1715
    %v1808 = vunpack.c.h.b16 %v1715
    %v1809 = vunpack.c.l.b16 %v1716
    %v1810 = vunpack.c.h.b16 %v1716
    %v1811 = vunpack.c.l.b16 %v1717
    %v1812 = vunpack.c.h.b16 %v1717
    %v1813 = vunpack.c.l.b16 %v1718
    %v1814 = vunpack.c.h.b16 %v1718
    %v1815 = vunpack.c.l.b16 %v1719
    %v1816 = vunpack.c.h.b16 %v1719
    %v1817 = vunpack.c.l.b16 %v1720
    %v1818 = vunpack.c.h.b16 %v1720
    %v1819 = vunpack.c.l.b16 %v1721
    %v1820 = vunpack.c.h.b16 %v1721
    %v1821 = vunpack.c.l.b16 %v1722
    %v1822 = vunpack.c.h.b16 %v1722
    %v1823 = vunpack.c.l.b16 %v1723
    %v1824 = vunpack.c.h.b16 %v1723
    %v1825 = vunpack.c.l.b16 %v1724
    %v1826 = vunpack.c.h.b16 %v1724
    %v1827 = vpack.c.b16 %v1765, %v1763
    %v1828 = vpack.c.b16 %v1766, %v1764
    %v1829 = vpack.c.b16 %v1769, %v1767
    %v1830 = vpack.c.b16 %v1770, %v1768
    %v1831 = vpack.c.b16 %v1773, %v1771
    %v1832 = vpack.c.b16 %v1774, %v1772
    %v1833 = vpack.c.b16 %v1777, %v1775
    %v1834 = vpack.c.b16 %v1778, %v1776
    %v1835 = vpack.c.b16 %v1781, %v1779
    %v1836 = vpack.c.b16 %v1782, %v1780
    %v1837 = vpack.c.b16 %v1785, %v1783
    %v1838 = vpack.c.b16 %v1786, %v1784
    %v1839 = vpack.c.b16 %v1789, %v1787
    %v1840 = vpack.c.b16 %v1790, %v1788
    %v1841 = vpack.c.b16 %v1793, %v1791
    %v1842 = vpack.c.b16 %v1794, %v1792
    %v1843 = vpack.c.b16 %v1797, %v1795
    %v1844 = vpack.c.b16 %v1798, %v1796
    %v1845 = vpack.c.b16 %v1801, %v1799
    %v1846 = vpack.c.b16 %v1802, %v1800
    %v1847 = vpack.c.b16 %v1805, %v1803
    %v1848 = vpack.c.b16 %v1806, %v1804
    %v1849 = vpack.c.b16 %v1809, %v1807
    %v1850 = vpack.c.b16 %v1810, %v1808
    %v1851 = vpack.c.b16 %v1813, %v1811
    %v1852 = vpack.c.b16 %v1814, %v1812
    %v1853 = vpack.c.b16 %v1817, %v1815
    %v1854 = vpack.c.b16 %v1818, %v1816
    %v1855 = vpack.c.b16 %v1821, %v1819
    %v1856 = vpack.c.b16 %v1822, %v1820
    %v1857 = vpack.c.b16 %v1825, %v1823
    %v1858 = vpack.c.b16 %v1826, %v1824
    %1891 = vmatpush.bf16.msra.mxu0 %v1841
    %1892 = vmatpush.bf16.msra.mxu0 %v1839
    %1893 = vmatpush.bf16.msra.mxu0 %v1837
    %1894 = vmatpush.bf16.msra.mxu0 %v1835
    %1895 = vmatpush.bf16.msra.mxu0 %v1833
    %1896 = vmatpush.bf16.msra.mxu0 %v1831
    %1897 = vmatpush.bf16.msra.mxu0 %v1829
    %1898 = vmatpush.bf16.msra.mxu0 %v1827
    %1899 = vmatmul.bf16.gmra.mxu0 %v1691
    %v1900 = vpop.f32.mrf.mxu0
    %v1901 = vadd.f32 %v1727, %v1900
    %v1902 = vpop.f32.mrf.mxu0
    %v1903 = vadd.f32 %v1727, %v1902
    %1904 = vdwg.mxu0
    %1905 = vmatpush.bf16.msra.mxu0 %v1857
    %1906 = vmatpush.bf16.msra.mxu0 %v1855
    %1907 = vmatpush.bf16.msra.mxu0 %v1853
    %1908 = vmatpush.bf16.msra.mxu0 %v1851
    %1909 = vmatpush.bf16.msra.mxu0 %v1849
    %1910 = vmatpush.bf16.msra.mxu0 %v1847
    %1911 = vmatpush.bf16.msra.mxu0 %v1845
    %1912 = vmatpush.bf16.msra.mxu0 %v1843
    %1913 = vmatmul.bf16.gmra.mxu0 %v1692
    %v1914 = vpop.f32.mrf.mxu0
    %v1915 = vadd.f32 %v1901, %v1914
    %v1916 = vpop.f32.mrf.mxu0
    %v1917 = vadd.f32 %v1903, %v1916
    %1918 = vdwg.mxu0
    %1919 = vmatpush.bf16.msra.mxu0 %v1842
    %1920 = vmatpush.bf16.msra.mxu0 %v1840
    %1921 = vmatpush.bf16.msra.mxu0 %v1838
    %1922 = vmatpush.bf16.msra.mxu0 %v1836
    %1923 = vmatpush.bf16.msra.mxu0 %v1834
    %1924 = vmatpush.bf16.msra.mxu0 %v1832
    %1925 = vmatpush.bf16.msra.mxu0 %v1830
    %1926 = vmatpush.bf16.msra.mxu0 %v1828
    %1927 = vmatmul.bf16.gmra.mxu0 %v1691
    %v1928 = vpop.f32.mrf.mxu0
    %v1929 = vadd.f32 %v1728, %v1928
    %v1930 = vpop.f32.mrf.mxu0
    %v1931 = vadd.f32 %v1728, %v1930
    %1932 = vdwg.mxu0
    %1933 = vmatpush.bf16.msra.mxu0 %v1858
    %1934 = vmatpush.bf16.msra.mxu0 %v1856
    %1935 = vmatpush.bf16.msra.mxu0 %v1854
    %1936 = vmatpush.bf16.msra.mxu0 %v1852
    %1937 = vmatpush.bf16.msra.mxu0 %v1850
    %1938 = vmatpush.bf16.msra.mxu0 %v1848
    %1939 = vmatpush.bf16.msra.mxu0 %v1846
    %1940 = vmatpush.bf16.msra.mxu0 %v1844
    %1941 = vmatmul.bf16.gmra.mxu0 %v1692
    %v1942 = vpop.f32.mrf.mxu0
    %v1943 = vadd.f32 %v1929, %v1942
    %v1944 = vpop.f32.mrf.mxu0
    %v1945 = vadd.f32 %v1931, %v1944
    %1946 = vdwg.mxu0
    %v1947 = vpack.c.bf16 %v1943, %v1915
    %v1948 = vpack.c.bf16 %v1945, %v1917
    %1949 = vst [vmem:[#allocation13] sm:$0xff] %v1947
    %1950 = vst [vmem:[#allocation13 + $0x8] sm:$0xff] %v1948
    // Predicated region
    $region62: #{tpu_custom_call.1} parent=1 // pred_check
      _
    $region63: #{tpu_custom_call.1} parent=1 // pred_check_branch
      %1952 = sbr.rel (0) target = $region65
    $region64: #{tpu_custom_call.1} parent=1 // pred_region
      %1954 = vsyncadd [#allocation4], 0
      %s1955 = sshll.u32 [#allocation13], 4
      %s1956 = int_to_ptr.vmem [resolvable:$true] %s1955
      %s1957 = sshll.u32 %s9, 4
      %s1958 = int_to_ptr.hbm [resolvable:$true] %s1957
      %1963 = dma.vmem_to_hbm [thread:$0]  %s1956, 256, %s1958, [#allocation4], 128, 128, 8
    $region65: #{tpu_custom_call.1} parent=1 // pred_fallthru
      _
    // Predicated region
    $region66: #{tpu_custom_call.1} parent=1 // pred_check
      _
    $region67: #{tpu_custom_call.1} parent=1 // pred_check_branch
      %1965 = sbr.rel (0) target = $region69
    $region68: #{tpu_custom_call.1} parent=1 // pred_region
      %1967 = dma.done [#allocation4], 256
    $region69: #{tpu_custom_call.1} parent=1 // pred_fallthru
      _
    %1968 = vsyncpa [#allocation3], 1
    %1969 = vsyncpa [#allocation6], 1
    %1970 = vsyncpa [#allocation9], 1
    %1971 = vsyncpa [#allocation12], 1
    %1972 = vsyncpa [#allocation4], 1

// kernel: tpu_custom_call.1
$region0: #{tpu_custom_call.1}
  #allocation0 [shape = 'u32[]', space=smem, size = 0x4, offset = 0x4, fixed_abs, tag = 'smem constant byte address 0x4 - core index']
  #allocation1 [shape = 'u32[72,128]{1,0:T(1,128)}', space=vmem, size = 0x9000, scoped, tag = 'internal scratch']
  %s0 = inlined_call_operand.hbm [shape: bf16[16,1024], index: 0, kind: input, shape index: {}]
  %s1 = inlined_call_operand.hbm [shape: bf16[1024,256], index: 1, kind: input, shape index: {}]
  %s2 = inlined_call_operand.hbm [shape: f32[1,256], index: 2, kind: input, shape index: {}]
  %s3 = inlined_call_operand.hbm [shape: bf16[256,256], index: 3, kind: input, shape index: {}]
  %s4 = inlined_call_operand.vmem [shape: f32[1,256], index: 4, kind: input, shape index: {}]
  %s5 = inlined_call_operand.hbm [shape: bf16[256,256], index: 5, kind: input, shape index: {}]
  %s6 = inlined_call_operand.vmem [shape: f32[1,256], index: 6, kind: input, shape index: {}]
  %s7 = inlined_call_operand.hbm [shape: bf16[256,256], index: 7, kind: input, shape index: {}]
  %s8 = inlined_call_operand.vmem [shape: f32[1,256], index: 8, kind: input, shape index: {}]
  %s9 = inlined_call_operand.hbm [shape: bf16[16,256], index: 9, kind: output, shape index: {}]
  %s10 = sld [smem:[#allocation0]]
  $region70: #{tpu_custom_call.1} parent=0
    _
  %s12 = ssub.s32 1, %s10
  %s13 = scalar_select 0, %s12, %s10
  $region1: #{tpu_custom_call.1} parent=0
    #allocation2 [shape = 'u8[32768]{0}', space=vmem, size = 0x8000, scoped, tag = 'input window, operand 0, single buffered']
    #allocation3 [shape = 's32[1]{0}', space=sflag, size = 0x4, scoped, tag = 'scoped memory for tpu_custom_call.1']
    #allocation4 [shape = 's32[1]{0}', space=sflag, size = 0x4, scoped, tag = 'scoped memory for tpu_custom_call.1']
    #allocation5 [shape = 'u8[524288]{0}', space=vmem, size = 0x80000, scoped, tag = 'input window, operand 1, single buffered']
    #allocation6 [shape = 's32[1]{0}', space=sflag, size = 0x4, scoped, tag = 'scoped memory for tpu_custom_call.1']
    #allocation7 [shape = 'u8[1024]{0}', space=vmem, size = 0x400, scoped, tag = 'input window, operand 2, single buffered']
    #allocation8 [shape = 'u8[131072]{0}', space=vmem, size = 0x20000, scoped, tag = 'input window, operand 3, single buffered']
    #allocation9 [shape = 's32[1]{0}', space=sflag, size = 0x4, scoped, tag = 'scoped memory for tpu_custom_call.1']
    #allocation10 [shape = 'u8[131072]{0}', space=vmem, size = 0x20000, scoped, tag = 'input window, operand 5, single buffered']
    #allocation11 [shape = 'u8[131072]{0}', space=vmem, size = 0x20000, scoped, tag = 'input window, operand 7, single buffered']
    #allocation12 [shape = 's32[1]{0}', space=sflag, size = 0x4, scoped, tag = 'scoped memory for tpu_custom_call.1']
    #allocation13 [shape = 'u8[8192]{0}', space=vmem, size = 0x2000, scoped, tag = 'output window, operand 0, single buffered']
    %14 = vsyncpa [#allocation3], 0
    %15 = vsyncpa [#allocation6], 0
    %16 = vsyncpa [#allocation9], 0
    %17 = vsyncpa [#allocation12], 0
    %18 = vsyncpa [#allocation4], 0
    // Predicated region
    $region2: #{tpu_custom_call.1} parent=1 // pred_check
      _
    $region3: #{tpu_custom_call.1} parent=1 // pred_check_branch
      %20 = sbr.rel (0) target = $region5
    $region4: #{tpu_custom_call.1} parent=1 // pred_region
      %22 = vsyncadd [#allocation3], 0
      %s23 = sshll.u32 %s0, 4
      %s24 = int_to_ptr.hbm [resolvable:$true] %s23
      %s25 = sshll.u32 [#allocation2], 4
      %s26 = int_to_ptr.vmem [resolvable:$true] %s25
      %31 = dma.hbm_to_vmem [thread:$0]  %s24, 1024, %s26, [#allocation3], 512, 512, 32
    $region5: #{tpu_custom_call.1} parent=1 // pred_fallthru
      _
    // Predicated region
    $region6: #{tpu_custom_call.1} parent=1 // pred_check
      _
    $region7: #{tpu_custom_call.1} parent=1 // pred_check_branch
      %33 = sbr.rel (0) target = $region9
    $region8: #{tpu_custom_call.1} parent=1 // pred_region
      %35 = vsyncadd [#allocation6], 0
      %s36 = sshll.u32 %s1, 4
      %s37 = int_to_ptr.hbm [resolvable:$true] %s36
      %s38 = sshll.u32 [#allocation5], 4
      %s39 = int_to_ptr.vmem [resolvable:$true] %s38
      %44 = dma.hbm_to_vmem [thread:$0]  %s37, 16384, %s39, [#allocation6], 128, 128, 8
    $region9: #{tpu_custom_call.1} parent=1 // pred_fallthru
      _
    // Predicated region
    $region10: #{tpu_custom_call.1} parent=1 // pred_check
      _
    $region11: #{tpu_custom_call.1} parent=1 // pred_check_branch
      %46 = sbr.rel (0) target = $region13
    $region12: #{tpu_custom_call.1} parent=1 // pred_region
      %48 = vsyncadd [#allocation6], 0
      %s50 = sshll.u32 %s2, 4
      %s51 = int_to_ptr.hbm [resolvable:$true] %s50
      %s52 = sshll.u32 [#allocation7], 4
      %s53 = int_to_ptr.vmem [resolvable:$true] %s52
      %55 = dma.hbm_to_vmem [thread:$0]  %s51, 32, %s53, [#allocation6]
    $region13: #{tpu_custom_call.1} parent=1 // pred_fallthru
      _
    // Predicated region
    $region14: #{tpu_custom_call.1} parent=1 // pred_check
      _
    $region15: #{tpu_custom_call.1} parent=1 // pred_check_branch
      %57 = sbr.rel (0) target = $region17
    $region16: #{tpu_custom_call.1} parent=1 // pred_region
      %59 = vsyncadd [#allocation9], 0
      %s60 = sshll.u32 %s3, 4
      %s61 = int_to_ptr.hbm [resolvable:$true] %s60
      %s62 = sshll.u32 [#allocation8], 4
      %s63 = int_to_ptr.vmem [resolvable:$true] %s62
      %68 = dma.hbm_to_vmem [thread:$0]  %s61, 4096, %s63, [#allocation9], 128, 128, 8
    $region17: #{tpu_custom_call.1} parent=1 // pred_fallthru
      _
    // Predicated region
    $region18: #{tpu_custom_call.1} parent=1 // pred_check
      _
    $region19: #{tpu_custom_call.1} parent=1 // pred_check_branch
      %70 = sbr.rel (0) target = $region21
    $region20: #{tpu_custom_call.1} parent=1 // pred_region
      _
    $region21: #{tpu_custom_call.1} parent=1 // pred_fallthru
      _
    // Predicated region
    $region22: #{tpu_custom_call.1} parent=1 // pred_check
      _
    $region23: #{tpu_custom_call.1} parent=1 // pred_check_branch
      %72 = sbr.rel (0) target = $region25
    $region24: #{tpu_custom_call.1} parent=1 // pred_region
      %74 = vsyncadd [#allocation9], 0
      %s75 = sshll.u32 %s5, 4
      %s76 = int_to_ptr.hbm [resolvable:$true] %s75
      %s77 = sshll.u32 [#allocation10], 4
      %s78 = int_to_ptr.vmem [resolvable:$true] %s77
      %83 = dma.hbm_to_vmem [thread:$0]  %s76, 4096, %s78, [#allocation9], 128, 128, 8
    $region25: #{tpu_custom_call.1} parent=1 // pred_fallthru
      _
    // Predicated region
    $region26: #{tpu_custom_call.1} parent=1 // pred_check
      _
    $region27: #{tpu_custom_call.1} parent=1 // pred_check_branch
      %85 = sbr.rel (0) target = $region29
    $region28: #{tpu_custom_call.1} parent=1 // pred_region
      _
    $region29: #{tpu_custom_call.1} parent=1 // pred_fallthru
      _
    // Predicated region
    $region30: #{tpu_custom_call.1} parent=1 // pred_check
      _
    $region31: #{tpu_custom_call.1} parent=1 // pred_check_branch
      %87 = sbr.rel (0) target = $region33
    $region32: #{tpu_custom_call.1} parent=1 // pred_region
      %89 = vsyncadd [#allocation12], 0
      %s90 = sshll.u32 %s7, 4
      %s91 = int_to_ptr.hbm [resolvable:$true] %s90
      %s92 = sshll.u32 [#allocation11], 4
      %s93 = int_to_ptr.vmem [resolvable:$true] %s92
      %98 = dma.hbm_to_vmem [thread:$0]  %s91, 4096, %s93, [#allocation12], 128, 128, 8
    $region33: #{tpu_custom_call.1} parent=1 // pred_fallthru
      _
    // Predicated region
    $region34: #{tpu_custom_call.1} parent=1 // pred_check
      _
    $region35: #{tpu_custom_call.1} parent=1 // pred_check_branch
      %100 = sbr.rel (0) target = $region37
    $region36: #{tpu_custom_call.1} parent=1 // pred_region
      _
    $region37: #{tpu_custom_call.1} parent=1 // pred_fallthru
      _
    // Predicated region
    $region38: #{tpu_custom_call.1} parent=1 // pred_check
      _
    $region39: #{tpu_custom_call.1} parent=1 // pred_check_branch
      %102 = sbr.rel (0) target = $region41
    $region40: #{tpu_custom_call.1} parent=1 // pred_region
      %104 = dma.done [#allocation3], 1024
    $region41: #{tpu_custom_call.1} parent=1 // pred_fallthru
      _
    // Predicated region
    $region42: #{tpu_custom_call.1} parent=1 // pred_check
      _
    $region43: #{tpu_custom_call.1} parent=1 // pred_check_branch
      %106 = sbr.rel (0) target = $region45
    $region44: #{tpu_custom_call.1} parent=1 // pred_region
      %108 = dma.done [#allocation6], 16384
    $region45: #{tpu_custom_call.1} parent=1 // pred_fallthru
      _
    // Predicated region
    $region46: #{tpu_custom_call.1} parent=1 // pred_check
      _
    $region47: #{tpu_custom_call.1} parent=1 // pred_check_branch
      %110 = sbr.rel (0) target = $region49
    $region48: #{tpu_custom_call.1} parent=1 // pred_region
      %112 = dma.done [#allocation6], 32
    $region49: #{tpu_custom_call.1} parent=1 // pred_fallthru
      _
    // Predicated region
    $region50: #{tpu_custom_call.1} parent=1 // pred_check
      _
    $region51: #{tpu_custom_call.1} parent=1 // pred_check_branch
      %114 = sbr.rel (0) target = $region53
    $region52: #{tpu_custom_call.1} parent=1 // pred_region
      %116 = dma.done [#allocation9], 4096
    $region53: #{tpu_custom_call.1} parent=1 // pred_fallthru
      _
    // Predicated region
    $region54: #{tpu_custom_call.1} parent=1 // pred_check
      _
    $region55: #{tpu_custom_call.1} parent=1 // pred_check_branch
      %118 = sbr.rel (0) target = $region57
    $region56: #{tpu_custom_call.1} parent=1 // pred_region
      %120 = dma.done [#allocation9], 4096
    $region57: #{tpu_custom_call.1} parent=1 // pred_fallthru
      _
    // Predicated region
    $region58: #{tpu_custom_call.1} parent=1 // pred_check
      _
    $region59: #{tpu_custom_call.1} parent=1 // pred_check_branch
      %122 = sbr.rel (0) target = $region61
    $region60: #{tpu_custom_call.1} parent=1 // pred_region
      %124 = dma.done [#allocation12], 4096
    $region61: #{tpu_custom_call.1} parent=1 // pred_fallthru
      _
    %v125 = vld [vmem:[#allocation2] sm:$0xff]
    %v126 = vld [vmem:[#allocation2 + $0x8] sm:$0xff]
    %v127 = vld [vmem:[#allocation2 + $0x10] sm:$0xff]
    %v128 = vld [vmem:[#allocation2 + $0x18] sm:$0xff]
    %v129 = vld [vmem:[#allocation2 + $0x20] sm:$0xff]
    %v130 = vld [vmem:[#allocation2 + $0x28] sm:$0xff]
    %v131 = vld [vmem:[#allocation2 + $0x30] sm:$0xff]
    %v132 = vld [vmem:[#allocation2 + $0x38] sm:$0xff]
    %v133 = vld [vmem:[#allocation5] sm:$0xff]
    %v134 = vld [vmem:[#allocation5 + $0x8] sm:$0xff]
    %v135 = vld [vmem:[#allocation5 + $0x10] sm:$0xff]
    %v136 = vld [vmem:[#allocation5 + $0x18] sm:$0xff]
    %v137 = vld [vmem:[#allocation5 + $0x20] sm:$0xff]
    %v138 = vld [vmem:[#allocation5 + $0x28] sm:$0xff]
    %v139 = vld [vmem:[#allocation5 + $0x30] sm:$0xff]
    %v140 = vld [vmem:[#allocation5 + $0x38] sm:$0xff]
    %v141 = vld [vmem:[#allocation5 + $0x40] sm:$0xff]
    %v142 = vld [vmem:[#allocation5 + $0x48] sm:$0xff]
    %v143 = vld [vmem:[#allocation5 + $0x50] sm:$0xff]
    %v144 = vld [vmem:[#allocation5 + $0x58] sm:$0xff]
    %v145 = vld [vmem:[#allocation5 + $0x60] sm:$0xff]
    %v146 = vld [vmem:[#allocation5 + $0x68] sm:$0xff]
    %v147 = vld [vmem:[#allocation5 + $0x70] sm:$0xff]
    %v148 = vld [vmem:[#allocation5 + $0x78] sm:$0xff]
    %v149 = vld [vmem:[#allocation5 + $0x80] sm:$0xff]
    %v150 = vld [vmem:[#allocation5 + $0x88] sm:$0xff]
    %v151 = vld [vmem:[#allocation5 + $0x90] sm:$0xff]
    %v152 = vld [vmem:[#allocation5 + $0x98] sm:$0xff]
    %v153 = vld [vmem:[#allocation5 + $0xa0] sm:$0xff]
    %v154 = vld [vmem:[#allocation5 + $0xa8] sm:$0xff]
    %v155 = vld [vmem:[#allocation5 + $0xb0] sm:$0xff]
    %v156 = vld [vmem:[#allocation5 + $0xb8] sm:$0xff]
    %v157 = vld [vmem:[#allocation5 + $0xc0] sm:$0xff]
    %v158 = vld [vmem:[#allocation5 + $0xc8] sm:$0xff]
    %v159 = vld [vmem:[#allocation5 + $0xd0] sm:$0xff]
    %v160 = vld [vmem:[#allocation5 + $0xd8] sm:$0xff]
    %v161 = vld [vmem:[#allocation5 + $0xe0] sm:$0xff]
    %v162 = vld [vmem:[#allocation5 + $0xe8] sm:$0xff]
    %v163 = vld [vmem:[#allocation5 + $0xf0] sm:$0xff]
    %v164 = vld [vmem:[#allocation5 + $0xf8] sm:$0xff]
    %v165 = vld [vmem:[#allocation5 + $0x100] sm:$0xff]
    %v166 = vld [vmem:[#allocation5 + $0x108] sm:$0xff]
    %v167 = vld [vmem:[#allocation5 + $0x110] sm:$0xff]
    %v168 = vld [vmem:[#allocation5 + $0x118] sm:$0xff]
    %v169 = vld [vmem:[#allocation5 + $0x120] sm:$0xff]
    %v170 = vld [vmem:[#allocation5 + $0x128] sm:$0xff]
    %v171 = vld [vmem:[#allocation5 + $0x130] sm:$0xff]
    %v172 = vld [vmem:[#allocation5 + $0x138] sm:$0xff]
    %v173 = vld [vmem:[#allocation5 + $0x140] sm:$0xff]
    %v174 = vld [vmem:[#allocation5 + $0x148] sm:$0xff]
    %v175 = vld [vmem:[#allocation5 + $0x150] sm:$0xff]
    %v176 = vld [vmem:[#allocation5 + $0x158] sm:$0xff]
    %v177 = vld [vmem:[#allocation5 + $0x160] sm:$0xff]
    %v178 = vld [vmem:[#allocation5 + $0x168] sm:$0xff]
    %v179 = vld [vmem:[#allocation5 + $0x170] sm:$0xff]
    %v180 = vld [vmem:[#allocation5 + $0x178] sm:$0xff]
    %v181 = vld [vmem:[#allocation5 + $0x180] sm:$0xff]
    %v182 = vld [vmem:[#allocation5 + $0x188] sm:$0xff]
    %v183 = vld [vmem:[#allocation5 + $0x190] sm:$0xff]
    %v184 = vld [vmem:[#allocation5 + $0x198] sm:$0xff]
    %v185 = vld [vmem:[#allocation5 + $0x1a0] sm:$0xff]
    %v186 = vld [vmem:[#allocation5 + $0x1a8] sm:$0xff]
    %v187 = vld [vmem:[#allocation5 + $0x1b0] sm:$0xff]
    %v188 = vld [vmem:[#allocation5 + $0x1b8] sm:$0xff]
    %v189 = vld [vmem:[#allocation5 + $0x1c0] sm:$0xff]
    %v190 = vld [vmem:[#allocation5 + $0x1c8] sm:$0xff]
    %v191 = vld [vmem:[#allocation5 + $0x1d0] sm:$0xff]
    %v192 = vld [vmem:[#allocation5 + $0x1d8] sm:$0xff]
    %v193 = vld [vmem:[#allocation5 + $0x1e0] sm:$0xff]
    %v194 = vld [vmem:[#allocation5 + $0x1e8] sm:$0xff]
    %v195 = vld [vmem:[#allocation5 + $0x1f0] sm:$0xff]
    %v196 = vld [vmem:[#allocation5 + $0x1f8] sm:$0xff]
    %v197 = vld [vmem:[#allocation5 + $0x200] sm:$0xff]
    %v198 = vld [vmem:[#allocation5 + $0x208] sm:$0xff]
    %v199 = vld [vmem:[#allocation5 + $0x210] sm:$0xff]
    %v200 = vld [vmem:[#allocation5 + $0x218] sm:$0xff]
    %v201 = vld [vmem:[#allocation5 + $0x220] sm:$0xff]
    %v202 = vld [vmem:[#allocation5 + $0x228] sm:$0xff]
    %v203 = vld [vmem:[#allocation5 + $0x230] sm:$0xff]
    %v204 = vld [vmem:[#allocation5 + $0x238] sm:$0xff]
    %v205 = vld [vmem:[#allocation5 + $0x240] sm:$0xff]
    %v206 = vld [vmem:[#allocation5 + $0x248] sm:$0xff]
    %v207 = vld [vmem:[#allocation5 + $0x250] sm:$0xff]
    %v208 = vld [vmem:[#allocation5 + $0x258] sm:$0xff]
    %v209 = vld [vmem:[#allocation5 + $0x260] sm:$0xff]
    %v210 = vld [vmem:[#allocation5 + $0x268] sm:$0xff]
    %v211 = vld [vmem:[#allocation5 + $0x270] sm:$0xff]
    %v212 = vld [vmem:[#allocation5 + $0x278] sm:$0xff]
    %v213 = vld [vmem:[#allocation5 + $0x280] sm:$0xff]
    %v214 = vld [vmem:[#allocation5 + $0x288] sm:$0xff]
    %v215 = vld [vmem:[#allocation5 + $0x290] sm:$0xff]
    %v216 = vld [vmem:[#allocation5 + $0x298] sm:$0xff]
    %v217 = vld [vmem:[#allocation5 + $0x2a0] sm:$0xff]
    %v218 = vld [vmem:[#allocation5 + $0x2a8] sm:$0xff]
    %v219 = vld [vmem:[#allocation5 + $0x2b0] sm:$0xff]
    %v220 = vld [vmem:[#allocation5 + $0x2b8] sm:$0xff]
    %v221 = vld [vmem:[#allocation5 + $0x2c0] sm:$0xff]
    %v222 = vld [vmem:[#allocation5 + $0x2c8] sm:$0xff]
    %v223 = vld [vmem:[#allocation5 + $0x2d0] sm:$0xff]
    %v224 = vld [vmem:[#allocation5 + $0x2d8] sm:$0xff]
    %v225 = vld [vmem:[#allocation5 + $0x2e0] sm:$0xff]
    %v226 = vld [vmem:[#allocation5 + $0x2e8] sm:$0xff]
    %v227 = vld [vmem:[#allocation5 + $0x2f0] sm:$0xff]
    %v228 = vld [vmem:[#allocation5 + $0x2f8] sm:$0xff]
    %v229 = vld [vmem:[#allocation5 + $0x300] sm:$0xff]
    %v230 = vld [vmem:[#allocation5 + $0x308] sm:$0xff]
    %v231 = vld [vmem:[#allocation5 + $0x310] sm:$0xff]
    %v232 = vld [vmem:[#allocation5 + $0x318] sm:$0xff]
    %v233 = vld [vmem:[#allocation5 + $0x320] sm:$0xff]
    %v234 = vld [vmem:[#allocation5 + $0x328] sm:$0xff]
    %v235 = vld [vmem:[#allocation5 + $0x330] sm:$0xff]
    %v236 = vld [vmem:[#allocation5 + $0x338] sm:$0xff]
    %v237 = vld [vmem:[#allocation5 + $0x340] sm:$0xff]
    %v238 = vld [vmem:[#allocation5 + $0x348] sm:$0xff]
    %v239 = vld [vmem:[#allocation5 + $0x350] sm:$0xff]
    %v240 = vld [vmem:[#allocation5 + $0x358] sm:$0xff]
    %v241 = vld [vmem:[#allocation5 + $0x360] sm:$0xff]
    %v242 = vld [vmem:[#allocation5 + $0x368] sm:$0xff]
    %v243 = vld [vmem:[#allocation5 + $0x370] sm:$0xff]
    %v244 = vld [vmem:[#allocation5 + $0x378] sm:$0xff]
    %v245 = vld [vmem:[#allocation5 + $0x380] sm:$0xff]
    %v246 = vld [vmem:[#allocation5 + $0x388] sm:$0xff]
    %v247 = vld [vmem:[#allocation5 + $0x390] sm:$0xff]
    %v248 = vld [vmem:[#allocation5 + $0x398] sm:$0xff]
    %v249 = vld [vmem:[#allocation5 + $0x3a0] sm:$0xff]
    %v250 = vld [vmem:[#allocation5 + $0x3a8] sm:$0xff]
    %v251 = vld [vmem:[#allocation5 + $0x3b0] sm:$0xff]
    %v252 = vld [vmem:[#allocation5 + $0x3b8] sm:$0xff]
    %v253 = vld [vmem:[#allocation5 + $0x3c0] sm:$0xff]
    %v254 = vld [vmem:[#allocation5 + $0x3c8] sm:$0xff]
    %v255 = vld [vmem:[#allocation5 + $0x3d0] sm:$0xff]
    %v256 = vld [vmem:[#allocation5 + $0x3d8] sm:$0xff]
    %v257 = vld [vmem:[#allocation5 + $0x3e0] sm:$0xff]
    %v258 = vld [vmem:[#allocation5 + $0x3e8] sm:$0xff]
    %v259 = vld [vmem:[#allocation5 + $0x3f0] sm:$0xff]
    %v260 = vld [vmem:[#allocation5 + $0x3f8] sm:$0xff]
    %v261 = vld [vmem:[#allocation7] sm:$0x3]
    %v263 = vperm.slane %v261, 0
    %v264 = vperm.slane %v261, 1
    %v275 = vunpack.c.l.b16 %v125
    %v276 = vunpack.c.h.b16 %v125
    %v277 = vunpack.c.l.b16 %v126
    %v278 = vunpack.c.h.b16 %v126
    %v279 = vunpack.c.l.b16 %v127
    %v280 = vunpack.c.h.b16 %v127
    %v281 = vunpack.c.l.b16 %v128
    %v282 = vunpack.c.h.b16 %v128
    %v283 = vunpack.c.l.b16 %v129
    %v284 = vunpack.c.h.b16 %v129
    %v285 = vunpack.c.l.b16 %v130
    %v286 = vunpack.c.h.b16 %v130
    %v287 = vunpack.c.l.b16 %v131
    %v288 = vunpack.c.h.b16 %v131
    %v289 = vunpack.c.l.b16 %v132
    %v290 = vunpack.c.h.b16 %v132
    %v291 = vpack.c.b16 %v283, %v275
    %v292 = vpack.c.b16 %v284, %v276
    %v293 = vpack.c.b16 %v285, %v277
    %v294 = vpack.c.b16 %v286, %v278
    %v295 = vpack.c.b16 %v287, %v279
    %v296 = vpack.c.b16 %v288, %v280
    %v297 = vpack.c.b16 %v289, %v281
    %v298 = vpack.c.b16 %v290, %v282
    %v435 = vunpack.c.l.b16 %v133
    %v436 = vunpack.c.h.b16 %v133
    %v437 = vunpack.c.l.b16 %v134
    %v438 = vunpack.c.h.b16 %v134
    %v439 = vunpack.c.l.b16 %v135
    %v440 = vunpack.c.h.b16 %v135
    %v441 = vunpack.c.l.b16 %v136
    %v442 = vunpack.c.h.b16 %v136
    %v443 = vunpack.c.l.b16 %v137
    %v444 = vunpack.c.h.b16 %v137
    %v445 = vunpack.c.l.b16 %v138
    %v446 = vunpack.c.h.b16 %v138
    %v447 = vunpack.c.l.b16 %v139
    %v448 = vunpack.c.h.b16 %v139
    %v449 = vunpack.c.l.b16 %v140
    %v450 = vunpack.c.h.b16 %v140
    %v451 = vunpack.c.l.b16 %v141
    %v452 = vunpack.c.h.b16 %v141
    %v453 = vunpack.c.l.b16 %v142
    %v454 = vunpack.c.h.b16 %v142
    %v455 = vunpack.c.l.b16 %v143
    %v456 = vunpack.c.h.b16 %v143
    %v457 = vunpack.c.l.b16 %v144
    %v458 = vunpack.c.h.b16 %v144
    %v459 = vunpack.c.l.b16 %v145
    %v460 = vunpack.c.h.b16 %v145
    %v461 = vunpack.c.l.b16 %v146
    %v462 = vunpack.c.h.b16 %v146
    %v463 = vunpack.c.l.b16 %v147
    %v464 = vunpack.c.h.b16 %v147
    %v465 = vunpack.c.l.b16 %v148
    %v466 = vunpack.c.h.b16 %v148
    %v467 = vunpack.c.l.b16 %v149
    %v468 = vunpack.c.h.b16 %v149
    %v469 = vunpack.c.l.b16 %v150
    %v470 = vunpack.c.h.b16 %v150
    %v471 = vunpack.c.l.b16 %v151
    %v472 = vunpack.c.h.b16 %v151
    %v473 = vunpack.c.l.b16 %v152
    %v474 = vunpack.c.h.b16 %v152
    %v475 = vunpack.c.l.b16 %v153
    %v476 = vunpack.c.h.b16 %v153
    %v477 = vunpack.c.l.b16 %v154
    %v478 = vunpack.c.h.b16 %v154
    %v479 = vunpack.c.l.b16 %v155
    %v480 = vunpack.c.h.b16 %v155
    %v481 = vunpack.c.l.b16 %v156
    %v482 = vunpack.c.h.b16 %v156
    %v483 = vunpack.c.l.b16 %v157
    %v484 = vunpack.c.h.b16 %v157
    %v485 = vunpack.c.l.b16 %v158
    %v486 = vunpack.c.h.b16 %v158
    %v487 = vunpack.c.l.b16 %v159
    %v488 = vunpack.c.h.b16 %v159
    %v489 = vunpack.c.l.b16 %v160
    %v490 = vunpack.c.h.b16 %v160
    %v491 = vunpack.c.l.b16 %v161
    %v492 = vunpack.c.h.b16 %v161
    %v493 = vunpack.c.l.b16 %v162
    %v494 = vunpack.c.h.b16 %v162
    %v495 = vunpack.c.l.b16 %v163
    %v496 = vunpack.c.h.b16 %v163
    %v497 = vunpack.c.l.b16 %v164
    %v498 = vunpack.c.h.b16 %v164
    %v499 = vunpack.c.l.b16 %v165
    %v500 = vunpack.c.h.b16 %v165
    %v501 = vunpack.c.l.b16 %v166
    %v502 = vunpack.c.h.b16 %v166
    %v503 = vunpack.c.l.b16 %v167
    %v504 = vunpack.c.h.b16 %v167
    %v505 = vunpack.c.l.b16 %v168
    %v506 = vunpack.c.h.b16 %v168
    %v507 = vunpack.c.l.b16 %v169
    %v508 = vunpack.c.h.b16 %v169
    %v509 = vunpack.c.l.b16 %v170
    %v510 = vunpack.c.h.b16 %v170
    %v511 = vunpack.c.l.b16 %v171
    %v512 = vunpack.c.h.b16 %v171
    %v513 = vunpack.c.l.b16 %v172
    %v514 = vunpack.c.h.b16 %v172
    %v515 = vunpack.c.l.b16 %v173
    %v516 = vunpack.c.h.b16 %v173
    %v517 = vunpack.c.l.b16 %v174
    %v518 = vunpack.c.h.b16 %v174
    %v519 = vunpack.c.l.b16 %v175
    %v520 = vunpack.c.h.b16 %v175
    %v521 = vunpack.c.l.b16 %v176
    %v522 = vunpack.c.h.b16 %v176
    %v523 = vunpack.c.l.b16 %v177
    %v524 = vunpack.c.h.b16 %v177
    %v525 = vunpack.c.l.b16 %v178
    %v526 = vunpack.c.h.b16 %v178
    %v527 = vunpack.c.l.b16 %v179
    %v528 = vunpack.c.h.b16 %v179
    %v529 = vunpack.c.l.b16 %v180
    %v530 = vunpack.c.h.b16 %v180
    %v531 = vunpack.c.l.b16 %v181
    %v532 = vunpack.c.h.b16 %v181
    %v533 = vunpack.c.l.b16 %v182
    %v534 = vunpack.c.h.b16 %v182
    %v535 = vunpack.c.l.b16 %v183
    %v536 = vunpack.c.h.b16 %v183
    %v537 = vunpack.c.l.b16 %v184
    %v538 = vunpack.c.h.b16 %v184
    %v539 = vunpack.c.l.b16 %v185
    %v540 = vunpack.c.h.b16 %v185
    %v541 = vunpack.c.l.b16 %v186
    %v542 = vunpack.c.h.b16 %v186
    %v543 = vunpack.c.l.b16 %v187
    %v544 = vunpack.c.h.b16 %v187
    %v545 = vunpack.c.l.b16 %v188
    %v546 = vunpack.c.h.b16 %v188
    %v547 = vunpack.c.l.b16 %v189
    %v548 = vunpack.c.h.b16 %v189
    %v549 = vunpack.c.l.b16 %v190
    %v550 = vunpack.c.h.b16 %v190
    %v551 = vunpack.c.l.b16 %v191
    %v552 = vunpack.c.h.b16 %v191
    %v553 = vunpack.c.l.b16 %v192
    %v554 = vunpack.c.h.b16 %v192
    %v555 = vunpack.c.l.b16 %v193
    %v556 = vunpack.c.h.b16 %v193
    %v557 = vunpack.c.l.b16 %v194
    %v558 = vunpack.c.h.b16 %v194
    %v559 = vunpack.c.l.b16 %v195
    %v560 = vunpack.c.h.b16 %v195
    %v561 = vunpack.c.l.b16 %v196
    %v562 = vunpack.c.h.b16 %v196
    %v563 = vunpack.c.l.b16 %v197
    %v564 = vunpack.c.h.b16 %v197
    %v565 = vunpack.c.l.b16 %v198
    %v566 = vunpack.c.h.b16 %v198
    %v567 = vunpack.c.l.b16 %v199
    %v568 = vunpack.c.h.b16 %v199
    %v569 = vunpack.c.l.b16 %v200
    %v570 = vunpack.c.h.b16 %v200
    %v571 = vunpack.c.l.b16 %v201
    %v572 = vunpack.c.h.b16 %v201
    %v573 = vunpack.c.l.b16 %v202
    %v574 = vunpack.c.h.b16 %v202
    %v575 = vunpack.c.l.b16 %v203
    %v576 = vunpack.c.h.b16 %v203
    %v577 = vunpack.c.l.b16 %v204
    %v578 = vunpack.c.h.b16 %v204
    %v579 = vunpack.c.l.b16 %v205
    %v580 = vunpack.c.h.b16 %v205
    %v581 = vunpack.c.l.b16 %v206
    %v582 = vunpack.c.h.b16 %v206
    %v583 = vunpack.c.l.b16 %v207
    %v584 = vunpack.c.h.b16 %v207
    %v585 = vunpack.c.l.b16 %v208
    %v586 = vunpack.c.h.b16 %v208
    %v587 = vunpack.c.l.b16 %v209
    %v588 = vunpack.c.h.b16 %v209
    %v589 = vunpack.c.l.b16 %v210
    %v590 = vunpack.c.h.b16 %v210
    %v591 = vunpack.c.l.b16 %v211
    %v592 = vunpack.c.h.b16 %v211
    %v593 = vunpack.c.l.b16 %v212
    %v594 = vunpack.c.h.b16 %v212
    %v595 = vunpack.c.l.b16 %v213
    %v596 = vunpack.c.h.b16 %v213
    %v597 = vunpack.c.l.b16 %v214
    %v598 = vunpack.c.h.b16 %v214
    %v599 = vunpack.c.l.b16 %v215
    %v600 = vunpack.c.h.b16 %v215
    %v601 = vunpack.c.l.b16 %v216
    %v602 = vunpack.c.h.b16 %v216
    %v603 = vunpack.c.l.b16 %v217
    %v604 = vunpack.c.h.b16 %v217
    %v605 = vunpack.c.l.b16 %v218
    %v606 = vunpack.c.h.b16 %v218
    %v607 = vunpack.c.l.b16 %v219
    %v608 = vunpack.c.h.b16 %v219
    %v609 = vunpack.c.l.b16 %v220
    %v610 = vunpack.c.h.b16 %v220
    %v611 = vunpack.c.l.b16 %v221
    %v612 = vunpack.c.h.b16 %v221
    %v613 = vunpack.c.l.b16 %v222
    %v614 = vunpack.c.h.b16 %v222
    %v615 = vunpack.c.l.b16 %v223
    %v616 = vunpack.c.h.b16 %v223
    %v617 = vunpack.c.l.b16 %v224
    %v618 = vunpack.c.h.b16 %v224
    %v619 = vunpack.c.l.b16 %v225
    %v620 = vunpack.c.h.b16 %v225
    %v621 = vunpack.c.l.b16 %v226
    %v622 = vunpack.c.h.b16 %v226
    %v623 = vunpack.c.l.b16 %v227
    %v624 = vunpack.c.h.b16 %v227
    %v625 = vunpack.c.l.b16 %v228
    %v626 = vunpack.c.h.b16 %v228
    %v627 = vunpack.c.l.b16 %v229
    %v628 = vunpack.c.h.b16 %v229
    %v629 = vunpack.c.l.b16 %v230
    %v630 = vunpack.c.h.b16 %v230
    %v631 = vunpack.c.l.b16 %v231
    %v632 = vunpack.c.h.b16 %v231
    %v633 = vunpack.c.l.b16 %v232
    %v634 = vunpack.c.h.b16 %v232
    %v635 = vunpack.c.l.b16 %v233
    %v636 = vunpack.c.h.b16 %v233
    %v637 = vunpack.c.l.b16 %v234
    %v638 = vunpack.c.h.b16 %v234
    %v639 = vunpack.c.l.b16 %v235
    %v640 = vunpack.c.h.b16 %v235
    %v641 = vunpack.c.l.b16 %v236
    %v642 = vunpack.c.h.b16 %v236
    %v643 = vunpack.c.l.b16 %v237
    %v644 = vunpack.c.h.b16 %v237
    %v645 = vunpack.c.l.b16 %v238
    %v646 = vunpack.c.h.b16 %v238
    %v647 = vunpack.c.l.b16 %v239
    %v648 = vunpack.c.h.b16 %v239
    %v649 = vunpack.c.l.b16 %v240
    %v650 = vunpack.c.h.b16 %v240
    %v651 = vunpack.c.l.b16 %v241
    %v652 = vunpack.c.h.b16 %v241
    %v653 = vunpack.c.l.b16 %v242
    %v654 = vunpack.c.h.b16 %v242
    %v655 = vunpack.c.l.b16 %v243
    %v656 = vunpack.c.h.b16 %v243
    %v657 = vunpack.c.l.b16 %v244
    %v658 = vunpack.c.h.b16 %v244
    %v659 = vunpack.c.l.b16 %v245
    %v660 = vunpack.c.h.b16 %v245
    %v661 = vunpack.c.l.b16 %v246
    %v662 = vunpack.c.h.b16 %v246
    %v663 = vunpack.c.l.b16 %v247
    %v664 = vunpack.c.h.b16 %v247
    %v665 = vunpack.c.l.b16 %v248
    %v666 = vunpack.c.h.b16 %v248
    %v667 = vunpack.c.l.b16 %v249
    %v668 = vunpack.c.h.b16 %v249
    %v669 = vunpack.c.l.b16 %v250
    %v670 = vunpack.c.h.b16 %v250
    %v671 = vunpack.c.l.b16 %v251
    %v672 = vunpack.c.h.b16 %v251
    %v673 = vunpack.c.l.b16 %v252
    %v674 = vunpack.c.h.b16 %v252
    %v675 = vunpack.c.l.b16 %v253
    %v676 = vunpack.c.h.b16 %v253
    %v677 = vunpack.c.l.b16 %v254
    %v678 = vunpack.c.h.b16 %v254
    %v679 = vunpack.c.l.b16 %v255
    %v680 = vunpack.c.h.b16 %v255
    %v681 = vunpack.c.l.b16 %v256
    %v682 = vunpack.c.h.b16 %v256
    %v683 = vunpack.c.l.b16 %v257
    %v684 = vunpack.c.h.b16 %v257
    %v685 = vunpack.c.l.b16 %v258
    %v686 = vunpack.c.h.b16 %v258
    %v687 = vunpack.c.l.b16 %v259
    %v688 = vunpack.c.h.b16 %v259
    %v689 = vunpack.c.l.b16 %v260
    %v690 = vunpack.c.h.b16 %v260
    %v691 = vpack.c.b16 %v437, %v435
    %v692 = vpack.c.b16 %v438, %v436
    %v693 = vpack.c.b16 %v441, %v439
    %v694 = vpack.c.b16 %v442, %v440
    %v695 = vpack.c.b16 %v445, %v443
    %v696 = vpack.c.b16 %v446, %v444
    %v697 = vpack.c.b16 %v449, %v447
    %v698 = vpack.c.b16 %v450, %v448
    %v699 = vpack.c.b16 %v453, %v451
    %v700 = vpack.c.b16 %v454, %v452
    %v701 = vpack.c.b16 %v457, %v455
    %v702 = vpack.c.b16 %v458, %v456
    %v703 = vpack.c.b16 %v461, %v459
    %v704 = vpack.c.b16 %v462, %v460
    %v705 = vpack.c.b16 %v465, %v463
    %v706 = vpack.c.b16 %v466, %v464
    %v707 = vpack.c.b16 %v469, %v467
    %v708 = vpack.c.b16 %v470, %v468
    %v709 = vpack.c.b16 %v473, %v471
    %v710 = vpack.c.b16 %v474, %v472
    %v711 = vpack.c.b16 %v477, %v475
    %v712 = vpack.c.b16 %v478, %v476
    %v713 = vpack.c.b16 %v481, %v479
    %v714 = vpack.c.b16 %v482, %v480
    %v715 = vpack.c.b16 %v485, %v483
    %v716 = vpack.c.b16 %v486, %v484
    %v717 = vpack.c.b16 %v489, %v487
    %v718 = vpack.c.b16 %v490, %v488
    %v719 = vpack.c.b16 %v493, %v491
    %v720 = vpack.c.b16 %v494, %v492
    %v721 = vpack.c.b16 %v497, %v495
    %v722 = vpack.c.b16 %v498, %v496
    %v723 = vpack.c.b16 %v501, %v499
    %v724 = vpack.c.b16 %v502, %v500
    %v725 = vpack.c.b16 %v505, %v503
    %v726 = vpack.c.b16 %v506, %v504
    %v727 = vpack.c.b16 %v509, %v507
    %v728 = vpack.c.b16 %v510, %v508
    %v729 = vpack.c.b16 %v513, %v511
    %v730 = vpack.c.b16 %v514, %v512
    %v731 = vpack.c.b16 %v517, %v515
    %v732 = vpack.c.b16 %v518, %v516
    %v733 = vpack.c.b16 %v521, %v519
    %v734 = vpack.c.b16 %v522, %v520
    %v735 = vpack.c.b16 %v525, %v523
    %v736 = vpack.c.b16 %v526, %v524
    %v737 = vpack.c.b16 %v529, %v527
    %v738 = vpack.c.b16 %v530, %v528
    %v739 = vpack.c.b16 %v533, %v531
    %v740 = vpack.c.b16 %v534, %v532
    %v741 = vpack.c.b16 %v537, %v535
    %v742 = vpack.c.b16 %v538, %v536
    %v743 = vpack.c.b16 %v541, %v539
    %v744 = vpack.c.b16 %v542, %v540
    %v745 = vpack.c.b16 %v545, %v543
    %v746 = vpack.c.b16 %v546, %v544
    %v747 = vpack.c.b16 %v549, %v547
    %v748 = vpack.c.b16 %v550, %v548
    %v749 = vpack.c.b16 %v553, %v551
    %v750 = vpack.c.b16 %v554, %v552
    %v751 = vpack.c.b16 %v557, %v555
    %v752 = vpack.c.b16 %v558, %v556
    %v753 = vpack.c.b16 %v561, %v559
    %v754 = vpack.c.b16 %v562, %v560
    %v755 = vpack.c.b16 %v565, %v563
    %v756 = vpack.c.b16 %v566, %v564
    %v757 = vpack.c.b16 %v569, %v567
    %v758 = vpack.c.b16 %v570, %v568
    %v759 = vpack.c.b16 %v573, %v571
    %v760 = vpack.c.b16 %v574, %v572
    %v761 = vpack.c.b16 %v577, %v575
    %v762 = vpack.c.b16 %v578, %v576
    %v763 = vpack.c.b16 %v581, %v579
    %v764 = vpack.c.b16 %v582, %v580
    %v765 = vpack.c.b16 %v585, %v583
    %v766 = vpack.c.b16 %v586, %v584
    %v767 = vpack.c.b16 %v589, %v587
    %v768 = vpack.c.b16 %v590, %v588
    %v769 = vpack.c.b16 %v593, %v591
    %v770 = vpack.c.b16 %v594, %v592
    %v771 = vpack.c.b16 %v597, %v595
    %v772 = vpack.c.b16 %v598, %v596
    %v773 = vpack.c.b16 %v601, %v599
    %v774 = vpack.c.b16 %v602, %v600
    %v775 = vpack.c.b16 %v605, %v603
    %v776 = vpack.c.b16 %v606, %v604
    %v777 = vpack.c.b16 %v609, %v607
    %v778 = vpack.c.b16 %v610, %v608
    %v779 = vpack.c.b16 %v613, %v611
    %v780 = vpack.c.b16 %v614, %v612
    %v781 = vpack.c.b16 %v617, %v615
    %v782 = vpack.c.b16 %v618, %v616
    %v783 = vpack.c.b16 %v621, %v619
    %v784 = vpack.c.b16 %v622, %v620
    %v785 = vpack.c.b16 %v625, %v623
    %v786 = vpack.c.b16 %v626, %v624
    %v787 = vpack.c.b16 %v629, %v627
    %v788 = vpack.c.b16 %v630, %v628
    %v789 = vpack.c.b16 %v633, %v631
    %v790 = vpack.c.b16 %v634, %v632
    %v791 = vpack.c.b16 %v637, %v635
    %v792 = vpack.c.b16 %v638, %v636
    %v793 = vpack.c.b16 %v641, %v639
    %v794 = vpack.c.b16 %v642, %v640
    %v795 = vpack.c.b16 %v645, %v643
    %v796 = vpack.c.b16 %v646, %v644
    %v797 = vpack.c.b16 %v649, %v647
    %v798 = vpack.c.b16 %v650, %v648
    %v799 = vpack.c.b16 %v653, %v651
    %v800 = vpack.c.b16 %v654, %v652
    %v801 = vpack.c.b16 %v657, %v655
    %v802 = vpack.c.b16 %v658, %v656
    %v803 = vpack.c.b16 %v661, %v659
    %v804 = vpack.c.b16 %v662, %v660
    %v805 = vpack.c.b16 %v665, %v663
    %v806 = vpack.c.b16 %v666, %v664
    %v807 = vpack.c.b16 %v669, %v667
    %v808 = vpack.c.b16 %v670, %v668
    %v809 = vpack.c.b16 %v673, %v671
    %v810 = vpack.c.b16 %v674, %v672
    %v811 = vpack.c.b16 %v677, %v675
    %v812 = vpack.c.b16 %v678, %v676
    %v813 = vpack.c.b16 %v681, %v679
    %v814 = vpack.c.b16 %v682, %v680
    %v815 = vpack.c.b16 %v685, %v683
    %v816 = vpack.c.b16 %v686, %v684
    %v817 = vpack.c.b16 %v689, %v687
    %v818 = vpack.c.b16 %v690, %v688
    %947 = vmatpush.bf16.msra.mxu0 %v705
    %948 = vmatpush.bf16.msra.mxu0 %v703
    %949 = vmatpush.bf16.msra.mxu0 %v701
    %950 = vmatpush.bf16.msra.mxu0 %v699
    %951 = vmatpush.bf16.msra.mxu0 %v697
    %952 = vmatpush.bf16.msra.mxu0 %v695
    %953 = vmatpush.bf16.msra.mxu0 %v693
    %954 = vmatpush.bf16.msra.mxu0 %v691
    %955 = vmatmul.bf16.gmra.mxu0 %v291
    %v956 = vpop.f32.mrf.mxu0
    %v957 = vadd.f32 %v263, %v956
    %v958 = vpop.f32.mrf.mxu0
    %v959 = vadd.f32 %v263, %v958
    %960 = vdwg.mxu0
    %961 = vmatpush.bf16.msra.mxu0 %v721
    %962 = vmatpush.bf16.msra.mxu0 %v719
    %963 = vmatpush.bf16.msra.mxu0 %v717
    %964 = vmatpush.bf16.msra.mxu0 %v715
    %965 = vmatpush.bf16.msra.mxu0 %v713
    %966 = vmatpush.bf16.msra.mxu0 %v711
    %967 = vmatpush.bf16.msra.mxu0 %v709
    %968 = vmatpush.bf16.msra.mxu0 %v707
    %969 = vmatmul.bf16.gmra.mxu0 %v292
    %v970 = vpop.f32.mrf.mxu0
    %v971 = vadd.f32 %v957, %v970
    %v972 = vpop.f32.mrf.mxu0
    %v973 = vadd.f32 %v959, %v972
    %974 = vdwg.mxu0
    %975 = vmatpush.bf16.msra.mxu0 %v737
    %976 = vmatpush.bf16.msra.mxu0 %v735
    %977 = vmatpush.bf16.msra.mxu0 %v733
    %978 = vmatpush.bf16.msra.mxu0 %v731
    %979 = vmatpush.bf16.msra.mxu0 %v729
    %980 = vmatpush.bf16.msra.mxu0 %v727
    %981 = vmatpush.bf16.msra.mxu0 %v725
    %982 = vmatpush.bf16.msra.mxu0 %v723
    %983 = vmatmul.bf16.gmra.mxu0 %v293
    %v984 = vpop.f32.mrf.mxu0
    %v985 = vadd.f32 %v971, %v984
    %v986 = vpop.f32.mrf.mxu0
    %v987 = vadd.f32 %v973, %v986
    %988 = vdwg.mxu0
    %989 = vmatpush.bf16.msra.mxu0 %v753
    %990 = vmatpush.bf16.msra.mxu0 %v751
    %991 = vmatpush.bf16.msra.mxu0 %v749
    %992 = vmatpush.bf16.msra.mxu0 %v747
    %993 = vmatpush.bf16.msra.mxu0 %v745
    %994 = vmatpush.bf16.msra.mxu0 %v743
    %995 = vmatpush.bf16.msra.mxu0 %v741
    %996 = vmatpush.bf16.msra.mxu0 %v739
    %997 = vmatmul.bf16.gmra.mxu0 %v294
    %v998 = vpop.f32.mrf.mxu0
    %v999 = vadd.f32 %v985, %v998
    %v1000 = vpop.f32.mrf.mxu0
    %v1001 = vadd.f32 %v987, %v1000
    %1002 = vdwg.mxu0
    %1003 = vmatpush.bf16.msra.mxu0 %v769
    %1004 = vmatpush.bf16.msra.mxu0 %v767
    %1005 = vmatpush.bf16.msra.mxu0 %v765
    %1006 = vmatpush.bf16.msra.mxu0 %v763
    %1007 = vmatpush.bf16.msra.mxu0 %v761
    %1008 = vmatpush.bf16.msra.mxu0 %v759
    %1009 = vmatpush.bf16.msra.mxu0 %v757
    %1010 = vmatpush.bf16.msra.mxu0 %v755
    %1011 = vmatmul.bf16.gmra.mxu0 %v295
    %v1012 = vpop.f32.mrf.mxu0
    %v1013 = vadd.f32 %v999, %v1012
    %v1014 = vpop.f32.mrf.mxu0
    %v1015 = vadd.f32 %v1001, %v1014
    %1016 = vdwg.mxu0
    %1017 = vmatpush.bf16.msra.mxu0 %v785
    %1018 = vmatpush.bf16.msra.mxu0 %v783
    %1019 = vmatpush.bf16.msra.mxu0 %v781
    %1020 = vmatpush.bf16.msra.mxu0 %v779
    %1021 = vmatpush.bf16.msra.mxu0 %v777
    %1022 = vmatpush.bf16.msra.mxu0 %v775
    %1023 = vmatpush.bf16.msra.mxu0 %v773
    %1024 = vmatpush.bf16.msra.mxu0 %v771
    %1025 = vmatmul.bf16.gmra.mxu0 %v296
    %v1026 = vpop.f32.mrf.mxu0
    %v1027 = vadd.f32 %v1013, %v1026
    %v1028 = vpop.f32.mrf.mxu0
    %v1029 = vadd.f32 %v1015, %v1028
    %1030 = vdwg.mxu0
    %1031 = vmatpush.bf16.msra.mxu0 %v801
    %1032 = vmatpush.bf16.msra.mxu0 %v799
    %1033 = vmatpush.bf16.msra.mxu0 %v797
    %1034 = vmatpush.bf16.msra.mxu0 %v795
    %1035 = vmatpush.bf16.msra.mxu0 %v793
    %1036 = vmatpush.bf16.msra.mxu0 %v791
    %1037 = vmatpush.bf16.msra.mxu0 %v789
    %1038 = vmatpush.bf16.msra.mxu0 %v787
    %1039 = vmatmul.bf16.gmra.mxu0 %v297
    %v1040 = vpop.f32.mrf.mxu0
    %v1041 = vadd.f32 %v1027, %v1040
    %v1042 = vpop.f32.mrf.mxu0
    %v1043 = vadd.f32 %v1029, %v1042
    %1044 = vdwg.mxu0
    %1045 = vmatpush.bf16.msra.mxu0 %v817
    %1046 = vmatpush.bf16.msra.mxu0 %v815
    %1047 = vmatpush.bf16.msra.mxu0 %v813
    %1048 = vmatpush.bf16.msra.mxu0 %v811
    %1049 = vmatpush.bf16.msra.mxu0 %v809
    %1050 = vmatpush.bf16.msra.mxu0 %v807
    %1051 = vmatpush.bf16.msra.mxu0 %v805
    %1052 = vmatpush.bf16.msra.mxu0 %v803
    %1053 = vmatmul.bf16.gmra.mxu0 %v298
    %v1054 = vpop.f32.mrf.mxu0
    %v1055 = vadd.f32 %v1041, %v1054
    %v1056 = vpop.f32.mrf.mxu0
    %v1057 = vadd.f32 %v1043, %v1056
    %1058 = vdwg.mxu0
    %1059 = vmatpush.bf16.msra.mxu0 %v706
    %1060 = vmatpush.bf16.msra.mxu0 %v704
    %1061 = vmatpush.bf16.msra.mxu0 %v702
    %1062 = vmatpush.bf16.msra.mxu0 %v700
    %1063 = vmatpush.bf16.msra.mxu0 %v698
    %1064 = vmatpush.bf16.msra.mxu0 %v696
    %1065 = vmatpush.bf16.msra.mxu0 %v694
    %1066 = vmatpush.bf16.msra.mxu0 %v692
    %1067 = vmatmul.bf16.gmra.mxu0 %v291
    %v1068 = vpop.f32.mrf.mxu0
    %v1069 = vadd.f32 %v264, %v1068
    %v1070 = vpop.f32.mrf.mxu0
    %v1071 = vadd.f32 %v264, %v1070
    %1072 = vdwg.mxu0
    %1073 = vmatpush.bf16.msra.mxu0 %v722
    %1074 = vmatpush.bf16.msra.mxu0 %v720
    %1075 = vmatpush.bf16.msra.mxu0 %v718
    %1076 = vmatpush.bf16.msra.mxu0 %v716
    %1077 = vmatpush.bf16.msra.mxu0 %v714
    %1078 = vmatpush.bf16.msra.mxu0 %v712
    %1079 = vmatpush.bf16.msra.mxu0 %v710
    %1080 = vmatpush.bf16.msra.mxu0 %v708
    %1081 = vmatmul.bf16.gmra.mxu0 %v292
    %v1082 = vpop.f32.mrf.mxu0
    %v1083 = vadd.f32 %v1069, %v1082
    %v1084 = vpop.f32.mrf.mxu0
    %v1085 = vadd.f32 %v1071, %v1084
    %1086 = vdwg.mxu0
    %1087 = vmatpush.bf16.msra.mxu0 %v738
    %1088 = vmatpush.bf16.msra.mxu0 %v736
    %1089 = vmatpush.bf16.msra.mxu0 %v734
    %1090 = vmatpush.bf16.msra.mxu0 %v732
    %1091 = vmatpush.bf16.msra.mxu0 %v730
    %1092 = vmatpush.bf16.msra.mxu0 %v728
    %1093 = vmatpush.bf16.msra.mxu0 %v726
    %1094 = vmatpush.bf16.msra.mxu0 %v724
    %1095 = vmatmul.bf16.gmra.mxu0 %v293
    %v1096 = vpop.f32.mrf.mxu0
    %v1097 = vadd.f32 %v1083, %v1096
    %v1098 = vpop.f32.mrf.mxu0
    %v1099 = vadd.f32 %v1085, %v1098
    %1100 = vdwg.mxu0
    %1101 = vmatpush.bf16.msra.mxu0 %v754
    %1102 = vmatpush.bf16.msra.mxu0 %v752
    %1103 = vmatpush.bf16.msra.mxu0 %v750
    %1104 = vmatpush.bf16.msra.mxu0 %v748
    %1105 = vmatpush.bf16.msra.mxu0 %v746
    %1106 = vmatpush.bf16.msra.mxu0 %v744
    %1107 = vmatpush.bf16.msra.mxu0 %v742
    %1108 = vmatpush.bf16.msra.mxu0 %v740
    %1109 = vmatmul.bf16.gmra.mxu0 %v294
    %v1110 = vpop.f32.mrf.mxu0
    %v1111 = vadd.f32 %v1097, %v1110
    %v1112 = vpop.f32.mrf.mxu0
    %v1113 = vadd.f32 %v1099, %v1112
    %1114 = vdwg.mxu0
    %1115 = vmatpush.bf16.msra.mxu0 %v770
    %1116 = vmatpush.bf16.msra.mxu0 %v768
    %1117 = vmatpush.bf16.msra.mxu0 %v766
    %1118 = vmatpush.bf16.msra.mxu0 %v764
    %1119 = vmatpush.bf16.msra.mxu0 %v762
    %1120 = vmatpush.bf16.msra.mxu0 %v760
    %1121 = vmatpush.bf16.msra.mxu0 %v758
    %1122 = vmatpush.bf16.msra.mxu0 %v756
    %1123 = vmatmul.bf16.gmra.mxu0 %v295
    %v1124 = vpop.f32.mrf.mxu0
    %v1125 = vadd.f32 %v1111, %v1124
    %v1126 = vpop.f32.mrf.mxu0
    %v1127 = vadd.f32 %v1113, %v1126
    %1128 = vdwg.mxu0
    %1129 = vmatpush.bf16.msra.mxu0 %v786
    %1130 = vmatpush.bf16.msra.mxu0 %v784
    %1131 = vmatpush.bf16.msra.mxu0 %v782
    %1132 = vmatpush.bf16.msra.mxu0 %v780
    %1133 = vmatpush.bf16.msra.mxu0 %v778
    %1134 = vmatpush.bf16.msra.mxu0 %v776
    %1135 = vmatpush.bf16.msra.mxu0 %v774
    %1136 = vmatpush.bf16.msra.mxu0 %v772
    %1137 = vmatmul.bf16.gmra.mxu0 %v296
    %v1138 = vpop.f32.mrf.mxu0
    %v1139 = vadd.f32 %v1125, %v1138
    %v1140 = vpop.f32.mrf.mxu0
    %v1141 = vadd.f32 %v1127, %v1140
    %1142 = vdwg.mxu0
    %1143 = vmatpush.bf16.msra.mxu0 %v802
    %1144 = vmatpush.bf16.msra.mxu0 %v800
    %1145 = vmatpush.bf16.msra.mxu0 %v798
    %1146 = vmatpush.bf16.msra.mxu0 %v796
    %1147 = vmatpush.bf16.msra.mxu0 %v794
    %1148 = vmatpush.bf16.msra.mxu0 %v792
    %1149 = vmatpush.bf16.msra.mxu0 %v790
    %1150 = vmatpush.bf16.msra.mxu0 %v788
    %1151 = vmatmul.bf16.gmra.mxu0 %v297
    %v1152 = vpop.f32.mrf.mxu0
    %v1153 = vadd.f32 %v1139, %v1152
    %v1154 = vpop.f32.mrf.mxu0
    %v1155 = vadd.f32 %v1141, %v1154
    %1156 = vdwg.mxu0
    %1157 = vmatpush.bf16.msra.mxu0 %v818
    %1158 = vmatpush.bf16.msra.mxu0 %v816
    %1159 = vmatpush.bf16.msra.mxu0 %v814
    %1160 = vmatpush.bf16.msra.mxu0 %v812
    %1161 = vmatpush.bf16.msra.mxu0 %v810
    %1162 = vmatpush.bf16.msra.mxu0 %v808
    %1163 = vmatpush.bf16.msra.mxu0 %v806
    %1164 = vmatpush.bf16.msra.mxu0 %v804
    %1165 = vmatmul.bf16.gmra.mxu0 %v298
    %v1166 = vpop.f32.mrf.mxu0
    %v1167 = vadd.f32 %v1153, %v1166
    %v1168 = vpop.f32.mrf.mxu0
    %v1169 = vadd.f32 %v1155, %v1168
    %1170 = vdwg.mxu0
    %v1171 = vpack.c.bf16 %v1057, %v1055
    %v1172 = vpack.c.bf16 %v1169, %v1167
    %v1173 = vld [vmem:[#allocation8] sm:$0xff]
    %v1174 = vld [vmem:[#allocation8 + $0x8] sm:$0xff]
    %v1175 = vld [vmem:[#allocation8 + $0x10] sm:$0xff]
    %v1176 = vld [vmem:[#allocation8 + $0x18] sm:$0xff]
    %v1177 = vld [vmem:[#allocation8 + $0x20] sm:$0xff]
    %v1178 = vld [vmem:[#allocation8 + $0x28] sm:$0xff]
    %v1179 = vld [vmem:[#allocation8 + $0x30] sm:$0xff]
    %v1180 = vld [vmem:[#allocation8 + $0x38] sm:$0xff]
    %v1181 = vld [vmem:[#allocation8 + $0x40] sm:$0xff]
    %v1182 = vld [vmem:[#allocation8 + $0x48] sm:$0xff]
    %v1183 = vld [vmem:[#allocation8 + $0x50] sm:$0xff]
    %v1184 = vld [vmem:[#allocation8 + $0x58] sm:$0xff]
    %v1185 = vld [vmem:[#allocation8 + $0x60] sm:$0xff]
    %v1186 = vld [vmem:[#allocation8 + $0x68] sm:$0xff]
    %v1187 = vld [vmem:[#allocation8 + $0x70] sm:$0xff]
    %v1188 = vld [vmem:[#allocation8 + $0x78] sm:$0xff]
    %v1189 = vld [vmem:[#allocation8 + $0x80] sm:$0xff]
    %v1190 = vld [vmem:[#allocation8 + $0x88] sm:$0xff]
    %v1191 = vld [vmem:[#allocation8 + $0x90] sm:$0xff]
    %v1192 = vld [vmem:[#allocation8 + $0x98] sm:$0xff]
    %v1193 = vld [vmem:[#allocation8 + $0xa0] sm:$0xff]
    %v1194 = vld [vmem:[#allocation8 + $0xa8] sm:$0xff]
    %v1195 = vld [vmem:[#allocation8 + $0xb0] sm:$0xff]
    %v1196 = vld [vmem:[#allocation8 + $0xb8] sm:$0xff]
    %v1197 = vld [vmem:[#allocation8 + $0xc0] sm:$0xff]
    %v1198 = vld [vmem:[#allocation8 + $0xc8] sm:$0xff]
    %v1199 = vld [vmem:[#allocation8 + $0xd0] sm:$0xff]
    %v1200 = vld [vmem:[#allocation8 + $0xd8] sm:$0xff]
    %v1201 = vld [vmem:[#allocation8 + $0xe0] sm:$0xff]
    %v1202 = vld [vmem:[#allocation8 + $0xe8] sm:$0xff]
    %v1203 = vld [vmem:[#allocation8 + $0xf0] sm:$0xff]
    %v1204 = vld [vmem:[#allocation8 + $0xf8] sm:$0xff]
    %v1205 = vld [vmem:[%s4] sm:$0x3]
    %v1207 = vperm.slane %v1205, 0
    %v1208 = vperm.slane %v1205, 1
    %v1243 = vunpack.c.l.b16 %v1173
    %v1244 = vunpack.c.h.b16 %v1173
    %v1245 = vunpack.c.l.b16 %v1174
    %v1246 = vunpack.c.h.b16 %v1174
    %v1247 = vunpack.c.l.b16 %v1175
    %v1248 = vunpack.c.h.b16 %v1175
    %v1249 = vunpack.c.l.b16 %v1176
    %v1250 = vunpack.c.h.b16 %v1176
    %v1251 = vunpack.c.l.b16 %v1177
    %v1252 = vunpack.c.h.b16 %v1177
    %v1253 = vunpack.c.l.b16 %v1178
    %v1254 = vunpack.c.h.b16 %v1178
    %v1255 = vunpack.c.l.b16 %v1179
    %v1256 = vunpack.c.h.b16 %v1179
    %v1257 = vunpack.c.l.b16 %v1180
    %v1258 = vunpack.c.h.b16 %v1180
    %v1259 = vunpack.c.l.b16 %v1181
    %v1260 = vunpack.c.h.b16 %v1181
    %v1261 = vunpack.c.l.b16 %v1182
    %v1262 = vunpack.c.h.b16 %v1182
    %v1263 = vunpack.c.l.b16 %v1183
    %v1264 = vunpack.c.h.b16 %v1183
    %v1265 = vunpack.c.l.b16 %v1184
    %v1266 = vunpack.c.h.b16 %v1184
    %v1267 = vunpack.c.l.b16 %v1185
    %v1268 = vunpack.c.h.b16 %v1185
    %v1269 = vunpack.c.l.b16 %v1186
    %v1270 = vunpack.c.h.b16 %v1186
    %v1271 = vunpack.c.l.b16 %v1187
    %v1272 = vunpack.c.h.b16 %v1187
    %v1273 = vunpack.c.l.b16 %v1188
    %v1274 = vunpack.c.h.b16 %v1188
    %v1275 = vunpack.c.l.b16 %v1189
    %v1276 = vunpack.c.h.b16 %v1189
    %v1277 = vunpack.c.l.b16 %v1190
    %v1278 = vunpack.c.h.b16 %v1190
    %v1279 = vunpack.c.l.b16 %v1191
    %v1280 = vunpack.c.h.b16 %v1191
    %v1281 = vunpack.c.l.b16 %v1192
    %v1282 = vunpack.c.h.b16 %v1192
    %v1283 = vunpack.c.l.b16 %v1193
    %v1284 = vunpack.c.h.b16 %v1193
    %v1285 = vunpack.c.l.b16 %v1194
    %v1286 = vunpack.c.h.b16 %v1194
    %v1287 = vunpack.c.l.b16 %v1195
    %v1288 = vunpack.c.h.b16 %v1195
    %v1289 = vunpack.c.l.b16 %v1196
    %v1290 = vunpack.c.h.b16 %v1196
    %v1291 = vunpack.c.l.b16 %v1197
    %v1292 = vunpack.c.h.b16 %v1197
    %v1293 = vunpack.c.l.b16 %v1198
    %v1294 = vunpack.c.h.b16 %v1198
    %v1295 = vunpack.c.l.b16 %v1199
    %v1296 = vunpack.c.h.b16 %v1199
    %v1297 = vunpack.c.l.b16 %v1200
    %v1298 = vunpack.c.h.b16 %v1200
    %v1299 = vunpack.c.l.b16 %v1201
    %v1300 = vunpack.c.h.b16 %v1201
    %v1301 = vunpack.c.l.b16 %v1202
    %v1302 = vunpack.c.h.b16 %v1202
    %v1303 = vunpack.c.l.b16 %v1203
    %v1304 = vunpack.c.h.b16 %v1203
    %v1305 = vunpack.c.l.b16 %v1204
    %v1306 = vunpack.c.h.b16 %v1204
    %v1307 = vpack.c.b16 %v1245, %v1243
    %v1308 = vpack.c.b16 %v1246, %v1244
    %v1309 = vpack.c.b16 %v1249, %v1247
    %v1310 = vpack.c.b16 %v1250, %v1248
    %v1311 = vpack.c.b16 %v1253, %v1251
    %v1312 = vpack.c.b16 %v1254, %v1252
    %v1313 = vpack.c.b16 %v1257, %v1255
    %v1314 = vpack.c.b16 %v1258, %v1256
    %v1315 = vpack.c.b16 %v1261, %v1259
    %v1316 = vpack.c.b16 %v1262, %v1260
    %v1317 = vpack.c.b16 %v1265, %v1263
    %v1318 = vpack.c.b16 %v1266, %v1264
    %v1319 = vpack.c.b16 %v1269, %v1267
    %v1320 = vpack.c.b16 %v1270, %v1268
    %v1321 = vpack.c.b16 %v1273, %v1271
    %v1322 = vpack.c.b16 %v1274, %v1272
    %v1323 = vpack.c.b16 %v1277, %v1275
    %v1324 = vpack.c.b16 %v1278, %v1276
    %v1325 = vpack.c.b16 %v1281, %v1279
    %v1326 = vpack.c.b16 %v1282, %v1280
    %v1327 = vpack.c.b16 %v1285, %v1283
    %v1328 = vpack.c.b16 %v1286, %v1284
    %v1329 = vpack.c.b16 %v1289, %v1287
    %v1330 = vpack.c.b16 %v1290, %v1288
    %v1331 = vpack.c.b16 %v1293, %v1291
    %v1332 = vpack.c.b16 %v1294, %v1292
    %v1333 = vpack.c.b16 %v1297, %v1295
    %v1334 = vpack.c.b16 %v1298, %v1296
    %v1335 = vpack.c.b16 %v1301, %v1299
    %v1336 = vpack.c.b16 %v1302, %v1300
    %v1337 = vpack.c.b16 %v1305, %v1303
    %v1338 = vpack.c.b16 %v1306, %v1304
    %1371 = vmatpush.bf16.msra.mxu0 %v1321
    %1372 = vmatpush.bf16.msra.mxu0 %v1319
    %1373 = vmatpush.bf16.msra.mxu0 %v1317
    %1374 = vmatpush.bf16.msra.mxu0 %v1315
    %1375 = vmatpush.bf16.msra.mxu0 %v1313
    %1376 = vmatpush.bf16.msra.mxu0 %v1311
    %1377 = vmatpush.bf16.msra.mxu0 %v1309
    %1378 = vmatpush.bf16.msra.mxu0 %v1307
    %1379 = vmatmul.bf16.gmra.mxu0 %v1171
    %v1380 = vpop.f32.mrf.mxu0
    %v1381 = vadd.f32 %v1207, %v1380
    %v1382 = vpop.f32.mrf.mxu0
    %v1383 = vadd.f32 %v1207, %v1382
    %1384 = vdwg.mxu0
    %1385 = vmatpush.bf16.msra.mxu0 %v1337
    %1386 = vmatpush.bf16.msra.mxu0 %v1335
    %1387 = vmatpush.bf16.msra.mxu0 %v1333
    %1388 = vmatpush.bf16.msra.mxu0 %v1331
    %1389 = vmatpush.bf16.msra.mxu0 %v1329
    %1390 = vmatpush.bf16.msra.mxu0 %v1327
    %1391 = vmatpush.bf16.msra.mxu0 %v1325
    %1392 = vmatpush.bf16.msra.mxu0 %v1323
    %1393 = vmatmul.bf16.gmra.mxu0 %v1172
    %v1394 = vpop.f32.mrf.mxu0
    %v1395 = vadd.f32 %v1381, %v1394
    %v1396 = vpop.f32.mrf.mxu0
    %v1397 = vadd.f32 %v1383, %v1396
    %1398 = vdwg.mxu0
    %1399 = vmatpush.bf16.msra.mxu0 %v1322
    %1400 = vmatpush.bf16.msra.mxu0 %v1320
    %1401 = vmatpush.bf16.msra.mxu0 %v1318
    %1402 = vmatpush.bf16.msra.mxu0 %v1316
    %1403 = vmatpush.bf16.msra.mxu0 %v1314
    %1404 = vmatpush.bf16.msra.mxu0 %v1312
    %1405 = vmatpush.bf16.msra.mxu0 %v1310
    %1406 = vmatpush.bf16.msra.mxu0 %v1308
    %1407 = vmatmul.bf16.gmra.mxu0 %v1171
    %v1408 = vpop.f32.mrf.mxu0
    %v1409 = vadd.f32 %v1208, %v1408
    %v1410 = vpop.f32.mrf.mxu0
    %v1411 = vadd.f32 %v1208, %v1410
    %1412 = vdwg.mxu0
    %1413 = vmatpush.bf16.msra.mxu0 %v1338
    %1414 = vmatpush.bf16.msra.mxu0 %v1336
    %1415 = vmatpush.bf16.msra.mxu0 %v1334
    %1416 = vmatpush.bf16.msra.mxu0 %v1332
    %1417 = vmatpush.bf16.msra.mxu0 %v1330
    %1418 = vmatpush.bf16.msra.mxu0 %v1328
    %1419 = vmatpush.bf16.msra.mxu0 %v1326
    %1420 = vmatpush.bf16.msra.mxu0 %v1324
    %1421 = vmatmul.bf16.gmra.mxu0 %v1172
    %v1422 = vpop.f32.mrf.mxu0
    %v1423 = vadd.f32 %v1409, %v1422
    %v1424 = vpop.f32.mrf.mxu0
    %v1425 = vadd.f32 %v1411, %v1424
    %1426 = vdwg.mxu0
    %v1427 = vmax.f32 %v1395, 0.0
    %v1428 = vmax.f32 %v1423, 0.0
    %v1429 = vmax.f32 %v1397, 0.0
    %v1430 = vmax.f32 %v1425, 0.0
    %v1431 = vpack.c.bf16 %v1429, %v1427
    %v1432 = vpack.c.bf16 %v1430, %v1428
    %v1433 = vld [vmem:[#allocation10] sm:$0xff]
    %v1434 = vld [vmem:[#allocation10 + $0x8] sm:$0xff]
    %v1435 = vld [vmem:[#allocation10 + $0x10] sm:$0xff]
    %v1436 = vld [vmem:[#allocation10 + $0x18] sm:$0xff]
    %v1437 = vld [vmem:[#allocation10 + $0x20] sm:$0xff]
    %v1438 = vld [vmem:[#allocation10 + $0x28] sm:$0xff]
    %v1439 = vld [vmem:[#allocation10 + $0x30] sm:$0xff]
    %v1440 = vld [vmem:[#allocation10 + $0x38] sm:$0xff]
    %v1441 = vld [vmem:[#allocation10 + $0x40] sm:$0xff]
    %v1442 = vld [vmem:[#allocation10 + $0x48] sm:$0xff]
    %v1443 = vld [vmem:[#allocation10 + $0x50] sm:$0xff]
    %v1444 = vld [vmem:[#allocation10 + $0x58] sm:$0xff]
    %v1445 = vld [vmem:[#allocation10 + $0x60] sm:$0xff]
    %v1446 = vld [vmem:[#allocation10 + $0x68] sm:$0xff]
    %v1447 = vld [vmem:[#allocation10 + $0x70] sm:$0xff]
    %v1448 = vld [vmem:[#allocation10 + $0x78] sm:$0xff]
    %v1449 = vld [vmem:[#allocation10 + $0x80] sm:$0xff]
    %v1450 = vld [vmem:[#allocation10 + $0x88] sm:$0xff]
    %v1451 = vld [vmem:[#allocation10 + $0x90] sm:$0xff]
    %v1452 = vld [vmem:[#allocation10 + $0x98] sm:$0xff]
    %v1453 = vld [vmem:[#allocation10 + $0xa0] sm:$0xff]
    %v1454 = vld [vmem:[#allocation10 + $0xa8] sm:$0xff]
    %v1455 = vld [vmem:[#allocation10 + $0xb0] sm:$0xff]
    %v1456 = vld [vmem:[#allocation10 + $0xb8] sm:$0xff]
    %v1457 = vld [vmem:[#allocation10 + $0xc0] sm:$0xff]
    %v1458 = vld [vmem:[#allocation10 + $0xc8] sm:$0xff]
    %v1459 = vld [vmem:[#allocation10 + $0xd0] sm:$0xff]
    %v1460 = vld [vmem:[#allocation10 + $0xd8] sm:$0xff]
    %v1461 = vld [vmem:[#allocation10 + $0xe0] sm:$0xff]
    %v1462 = vld [vmem:[#allocation10 + $0xe8] sm:$0xff]
    %v1463 = vld [vmem:[#allocation10 + $0xf0] sm:$0xff]
    %v1464 = vld [vmem:[#allocation10 + $0xf8] sm:$0xff]
    %v1465 = vld [vmem:[%s6] sm:$0x3]
    %v1467 = vperm.slane %v1465, 0
    %v1468 = vperm.slane %v1465, 1
    %v1503 = vunpack.c.l.b16 %v1433
    %v1504 = vunpack.c.h.b16 %v1433
    %v1505 = vunpack.c.l.b16 %v1434
    %v1506 = vunpack.c.h.b16 %v1434
    %v1507 = vunpack.c.l.b16 %v1435
    %v1508 = vunpack.c.h.b16 %v1435
    %v1509 = vunpack.c.l.b16 %v1436
    %v1510 = vunpack.c.h.b16 %v1436
    %v1511 = vunpack.c.l.b16 %v1437
    %v1512 = vunpack.c.h.b16 %v1437
    %v1513 = vunpack.c.l.b16 %v1438
    %v1514 = vunpack.c.h.b16 %v1438
    %v1515 = vunpack.c.l.b16 %v1439
    %v1516 = vunpack.c.h.b16 %v1439
    %v1517 = vunpack.c.l.b16 %v1440
    %v1518 = vunpack.c.h.b16 %v1440
    %v1519 = vunpack.c.l.b16 %v1441
    %v1520 = vunpack.c.h.b16 %v1441
    %v1521 = vunpack.c.l.b16 %v1442
    %v1522 = vunpack.c.h.b16 %v1442
    %v1523 = vunpack.c.l.b16 %v1443
    %v1524 = vunpack.c.h.b16 %v1443
    %v1525 = vunpack.c.l.b16 %v1444
    %v1526 = vunpack.c.h.b16 %v1444
    %v1527 = vunpack.c.l.b16 %v1445
    %v1528 = vunpack.c.h.b16 %v1445
    %v1529 = vunpack.c.l.b16 %v1446
    %v1530 = vunpack.c.h.b16 %v1446
    %v1531 = vunpack.c.l.b16 %v1447
    %v1532 = vunpack.c.h.b16 %v1447
    %v1533 = vunpack.c.l.b16 %v1448
    %v1534 = vunpack.c.h.b16 %v1448
    %v1535 = vunpack.c.l.b16 %v1449
    %v1536 = vunpack.c.h.b16 %v1449
    %v1537 = vunpack.c.l.b16 %v1450
    %v1538 = vunpack.c.h.b16 %v1450
    %v1539 = vunpack.c.l.b16 %v1451
    %v1540 = vunpack.c.h.b16 %v1451
    %v1541 = vunpack.c.l.b16 %v1452
    %v1542 = vunpack.c.h.b16 %v1452
    %v1543 = vunpack.c.l.b16 %v1453
    %v1544 = vunpack.c.h.b16 %v1453
    %v1545 = vunpack.c.l.b16 %v1454
    %v1546 = vunpack.c.h.b16 %v1454
    %v1547 = vunpack.c.l.b16 %v1455
    %v1548 = vunpack.c.h.b16 %v1455
    %v1549 = vunpack.c.l.b16 %v1456
    %v1550 = vunpack.c.h.b16 %v1456
    %v1551 = vunpack.c.l.b16 %v1457
    %v1552 = vunpack.c.h.b16 %v1457
    %v1553 = vunpack.c.l.b16 %v1458
    %v1554 = vunpack.c.h.b16 %v1458
    %v1555 = vunpack.c.l.b16 %v1459
    %v1556 = vunpack.c.h.b16 %v1459
    %v1557 = vunpack.c.l.b16 %v1460
    %v1558 = vunpack.c.h.b16 %v1460
    %v1559 = vunpack.c.l.b16 %v1461
    %v1560 = vunpack.c.h.b16 %v1461
    %v1561 = vunpack.c.l.b16 %v1462
    %v1562 = vunpack.c.h.b16 %v1462
    %v1563 = vunpack.c.l.b16 %v1463
    %v1564 = vunpack.c.h.b16 %v1463
    %v1565 = vunpack.c.l.b16 %v1464
    %v1566 = vunpack.c.h.b16 %v1464
    %v1567 = vpack.c.b16 %v1505, %v1503
    %v1568 = vpack.c.b16 %v1506, %v1504
    %v1569 = vpack.c.b16 %v1509, %v1507
    %v1570 = vpack.c.b16 %v1510, %v1508
    %v1571 = vpack.c.b16 %v1513, %v1511
    %v1572 = vpack.c.b16 %v1514, %v1512
    %v1573 = vpack.c.b16 %v1517, %v1515
    %v1574 = vpack.c.b16 %v1518, %v1516
    %v1575 = vpack.c.b16 %v1521, %v1519
    %v1576 = vpack.c.b16 %v1522, %v1520
    %v1577 = vpack.c.b16 %v1525, %v1523
    %v1578 = vpack.c.b16 %v1526, %v1524
    %v1579 = vpack.c.b16 %v1529, %v1527
    %v1580 = vpack.c.b16 %v1530, %v1528
    %v1581 = vpack.c.b16 %v1533, %v1531
    %v1582 = vpack.c.b16 %v1534, %v1532
    %v1583 = vpack.c.b16 %v1537, %v1535
    %v1584 = vpack.c.b16 %v1538, %v1536
    %v1585 = vpack.c.b16 %v1541, %v1539
    %v1586 = vpack.c.b16 %v1542, %v1540
    %v1587 = vpack.c.b16 %v1545, %v1543
    %v1588 = vpack.c.b16 %v1546, %v1544
    %v1589 = vpack.c.b16 %v1549, %v1547
    %v1590 = vpack.c.b16 %v1550, %v1548
    %v1591 = vpack.c.b16 %v1553, %v1551
    %v1592 = vpack.c.b16 %v1554, %v1552
    %v1593 = vpack.c.b16 %v1557, %v1555
    %v1594 = vpack.c.b16 %v1558, %v1556
    %v1595 = vpack.c.b16 %v1561, %v1559
    %v1596 = vpack.c.b16 %v1562, %v1560
    %v1597 = vpack.c.b16 %v1565, %v1563
    %v1598 = vpack.c.b16 %v1566, %v1564
    %1631 = vmatpush.bf16.msra.mxu0 %v1581
    %1632 = vmatpush.bf16.msra.mxu0 %v1579
    %1633 = vmatpush.bf16.msra.mxu0 %v1577
    %1634 = vmatpush.bf16.msra.mxu0 %v1575
    %1635 = vmatpush.bf16.msra.mxu0 %v1573
    %1636 = vmatpush.bf16.msra.mxu0 %v1571
    %1637 = vmatpush.bf16.msra.mxu0 %v1569
    %1638 = vmatpush.bf16.msra.mxu0 %v1567
    %1639 = vmatmul.bf16.gmra.mxu0 %v1431
    %v1640 = vpop.f32.mrf.mxu0
    %v1641 = vadd.f32 %v1467, %v1640
    %v1642 = vpop.f32.mrf.mxu0
    %v1643 = vadd.f32 %v1467, %v1642
    %1644 = vdwg.mxu0
    %1645 = vmatpush.bf16.msra.mxu0 %v1597
    %1646 = vmatpush.bf16.msra.mxu0 %v1595
    %1647 = vmatpush.bf16.msra.mxu0 %v1593
    %1648 = vmatpush.bf16.msra.mxu0 %v1591
    %1649 = vmatpush.bf16.msra.mxu0 %v1589
    %1650 = vmatpush.bf16.msra.mxu0 %v1587
    %1651 = vmatpush.bf16.msra.mxu0 %v1585
    %1652 = vmatpush.bf16.msra.mxu0 %v1583
    %1653 = vmatmul.bf16.gmra.mxu0 %v1432
    %v1654 = vpop.f32.mrf.mxu0
    %v1655 = vadd.f32 %v1641, %v1654
    %v1656 = vpop.f32.mrf.mxu0
    %v1657 = vadd.f32 %v1643, %v1656
    %1658 = vdwg.mxu0
    %1659 = vmatpush.bf16.msra.mxu0 %v1582
    %1660 = vmatpush.bf16.msra.mxu0 %v1580
    %1661 = vmatpush.bf16.msra.mxu0 %v1578
    %1662 = vmatpush.bf16.msra.mxu0 %v1576
    %1663 = vmatpush.bf16.msra.mxu0 %v1574
    %1664 = vmatpush.bf16.msra.mxu0 %v1572
    %1665 = vmatpush.bf16.msra.mxu0 %v1570
    %1666 = vmatpush.bf16.msra.mxu0 %v1568
    %1667 = vmatmul.bf16.gmra.mxu0 %v1431
    %v1668 = vpop.f32.mrf.mxu0
    %v1669 = vadd.f32 %v1468, %v1668
    %v1670 = vpop.f32.mrf.mxu0
    %v1671 = vadd.f32 %v1468, %v1670
    %1672 = vdwg.mxu0
    %1673 = vmatpush.bf16.msra.mxu0 %v1598
    %1674 = vmatpush.bf16.msra.mxu0 %v1596
    %1675 = vmatpush.bf16.msra.mxu0 %v1594
    %1676 = vmatpush.bf16.msra.mxu0 %v1592
    %1677 = vmatpush.bf16.msra.mxu0 %v1590
    %1678 = vmatpush.bf16.msra.mxu0 %v1588
    %1679 = vmatpush.bf16.msra.mxu0 %v1586
    %1680 = vmatpush.bf16.msra.mxu0 %v1584
    %1681 = vmatmul.bf16.gmra.mxu0 %v1432
    %v1682 = vpop.f32.mrf.mxu0
    %v1683 = vadd.f32 %v1669, %v1682
    %v1684 = vpop.f32.mrf.mxu0
    %v1685 = vadd.f32 %v1671, %v1684
    %1686 = vdwg.mxu0
    %v1687 = vmax.f32 %v1655, 0.0
    %v1688 = vmax.f32 %v1683, 0.0
    %v1689 = vmax.f32 %v1657, 0.0
    %v1690 = vmax.f32 %v1685, 0.0
    %v1691 = vpack.c.bf16 %v1689, %v1687
    %v1692 = vpack.c.bf16 %v1690, %v1688
    %v1693 = vld [vmem:[#allocation11] sm:$0xff]
    %v1694 = vld [vmem:[#allocation11 + $0x8] sm:$0xff]
    %v1695 = vld [vmem:[#allocation11 + $0x10] sm:$0xff]
    %v1696 = vld [vmem:[#allocation11 + $0x18] sm:$0xff]
    %v1697 = vld [vmem:[#allocation11 + $0x20] sm:$0xff]
    %v1698 = vld [vmem:[#allocation11 + $0x28] sm:$0xff]
    %v1699 = vld [vmem:[#allocation11 + $0x30] sm:$0xff]
    %v1700 = vld [vmem:[#allocation11 + $0x38] sm:$0xff]
    %v1701 = vld [vmem:[#allocation11 + $0x40] sm:$0xff]
    %v1702 = vld [vmem:[#allocation11 + $0x48] sm:$0xff]
    %v1703 = vld [vmem:[#allocation11 + $0x50] sm:$0xff]
    %v1704 = vld [vmem:[#allocation11 + $0x58] sm:$0xff]
    %v1705 = vld [vmem:[#allocation11 + $0x60] sm:$0xff]
    %v1706 = vld [vmem:[#allocation11 + $0x68] sm:$0xff]
    %v1707 = vld [vmem:[#allocation11 + $0x70] sm:$0xff]
    %v1708 = vld [vmem:[#allocation11 + $0x78] sm:$0xff]
    %v1709 = vld [vmem:[#allocation11 + $0x80] sm:$0xff]
    %v1710 = vld [vmem:[#allocation11 + $0x88] sm:$0xff]
    %v1711 = vld [vmem:[#allocation11 + $0x90] sm:$0xff]
    %v1712 = vld [vmem:[#allocation11 + $0x98] sm:$0xff]
    %v1713 = vld [vmem:[#allocation11 + $0xa0] sm:$0xff]
    %v1714 = vld [vmem:[#allocation11 + $0xa8] sm:$0xff]
    %v1715 = vld [vmem:[#allocation11 + $0xb0] sm:$0xff]
    %v1716 = vld [vmem:[#allocation11 + $0xb8] sm:$0xff]
    %v1717 = vld [vmem:[#allocation11 + $0xc0] sm:$0xff]
    %v1718 = vld [vmem:[#allocation11 + $0xc8] sm:$0xff]
    %v1719 = vld [vmem:[#allocation11 + $0xd0] sm:$0xff]
    %v1720 = vld [vmem:[#allocation11 + $0xd8] sm:$0xff]
    %v1721 = vld [vmem:[#allocation11 + $0xe0] sm:$0xff]
    %v1722 = vld [vmem:[#allocation11 + $0xe8] sm:$0xff]
    %v1723 = vld [vmem:[#allocation11 + $0xf0] sm:$0xff]
    %v1724 = vld [vmem:[#allocation11 + $0xf8] sm:$0xff]
    %v1725 = vld [vmem:[%s8] sm:$0x3]
    %v1727 = vperm.slane %v1725, 0
    %v1728 = vperm.slane %v1725, 1
    %v1763 = vunpack.c.l.b16 %v1693
    %v1764 = vunpack.c.h.b16 %v1693
    %v1765 = vunpack.c.l.b16 %v1694
    %v1766 = vunpack.c.h.b16 %v1694
    %v1767 = vunpack.c.l.b16 %v1695
    %v1768 = vunpack.c.h.b16 %v1695
    %v1769 = vunpack.c.l.b16 %v1696
    %v1770 = vunpack.c.h.b16 %v1696
    %v1771 = vunpack.c.l.b16 %v1697
    %v1772 = vunpack.c.h.b16 %v1697
    %v1773 = vunpack.c.l.b16 %v1698
    %v1774 = vunpack.c.h.b16 %v1698
    %v1775 = vunpack.c.l.b16 %v1699
    %v1776 = vunpack.c.h.b16 %v1699
    %v1777 = vunpack.c.l.b16 %v1700
    %v1778 = vunpack.c.h.b16 %v1700
    %v1779 = vunpack.c.l.b16 %v1701
    %v1780 = vunpack.c.h.b16 %v1701
    %v1781 = vunpack.c.l.b16 %v1702
    %v1782 = vunpack.c.h.b16 %v1702
    %v1783 = vunpack.c.l.b16 %v1703
    %v1784 = vunpack.c.h.b16 %v1703
    %v1785 = vunpack.c.l.b16 %v1704
    %v1786 = vunpack.c.h.b16 %v1704
    %v1787 = vunpack.c.l.b16 %v1705
    %v1788 = vunpack.c.h.b16 %v1705
    %v1789 = vunpack.c.l.b16 %v1706
    %v1790 = vunpack.c.h.b16 %v1706
    %v1791 = vunpack.c.l.b16 %v1707
    %v1792 = vunpack.c.h.b16 %v1707
    %v1793 = vunpack.c.l.b16 %v1708
    %v1794 = vunpack.c.h.b16 %v1708
    %v1795 = vunpack.c.l.b16 %v1709
    %v1796 = vunpack.c.h.b16 %v1709
    %v1797 = vunpack.c.l.b16 %v1710
    %v1798 = vunpack.c.h.b16 %v1710
    %v1799 = vunpack.c.l.b16 %v1711
    %v1800 = vunpack.c.h.b16 %v1711
    %v1801 = vunpack.c.l.b16 %v1712
    %v1802 = vunpack.c.h.b16 %v1712
    %v1803 = vunpack.c.l.b16 %v1713
    %v1804 = vunpack.c.h.b16 %v1713
    %v1805 = vunpack.c.l.b16 %v1714
    %v1806 = vunpack.c.h.b16 %v1714
    %v1807 = vunpack.c.l.b16 %v1715
    %v1808 = vunpack.c.h.b16 %v1715
    %v1809 = vunpack.c.l.b16 %v1716
    %v1810 = vunpack.c.h.b16 %v1716
    %v1811 = vunpack.c.l.b16 %v1717
    %v1812 = vunpack.c.h.b16 %v1717
    %v1813 = vunpack.c.l.b16 %v1718
    %v1814 = vunpack.c.h.b16 %v1718
    %v1815 = vunpack.c.l.b16 %v1719
    %v1816 = vunpack.c.h.b16 %v1719
    %v1817 = vunpack.c.l.b16 %v1720
    %v1818 = vunpack.c.h.b16 %v1720
    %v1819 = vunpack.c.l.b16 %v1721
    %v1820 = vunpack.c.h.b16 %v1721
    %v1821 = vunpack.c.l.b16 %v1722
    %v1822 = vunpack.c.h.b16 %v1722
    %v1823 = vunpack.c.l.b16 %v1723
    %v1824 = vunpack.c.h.b16 %v1723
    %v1825 = vunpack.c.l.b16 %v1724
    %v1826 = vunpack.c.h.b16 %v1724
    %v1827 = vpack.c.b16 %v1765, %v1763
    %v1828 = vpack.c.b16 %v1766, %v1764
    %v1829 = vpack.c.b16 %v1769, %v1767
    %v1830 = vpack.c.b16 %v1770, %v1768
    %v1831 = vpack.c.b16 %v1773, %v1771
    %v1832 = vpack.c.b16 %v1774, %v1772
    %v1833 = vpack.c.b16 %v1777, %v1775
    %v1834 = vpack.c.b16 %v1778, %v1776
    %v1835 = vpack.c.b16 %v1781, %v1779
    %v1836 = vpack.c.b16 %v1782, %v1780
    %v1837 = vpack.c.b16 %v1785, %v1783
    %v1838 = vpack.c.b16 %v1786, %v1784
    %v1839 = vpack.c.b16 %v1789, %v1787
    %v1840 = vpack.c.b16 %v1790, %v1788
    %v1841 = vpack.c.b16 %v1793, %v1791
    %v1842 = vpack.c.b16 %v1794, %v1792
    %v1843 = vpack.c.b16 %v1797, %v1795
    %v1844 = vpack.c.b16 %v1798, %v1796
    %v1845 = vpack.c.b16 %v1801, %v1799
    %v1846 = vpack.c.b16 %v1802, %v1800
    %v1847 = vpack.c.b16 %v1805, %v1803
    %v1848 = vpack.c.b16 %v1806, %v1804
    %v1849 = vpack.c.b16 %v1809, %v1807
    %v1850 = vpack.c.b16 %v1810, %v1808
    %v1851 = vpack.c.b16 %v1813, %v1811
    %v1852 = vpack.c.b16 %v1814, %v1812
    %v1853 = vpack.c.b16 %v1817, %v1815
    %v1854 = vpack.c.b16 %v1818, %v1816
    %v1855 = vpack.c.b16 %v1821, %v1819
    %v1856 = vpack.c.b16 %v1822, %v1820
    %v1857 = vpack.c.b16 %v1825, %v1823
    %v1858 = vpack.c.b16 %v1826, %v1824
    %1891 = vmatpush.bf16.msra.mxu0 %v1841
    %1892 = vmatpush.bf16.msra.mxu0 %v1839
    %1893 = vmatpush.bf16.msra.mxu0 %v1837
    %1894 = vmatpush.bf16.msra.mxu0 %v1835
    %1895 = vmatpush.bf16.msra.mxu0 %v1833
    %1896 = vmatpush.bf16.msra.mxu0 %v1831
    %1897 = vmatpush.bf16.msra.mxu0 %v1829
    %1898 = vmatpush.bf16.msra.mxu0 %v1827
    %1899 = vmatmul.bf16.gmra.mxu0 %v1691
    %v1900 = vpop.f32.mrf.mxu0
    %v1901 = vadd.f32 %v1727, %v1900
    %v1902 = vpop.f32.mrf.mxu0
    %v1903 = vadd.f32 %v1727, %v1902
    %1904 = vdwg.mxu0
    %1905 = vmatpush.bf16.msra.mxu0 %v1857
    %1906 = vmatpush.bf16.msra.mxu0 %v1855
    %1907 = vmatpush.bf16.msra.mxu0 %v1853
    %1908 = vmatpush.bf16.msra.mxu0 %v1851
    %1909 = vmatpush.bf16.msra.mxu0 %v1849
    %1910 = vmatpush.bf16.msra.mxu0 %v1847
    %1911 = vmatpush.bf16.msra.mxu0 %v1845
    %1912 = vmatpush.bf16.msra.mxu0 %v1843
    %1913 = vmatmul.bf16.gmra.mxu0 %v1692
    %v1914 = vpop.f32.mrf.mxu0
    %v1915 = vadd.f32 %v1901, %v1914
    %v1916 = vpop.f32.mrf.mxu0
    %v1917 = vadd.f32 %v1903, %v1916
    %1918 = vdwg.mxu0
    %1919 = vmatpush.bf16.msra.mxu0 %v1842
    %1920 = vmatpush.bf16.msra.mxu0 %v1840
    %1921 = vmatpush.bf16.msra.mxu0 %v1838
    %1922 = vmatpush.bf16.msra.mxu0 %v1836
    %1923 = vmatpush.bf16.msra.mxu0 %v1834
    %1924 = vmatpush.bf16.msra.mxu0 %v1832
    %1925 = vmatpush.bf16.msra.mxu0 %v1830
    %1926 = vmatpush.bf16.msra.mxu0 %v1828
    %1927 = vmatmul.bf16.gmra.mxu0 %v1691
    %v1928 = vpop.f32.mrf.mxu0
    %v1929 = vadd.f32 %v1728, %v1928
    %v1930 = vpop.f32.mrf.mxu0
    %v1931 = vadd.f32 %v1728, %v1930
    %1932 = vdwg.mxu0
    %1933 = vmatpush.bf16.msra.mxu0 %v1858
    %1934 = vmatpush.bf16.msra.mxu0 %v1856
    %1935 = vmatpush.bf16.msra.mxu0 %v1854
    %1936 = vmatpush.bf16.msra.mxu0 %v1852
    %1937 = vmatpush.bf16.msra.mxu0 %v1850
    %1938 = vmatpush.bf16.msra.mxu0 %v1848
    %1939 = vmatpush.bf16.msra.mxu0 %v1846
    %1940 = vmatpush.bf16.msra.mxu0 %v1844
    %1941 = vmatmul.bf16.gmra.mxu0 %v1692
    %v1942 = vpop.f32.mrf.mxu0
    %v1943 = vadd.f32 %v1929, %v1942
    %v1944 = vpop.f32.mrf.mxu0
    %v1945 = vadd.f32 %v1931, %v1944
    %1946 = vdwg.mxu0
    %v1947 = vpack.c.bf16 %v1943, %v1915
    %v1948 = vpack.c.bf16 %v1945, %v1917
    %1949 = vst [vmem:[#allocation13] sm:$0xff] %v1947
    %1950 = vst [vmem:[#allocation13 + $0x8] sm:$0xff] %v1948
    // Predicated region
    $region62: #{tpu_custom_call.1} parent=1 // pred_check
      _
    $region63: #{tpu_custom_call.1} parent=1 // pred_check_branch
      %1952 = sbr.rel (0) target = $region65
    $region64: #{tpu_custom_call.1} parent=1 // pred_region
      %1954 = vsyncadd [#allocation4], 0
      %s1955 = sshll.u32 [#allocation13], 4
      %s1956 = int_to_ptr.vmem [resolvable:$true] %s1955
      %s1957 = sshll.u32 %s9, 4
      %s1958 = int_to_ptr.hbm [resolvable:$true] %s1957
      %1963 = dma.vmem_to_hbm [thread:$0]  %s1956, 256, %s1958, [#allocation4], 128, 128, 8
    $region65: #{tpu_custom_call.1} parent=1 // pred_fallthru
      _
    // Predicated region
    $region66: #{tpu_custom_call.1} parent=1 // pred_check
      _
    $region67: #{tpu_custom_call.1} parent=1 // pred_check_branch
      %1965 = sbr.rel (0) target = $region69
    $region68: #{tpu_custom_call.1} parent=1 // pred_region
      %1967 = dma.done [#allocation4], 256
    $region69: #{tpu_custom_call.1} parent=1 // pred_fallthru
      _
    %1968 = vsyncpa [#allocation3], 1
    %1969 = vsyncpa [#allocation6], 1
    %1970 = vsyncpa [#allocation9], 1
    %1971 = vsyncpa [#allocation12], 1
    %1972 = vsyncpa [#allocation4], 1

</llo_original>
